<compile_context>
chip_gen: v6e
topology: v6e:2x2x1
jax: 0.10.0
libtpu: 0.0.40
codegen_flags: <defaults>
</compile_context>

<pallas_src>
import functools

import jax
import jax.numpy as jnp
from jax import lax
from jax.experimental import pallas as pl
from jax.experimental.pallas import tpu as pltpu


MAX_PAD = 8  # largest branch padding (atrous_block8) -> shared D/H halo size


def _aspp_fused_kernel(x_ref, wb_ref, b_ref, o_ref, xpad_ref, col_ref,
                       *, taps, NB, D, H, P):
    # x_ref   : (NB*D, H, W*Cin)     bf16  unpadded input rows for NB batches
    # wb_ref  : (T*W*Cin, W*Ctot)    bf16  merged banded weights (all branches)
    # b_ref   : (1, W*Ctot)          f32   bias replicated over w
    # o_ref   : (NB*D*H, W*Ctot)     f32   fused / concatenated output slab
    # xpad_ref: (D+2P, H+2P, W*Cin)  f32   D/H-halo scratch (W halo lives in wb)
    # col_ref : (NB*D*H, T*W*Cin)    bf16  im2col staging buffer
    DH = D * H
    WCin = x_ref.shape[-1]

    # The halo must be zero on every grid step / core (do not rely on a step-0
    # init: megacore grid partitioning may never run program_id == 0 on a core).
    # This is a tiny VMEM zero-fill; the interior is overwritten below.
    xpad_ref[...] = jnp.zeros_like(xpad_ref)

    for nb in range(NB):
        # Interior copy (bf16 -> f32 upcast rides along the copy).
        xpad_ref[P:P + D, P:P + H, :] = (
            x_ref[nb * D:(nb + 1) * D, :, :].astype(xpad_ref.dtype))
        r0 = nb * DH
        # Stage the tap slabs ONCE into the im2col buffer.  Each slab read is a
        # sublane-offset slice (a relayout copy); doing it once here -- with the
        # f32->bf16 cast fused into the copy -- feeds a single deep-K matmul
        # instead of 28 shallow dots.
        for t, (od, oh) in enumerate(taps):
            slab = xpad_ref[od:od + D, oh:oh + H, :]        # (D, H, W*Cin) f32
            col_ref[r0:r0 + DH, t * WCin:(t + 1) * WCin] = (
                slab.reshape(DH, WCin).astype(col_ref.dtype))

    # One lane-dense MXU matmul over the merged contraction axis, f32 accum.
    acc = jnp.dot(col_ref[...], wb_ref[...], preferred_element_type=jnp.float32)
    # Single bias add (replaces the previous 27 accumulate adds + bias add).
    o_ref[...] = (acc + b_ref[...]).astype(o_ref.dtype)


def _banded_weights(w, *, padding, dilation, W, c_off, c_total):
    """Fold the kw axis (and its zero padding) of a (K,K,K,Cin,Cout) kernel into
    banded matrices over the UNPADDED W axis.

    Returns wb of shape (K*K, W*Cin, W*c_total) with
        wb[kd*K+kh, w_in*Cin+ci, w_out*c_total + c_off + co] = w[kd,kh,kw,ci,co]
        where w_in = w_out - padding + kw*dilation (out-of-range taps dropped,
        i.e. zero padding along W is handled by the band structure),
    plus the (d, h) tap-plane offsets into the MAX_PAD D/H-halo'ed input.
    """
    K, _, _, Cin, Cout = w.shape
    w_in = jnp.arange(W)[None, :, None]
    w_out = jnp.arange(W)[None, None, :]
    kw = jnp.arange(K)[:, None, None]
    S = (w_in == w_out - padding + kw * dilation).astype(w.dtype)   # (K, W, W)
    wb = jnp.einsum("xpw,dhxio->dhpiwo", S, w)        # (K, K, W, Cin, W, Cout)
    wb = wb.reshape(K * K, W * Cin, W, Cout)
    wb = jnp.pad(wb, ((0, 0), (0, 0), (0, 0), (c_off, c_total - c_off - Cout)))
    wb = wb.reshape(K * K, W * Cin, W * c_total)
    off = MAX_PAD - padding
    taps = [(off + kd * dilation, off + kh * dilation)
            for kd in range(K) for kh in range(K)]
    return wb, taps


def aspp_forward(params, x_ncdhw, *, batch_block=None):
    """ASPP forward. x: (N, Cin, D, H, W) -> (N, outChan, D, H, W)."""
    N, Cin, D, H, W = x_ncdhw.shape
    Co = params["conv"][0].shape[-1]          # out channels per branch
    Ctot = 4 * Co
    P = MAX_PAD
    Dp, Hp = D + 2 * P, H + 2 * P
    WCin, WCtot, DH = W * Cin, W * Ctot, D * H

    # Fuse NB batch elements per grid step (M = NB*D*H matmul rows).
    NB = batch_block if batch_block is not None else (2 if N % 2 == 0 else 1)
    assert N % NB == 0, (N, NB)

    # --- input: NCDHW -> (N*D, H, W*Cin) bf16, NO padding materialized -------
    x = jnp.transpose(x_ncdhw, (0, 2, 3, 4, 1)).astype(jnp.bfloat16)
    x2 = x.reshape(N * D, H, WCin)

    # --- merged banded weights / bias for all four branches (concat order) ---
    branches = (
        ("conv", 1, 1, 0 * Co),   # name, padding, dilation, channel offset
        ("ab1",  0, 1, 1 * Co),
        ("ab4",  4, 4, 2 * Co),
        ("ab8",  8, 8, 3 * Co),
    )
    wb_parts, taps = [], []
    for name, pad, dil, c0 in branches:
        w, _ = params[name]
        wb, tp = _banded_weights(w, padding=pad, dilation=dil, W=W,
                                 c_off=c0, c_total=Ctot)
        wb_parts.append(wb)
        taps += tp
    T = len(taps)                                         # 9 + 1 + 9 + 9 = 28
    wb_all = (jnp.concatenate(wb_parts, axis=0)
              .reshape(T * WCin, WCtot).astype(jnp.bfloat16))
    b_all = jnp.concatenate([params[name][1] for name, *_ in branches])
    b_row = jnp.tile(b_all, W).reshape(1, WCtot).astype(jnp.float32)

    kernel = functools.partial(_aspp_fused_kernel, taps=tuple(taps),
                               NB=NB, D=D, H=H, P=P)

    out = pl.pallas_call(
        kernel,
        out_shape=jax.ShapeDtypeStruct((N * DH, WCtot), jnp.float32),
        grid_spec=pltpu.PrefetchScalarGridSpec(
            num_scalar_prefetch=0,
            grid=(N // NB,),
            in_specs=[
                pl.BlockSpec((NB * D, H, WCin), lambda i: (i, 0, 0)),
                pl.BlockSpec((T * WCin, WCtot), lambda i: (0, 0)),
                pl.BlockSpec((1, WCtot), lambda i: (0, 0)),
            ],
            out_specs=pl.BlockSpec((NB * DH, WCtot), lambda i: (i, 0)),
            scratch_shapes=[
                pltpu.VMEM((Dp, Hp, WCin), jnp.float32),       # D/H-halo scratch
                pltpu.VMEM((NB * DH, T * WCin), jnp.bfloat16),  # im2col buffer
            ],
        ),
        compiler_params=pltpu.CompilerParams(
            dimension_semantics=("parallel",),
            # Explicit scoped-VMEM limit (actual usage here is ~1 MiB); safe on
            # v5e (raises its 16 MiB default) and within v6e/v7x budgets.
            vmem_limit_bytes=32 * 1024 * 1024,
        ),
        cost_estimate=pl.CostEstimate(
            flops=2 * N * DH * (T * WCin) * WCtot,
            transcendentals=0,
            bytes_accessed=(x2.size * x2.dtype.itemsize
                            + wb_all.size * wb_all.dtype.itemsize
                            + b_row.size * 4 + N * DH * WCtot * 4),
        ),
    )(x2, wb_all, b_row)

    # (N*D*H, W*Ctot) lane-dense slab -> NCDHW (one small XLA permute).
    return jnp.transpose(out.reshape(N, D, H, W, Ctot), (0, 4, 1, 2, 3))


def init_aspp_params(key, in_channel, out_chan):
    oc_aspp = int(out_chan / 4)
    keys = jax.random.split(key, 8)

    def conv_init(kw, kb, K, cin, cout):
        # deterministic, PyTorch-style fan-in scaled uniform init
        bound = 1.0 / float(jnp.sqrt(cin * K * K * K))
        w = jax.random.uniform(kw, (K, K, K, cin, cout), jnp.float32,
                               -bound, bound)
        b = jax.random.uniform(kb, (cout,), jnp.float32, -bound, bound)
        return w, b

    return {
        "conv": conv_init(keys[0], keys[1], 3, in_channel, oc_aspp),
        "ab1":  conv_init(keys[2], keys[3], 1, in_channel, oc_aspp),
        "ab4":  conv_init(keys[4], keys[5], 3, in_channel, oc_aspp),
        "ab8":  conv_init(keys[6], keys[7], 3, in_channel, oc_aspp),
    }


# ---- pure-JAX reference (for correctness check only) ------------------------
def _conv3d_ref(x, w, b, *, padding, dilation):
    out = lax.conv_general_dilated(
        x, w, window_strides=(1, 1, 1),
        padding=[(padding, padding)] * 3,
        rhs_dilation=(dilation, dilation, dilation),
        dimension_numbers=("NDHWC", "DHWIO", "NDHWC"))
    return out + b


def aspp_reference(params, x_ncdhw):
    x = jnp.transpose(x_ncdhw, (0, 2, 3, 4, 1))
    img = _conv3d_ref(x, *params["conv"], padding=1, dilation=1)
    a1 = _conv3d_ref(x, *params["ab1"], padding=0, dilation=1)
    a4 = _conv3d_ref(x, *params["ab4"], padding=4, dilation=4)
    a8 = _conv3d_ref(x, *params["ab8"], padding=8, dilation=8)
    net = jnp.concatenate([img, a1, a4, a8], axis=-1)
    return jnp.transpose(net, (0, 4, 1, 2, 3))


if __name__ == "__main__":
    key = jax.random.PRNGKey(0)
    kx, kp = jax.random.split(key)

    in_channel, out_chan = 4, 16
    N, D, H, W = 2, 8, 8, 8
    x = jax.random.normal(kx, (N, in_channel, D, H, W), jnp.float32)  # NCDHW
    params = init_aspp_params(kp, in_channel, out_chan)

    out = jax.jit(aspp_forward)(params, x)
    out = jax.block_until_ready(out)

    ref = aspp_reference(params, x)
    assert out.shape == (N, out_chan, D, H, W), out.shape
    # bf16 MXU operands with f32 accumulation -> bf16-level tolerance vs f32 ref.
    assert jnp.allclose(out, ref, atol=2e-2, rtol=2e-2), \
        float(jnp.max(jnp.abs(out - ref)))

    print("KERNEL_OK")
</pallas_src>

<mosaic_0001>
module attributes {stable_mosaic.version = 11 : i64} {
  func.func @_aspp_fused_kernel(%arg0: i32, %arg1: memref<16x8x32xbf16, #tpu.memory_space<vmem>>, %arg2: memref<896x128xbf16, #tpu.memory_space<vmem>>, %arg3: memref<1x128xf32, #tpu.memory_space<vmem>>, %arg4: memref<128x128xf32, #tpu.memory_space<vmem>>, %arg5: memref<24x24x32xf32, #tpu.memory_space<vmem>>, %arg6: memref<128x896xbf16, #tpu.memory_space<vmem>>) attributes {dimension_semantics = [#tpu.dimension_semantics<parallel>], iteration_bounds = array<i64: 1>, scalar_prefetch = 0 : i64, scratch_operands = 2 : i64, tpu.core_type = #tpu.core_type<tc>, window_params = [{transform_indices = @transform_0, window_bounds = array<i64: 16, 8, 32>}, {pipeline_mode = #tpu.pipeline_mode<synchronous>, transform_indices = @transform_1, window_bounds = array<i64: 896, 128>}, {pipeline_mode = #tpu.pipeline_mode<synchronous>, transform_indices = @transform_2, window_bounds = array<i64: 1, 128>}, {transform_indices = @transform_3, window_bounds = array<i64: 128, 128>}]} {
    %cst = arith.constant 0.000000e+00 : f32
    %0 = vector.broadcast %cst : f32 to vector<24x24x32xf32>
    %c0 = arith.constant 0 : index
    %c0_0 = arith.constant 0 : index
    %c0_1 = arith.constant 0 : index
    %1 = vector.load %arg5[%c0, %c0_0, %c0_1] : memref<24x24x32xf32, #tpu.memory_space<vmem>>, vector<24x24x32xf32>
    tpu.vector_store %arg5[%c0, %c0_0, %c0_1], %0 {strides = array<i32>} : memref<24x24x32xf32, #tpu.memory_space<vmem>>, vector<24x24x32xf32>,
    %c0_2 = arith.constant 0 : index
    %c0_3 = arith.constant 0 : index
    %c0_4 = arith.constant 0 : index
    %2 = vector.load %arg1[%c0_2, %c0_3, %c0_4] : memref<16x8x32xbf16, #tpu.memory_space<vmem>>, vector<8x8x32xbf16>
    %3 = arith.extf %2 : vector<8x8x32xbf16> to vector<8x8x32xf32>
    %c8 = arith.constant 8 : index
    %c8_5 = arith.constant 8 : index
    %c0_6 = arith.constant 0 : index
    %4 = vector.load %arg5[%c8, %c8_5, %c0_6] : memref<24x24x32xf32, #tpu.memory_space<vmem>>, vector<8x8x32xf32>
    tpu.vector_store %arg5[%c8, %c8_5, %c0_6], %3 {strides = array<i32>} : memref<24x24x32xf32, #tpu.memory_space<vmem>>, vector<8x8x32xf32>,
    %c7 = arith.constant 7 : index
    %c7_7 = arith.constant 7 : index
    %c0_8 = arith.constant 0 : index
    %5 = vector.load %arg5[%c7, %c7_7, %c0_8] : memref<24x24x32xf32, #tpu.memory_space<vmem>>, vector<8x8x32xf32>
    %6 = vector.shape_cast %5 : vector<8x8x32xf32> to vector<64x32xf32>
    %7 = arith.truncf %6 : vector<64x32xf32> to vector<64x32xbf16>
    %c0_9 = arith.constant 0 : index
    %c0_10 = arith.constant 0 : index
    %8 = vector.load %arg6[%c0_9, %c0_10] : memref<128x896xbf16, #tpu.memory_space<vmem>>, vector<64x32xbf16>
    tpu.vector_store %arg6[%c0_9, %c0_10], %7 {strides = array<i32>} : memref<128x896xbf16, #tpu.memory_space<vmem>>, vector<64x32xbf16>,
    %c7_11 = arith.constant 7 : index
    %c8_12 = arith.constant 8 : index
    %c0_13 = arith.constant 0 : index
    %9 = vector.load %arg5[%c7_11, %c8_12, %c0_13] : memref<24x24x32xf32, #tpu.memory_space<vmem>>, vector<8x8x32xf32>
    %10 = vector.shape_cast %9 : vector<8x8x32xf32> to vector<64x32xf32>
    %11 = arith.truncf %10 : vector<64x32xf32> to vector<64x32xbf16>
    %c0_14 = arith.constant 0 : index
    %c32 = arith.constant 32 : index
    %12 = vector.load %arg6[%c0_14, %c32] : memref<128x896xbf16, #tpu.memory_space<vmem>>, vector<64x32xbf16>
    tpu.vector_store %arg6[%c0_14, %c32], %11 {strides = array<i32>} : memref<128x896xbf16, #tpu.memory_space<vmem>>, vector<64x32xbf16>,
    %c7_15 = arith.constant 7 : index
    %c9 = arith.constant 9 : index
    %c0_16 = arith.constant 0 : index
    %13 = vector.load %arg5[%c7_15, %c9, %c0_16] : memref<24x24x32xf32, #tpu.memory_space<vmem>>, vector<8x8x32xf32>
    %14 = vector.shape_cast %13 : vector<8x8x32xf32> to vector<64x32xf32>
    %15 = arith.truncf %14 : vector<64x32xf32> to vector<64x32xbf16>
    %c0_17 = arith.constant 0 : index
    %c64 = arith.constant 64 : index
    %16 = vector.load %arg6[%c0_17, %c64] : memref<128x896xbf16, #tpu.memory_space<vmem>>, vector<64x32xbf16>
    tpu.vector_store %arg6[%c0_17, %c64], %15 {strides = array<i32>} : memref<128x896xbf16, #tpu.memory_space<vmem>>, vector<64x32xbf16>,
    %c8_18 = arith.constant 8 : index
    %c7_19 = arith.constant 7 : index
    %c0_20 = arith.constant 0 : index
    %17 = vector.load %arg5[%c8_18, %c7_19, %c0_20] : memref<24x24x32xf32, #tpu.memory_space<vmem>>, vector<8x8x32xf32>
    %18 = vector.shape_cast %17 : vector<8x8x32xf32> to vector<64x32xf32>
    %19 = arith.truncf %18 : vector<64x32xf32> to vector<64x32xbf16>
    %c0_21 = arith.constant 0 : index
    %c96 = arith.constant 96 : index
    %20 = vector.load %arg6[%c0_21, %c96] : memref<128x896xbf16, #tpu.memory_space<vmem>>, vector<64x32xbf16>
    tpu.vector_store %arg6[%c0_21, %c96], %19 {strides = array<i32>} : memref<128x896xbf16, #tpu.memory_space<vmem>>, vector<64x32xbf16>,
    %c8_22 = arith.constant 8 : index
    %c8_23 = arith.constant 8 : index
    %c0_24 = arith.constant 0 : index
    %21 = vector.load %arg5[%c8_22, %c8_23, %c0_24] : memref<24x24x32xf32, #tpu.memory_space<vmem>>, vector<8x8x32xf32>
    %22 = vector.shape_cast %21 : vector<8x8x32xf32> to vector<64x32xf32>
    %23 = arith.truncf %22 : vector<64x32xf32> to vector<64x32xbf16>
    %c0_25 = arith.constant 0 : index
    %c128 = arith.constant 128 : index
    %24 = vector.load %arg6[%c0_25, %c128] : memref<128x896xbf16, #tpu.memory_space<vmem>>, vector<64x32xbf16>
    tpu.vector_store %arg6[%c0_25, %c128], %23 {strides = array<i32>} : memref<128x896xbf16, #tpu.memory_space<vmem>>, vector<64x32xbf16>,
    %c8_26 = arith.constant 8 : index
    %c9_27 = arith.constant 9 : index
    %c0_28 = arith.constant 0 : index
    %25 = vector.load %arg5[%c8_26, %c9_27, %c0_28] : memref<24x24x32xf32, #tpu.memory_space<vmem>>, vector<8x8x32xf32>
    %26 = vector.shape_cast %25 : vector<8x8x32xf32> to vector<64x32xf32>
    %27 = arith.truncf %26 : vector<64x32xf32> to vector<64x32xbf16>
    %c0_29 = arith.constant 0 : index
    %c160 = arith.constant 160 : index
    %28 = vector.load %arg6[%c0_29, %c160] : memref<128x896xbf16, #tpu.memory_space<vmem>>, vector<64x32xbf16>
    tpu.vector_store %arg6[%c0_29, %c160], %27 {strides = array<i32>} : memref<128x896xbf16, #tpu.memory_space<vmem>>, vector<64x32xbf16>,
    %c9_30 = arith.constant 9 : index
    %c7_31 = arith.constant 7 : index
    %c0_32 = arith.constant 0 : index
    %29 = vector.load %arg5[%c9_30, %c7_31, %c0_32] : memref<24x24x32xf32, #tpu.memory_space<vmem>>, vector<8x8x32xf32>
    %30 = vector.shape_cast %29 : vector<8x8x32xf32> to vector<64x32xf32>
    %31 = arith.truncf %30 : vector<64x32xf32> to vector<64x32xbf16>
    %c0_33 = arith.constant 0 : index
    %c192 = arith.constant 192 : index
    %32 = vector.load %arg6[%c0_33, %c192] : memref<128x896xbf16, #tpu.memory_space<vmem>>, vector<64x32xbf16>
    tpu.vector_store %arg6[%c0_33, %c192], %31 {strides = array<i32>} : memref<128x896xbf16, #tpu.memory_space<vmem>>, vector<64x32xbf16>,
    %c9_34 = arith.constant 9 : index
    %c8_35 = arith.constant 8 : index
    %c0_36 = arith.constant 0 : index
    %33 = vector.load %arg5[%c9_34, %c8_35, %c0_36] : memref<24x24x32xf32, #tpu.memory_space<vmem>>, vector<8x8x32xf32>
    %34 = vector.shape_cast %33 : vector<8x8x32xf32> to vector<64x32xf32>
    %35 = arith.truncf %34 : vector<64x32xf32> to vector<64x32xbf16>
    %c0_37 = arith.constant 0 : index
    %c224 = arith.constant 224 : index
    %36 = vector.load %arg6[%c0_37, %c224] : memref<128x896xbf16, #tpu.memory_space<vmem>>, vector<64x32xbf16>
    tpu.vector_store %arg6[%c0_37, %c224], %35 {strides = array<i32>} : memref<128x896xbf16, #tpu.memory_space<vmem>>, vector<64x32xbf16>,
    %c9_38 = arith.constant 9 : index
    %c9_39 = arith.constant 9 : index
    %c0_40 = arith.constant 0 : index
    %37 = vector.load %arg5[%c9_38, %c9_39, %c0_40] : memref<24x24x32xf32, #tpu.memory_space<vmem>>, vector<8x8x32xf32>
    %38 = vector.shape_cast %37 : vector<8x8x32xf32> to vector<64x32xf32>
    %39 = arith.truncf %38 : vector<64x32xf32> to vector<64x32xbf16>
    %c0_41 = arith.constant 0 : index
    %c256 = arith.constant 256 : index
    %40 = vector.load %arg6[%c0_41, %c256] : memref<128x896xbf16, #tpu.memory_space<vmem>>, vector<64x32xbf16>
    tpu.vector_store %arg6[%c0_41, %c256], %39 {strides = array<i32>} : memref<128x896xbf16, #tpu.memory_space<vmem>>, vector<64x32xbf16>,
    %c8_42 = arith.constant 8 : index
    %c8_43 = arith.constant 8 : index
    %c0_44 = arith.constant 0 : index
    %41 = vector.load %arg5[%c8_42, %c8_43, %c0_44] : memref<24x24x32xf32, #tpu.memory_space<vmem>>, vector<8x8x32xf32>
    %42 = vector.shape_cast %41 : vector<8x8x32xf32> to vector<64x32xf32>
    %43 = arith.truncf %42 : vector<64x32xf32> to vector<64x32xbf16>
    %c0_45 = arith.constant 0 : index
    %c288 = arith.constant 288 : index
    %44 = vector.load %arg6[%c0_45, %c288] : memref<128x896xbf16, #tpu.memory_space<vmem>>, vector<64x32xbf16>
    tpu.vector_store %arg6[%c0_45, %c288], %43 {strides = array<i32>} : memref<128x896xbf16, #tpu.memory_space<vmem>>, vector<64x32xbf16>,
    %c4 = arith.constant 4 : index
    %c4_46 = arith.constant 4 : index
    %c0_47 = arith.constant 0 : index
    %45 = vector.load %arg5[%c4, %c4_46, %c0_47] : memref<24x24x32xf32, #tpu.memory_space<vmem>>, vector<8x8x32xf32>
    %46 = vector.shape_cast %45 : vector<8x8x32xf32> to vector<64x32xf32>
    %47 = arith.truncf %46 : vector<64x32xf32> to vector<64x32xbf16>
    %c0_48 = arith.constant 0 : index
    %c320 = arith.constant 320 : index
    %48 = vector.load %arg6[%c0_48, %c320] : memref<128x896xbf16, #tpu.memory_space<vmem>>, vector<64x32xbf16>
    tpu.vector_store %arg6[%c0_48, %c320], %47 {strides = array<i32>} : memref<128x896xbf16, #tpu.memory_space<vmem>>, vector<64x32xbf16>,
    %c4_49 = arith.constant 4 : index
    %c8_50 = arith.constant 8 : index
    %c0_51 = arith.constant 0 : index
    %49 = vector.load %arg5[%c4_49, %c8_50, %c0_51] : memref<24x24x32xf32, #tpu.memory_space<vmem>>, vector<8x8x32xf32>
    %50 = vector.shape_cast %49 : vector<8x8x32xf32> to vector<64x32xf32>
    %51 = arith.truncf %50 : vector<64x32xf32> to vector<64x32xbf16>
    %c0_52 = arith.constant 0 : index
    %c352 = arith.constant 352 : index
    %52 = vector.load %arg6[%c0_52, %c352] : memref<128x896xbf16, #tpu.memory_space<vmem>>, vector<64x32xbf16>
    tpu.vector_store %arg6[%c0_52, %c352], %51 {strides = array<i32>} : memref<128x896xbf16, #tpu.memory_space<vmem>>, vector<64x32xbf16>,
    %c4_53 = arith.constant 4 : index
    %c12 = arith.constant 12 : index
    %c0_54 = arith.constant 0 : index
    %53 = vector.load %arg5[%c4_53, %c12, %c0_54] : memref<24x24x32xf32, #tpu.memory_space<vmem>>, vector<8x8x32xf32>
    %54 = vector.shape_cast %53 : vector<8x8x32xf32> to vector<64x32xf32>
    %55 = arith.truncf %54 : vector<64x32xf32> to vector<64x32xbf16>
    %c0_55 = arith.constant 0 : index
    %c384 = arith.constant 384 : index
    %56 = vector.load %arg6[%c0_55, %c384] : memref<128x896xbf16, #tpu.memory_space<vmem>>, vector<64x32xbf16>
    tpu.vector_store %arg6[%c0_55, %c384], %55 {strides = array<i32>} : memref<128x896xbf16, #tpu.memory_space<vmem>>, vector<64x32xbf16>,
    %c8_56 = arith.constant 8 : index
    %c4_57 = arith.constant 4 : index
    %c0_58 = arith.constant 0 : index
    %57 = vector.load %arg5[%c8_56, %c4_57, %c0_58] : memref<24x24x32xf32, #tpu.memory_space<vmem>>, vector<8x8x32xf32>
    %58 = vector.shape_cast %57 : vector<8x8x32xf32> to vector<64x32xf32>
    %59 = arith.truncf %58 : vector<64x32xf32> to vector<64x32xbf16>
    %c0_59 = arith.constant 0 : index
    %c416 = arith.constant 416 : index
    %60 = vector.load %arg6[%c0_59, %c416] : memref<128x896xbf16, #tpu.memory_space<vmem>>, vector<64x32xbf16>
    tpu.vector_store %arg6[%c0_59, %c416], %59 {strides = array<i32>} : memref<128x896xbf16, #tpu.memory_space<vmem>>, vector<64x32xbf16>,
    %c8_60 = arith.constant 8 : index
    %c8_61 = arith.constant 8 : index
    %c0_62 = arith.constant 0 : index
    %61 = vector.load %arg5[%c8_60, %c8_61, %c0_62] : memref<24x24x32xf32, #tpu.memory_space<vmem>>, vector<8x8x32xf32>
    %62 = vector.shape_cast %61 : vector<8x8x32xf32> to vector<64x32xf32>
    %63 = arith.truncf %62 : vector<64x32xf32> to vector<64x32xbf16>
    %c0_63 = arith.constant 0 : index
    %c448 = arith.constant 448 : index
    %64 = vector.load %arg6[%c0_63, %c448] : memref<128x896xbf16, #tpu.memory_space<vmem>>, vector<64x32xbf16>
    tpu.vector_store %arg6[%c0_63, %c448], %63 {strides = array<i32>} : memref<128x896xbf16, #tpu.memory_space<vmem>>, vector<64x32xbf16>,
    %c8_64 = arith.constant 8 : index
    %c12_65 = arith.constant 12 : index
    %c0_66 = arith.constant 0 : index
    %65 = vector.load %arg5[%c8_64, %c12_65, %c0_66] : memref<24x24x32xf32, #tpu.memory_space<vmem>>, vector<8x8x32xf32>
    %66 = vector.shape_cast %65 : vector<8x8x32xf32> to vector<64x32xf32>
    %67 = arith.truncf %66 : vector<64x32xf32> to vector<64x32xbf16>
    %c0_67 = arith.constant 0 : index
    %c480 = arith.constant 480 : index
    %68 = vector.load %arg6[%c0_67, %c480] : memref<128x896xbf16, #tpu.memory_space<vmem>>, vector<64x32xbf16>
    tpu.vector_store %arg6[%c0_67, %c480], %67 {strides = array<i32>} : memref<128x896xbf16, #tpu.memory_space<vmem>>, vector<64x32xbf16>,
    %c12_68 = arith.constant 12 : index
    %c4_69 = arith.constant 4 : index
    %c0_70 = arith.constant 0 : index
    %69 = vector.load %arg5[%c12_68, %c4_69, %c0_70] : memref<24x24x32xf32, #tpu.memory_space<vmem>>, vector<8x8x32xf32>
    %70 = vector.shape_cast %69 : vector<8x8x32xf32> to vector<64x32xf32>
    %71 = arith.truncf %70 : vector<64x32xf32> to vector<64x32xbf16>
    %c0_71 = arith.constant 0 : index
    %c512 = arith.constant 512 : index
    %72 = vector.load %arg6[%c0_71, %c512] : memref<128x896xbf16, #tpu.memory_space<vmem>>, vector<64x32xbf16>
    tpu.vector_store %arg6[%c0_71, %c512], %71 {strides = array<i32>} : memref<128x896xbf16, #tpu.memory_space<vmem>>, vector<64x32xbf16>,
    %c12_72 = arith.constant 12 : index
    %c8_73 = arith.constant 8 : index
    %c0_74 = arith.constant 0 : index
    %73 = vector.load %arg5[%c12_72, %c8_73, %c0_74] : memref<24x24x32xf32, #tpu.memory_space<vmem>>, vector<8x8x32xf32>
    %74 = vector.shape_cast %73 : vector<8x8x32xf32> to vector<64x32xf32>
    %75 = arith.truncf %74 : vector<64x32xf32> to vector<64x32xbf16>
    %c0_75 = arith.constant 0 : index
    %c544 = arith.constant 544 : index
    %76 = vector.load %arg6[%c0_75, %c544] : memref<128x896xbf16, #tpu.memory_space<vmem>>, vector<64x32xbf16>
    tpu.vector_store %arg6[%c0_75, %c544], %75 {strides = array<i32>} : memref<128x896xbf16, #tpu.memory_space<vmem>>, vector<64x32xbf16>,
    %c12_76 = arith.constant 12 : index
    %c12_77 = arith.constant 12 : index
    %c0_78 = arith.constant 0 : index
    %77 = vector.load %arg5[%c12_76, %c12_77, %c0_78] : memref<24x24x32xf32, #tpu.memory_space<vmem>>, vector<8x8x32xf32>
    %78 = vector.shape_cast %77 : vector<8x8x32xf32> to vector<64x32xf32>
    %79 = arith.truncf %78 : vector<64x32xf32> to vector<64x32xbf16>
    %c0_79 = arith.constant 0 : index
    %c576 = arith.constant 576 : index
    %80 = vector.load %arg6[%c0_79, %c576] : memref<128x896xbf16, #tpu.memory_space<vmem>>, vector<64x32xbf16>
    tpu.vector_store %arg6[%c0_79, %c576], %79 {strides = array<i32>} : memref<128x896xbf16, #tpu.memory_space<vmem>>, vector<64x32xbf16>,
    %c0_80 = arith.constant 0 : index
    %c0_81 = arith.constant 0 : index
    %c0_82 = arith.constant 0 : index
    %81 = vector.load %arg5[%c0_80, %c0_81, %c0_82] : memref<24x24x32xf32, #tpu.memory_space<vmem>>, vector<8x8x32xf32>
    %82 = vector.shape_cast %81 : vector<8x8x32xf32> to vector<64x32xf32>
    %83 = arith.truncf %82 : vector<64x32xf32> to vector<64x32xbf16>
    %c0_83 = arith.constant 0 : index
    %c608 = arith.constant 608 : index
    %84 = vector.load %arg6[%c0_83, %c608] : memref<128x896xbf16, #tpu.memory_space<vmem>>, vector<64x32xbf16>
    tpu.vector_store %arg6[%c0_83, %c608], %83 {strides = array<i32>} : memref<128x896xbf16, #tpu.memory_space<vmem>>, vector<64x32xbf16>,
    %c0_84 = arith.constant 0 : index
    %c8_85 = arith.constant 8 : index
    %c0_86 = arith.constant 0 : index
    %85 = vector.load %arg5[%c0_84, %c8_85, %c0_86] : memref<24x24x32xf32, #tpu.memory_space<vmem>>, vector<8x8x32xf32>
    %86 = vector.shape_cast %85 : vector<8x8x32xf32> to vector<64x32xf32>
    %87 = arith.truncf %86 : vector<64x32xf32> to vector<64x32xbf16>
    %c0_87 = arith.constant 0 : index
    %c640 = arith.constant 640 : index
    %88 = vector.load %arg6[%c0_87, %c640] : memref<128x896xbf16, #tpu.memory_space<vmem>>, vector<64x32xbf16>
    tpu.vector_store %arg6[%c0_87, %c640], %87 {strides = array<i32>} : memref<128x896xbf16, #tpu.memory_space<vmem>>, vector<64x32xbf16>,
    %c0_88 = arith.constant 0 : index
    %c16 = arith.constant 16 : index
    %c0_89 = arith.constant 0 : index
    %89 = vector.load %arg5[%c0_88, %c16, %c0_89] : memref<24x24x32xf32, #tpu.memory_space<vmem>>, vector<8x8x32xf32>
    %90 = vector.shape_cast %89 : vector<8x8x32xf32> to vector<64x32xf32>
    %91 = arith.truncf %90 : vector<64x32xf32> to vector<64x32xbf16>
    %c0_90 = arith.constant 0 : index
    %c672 = arith.constant 672 : index
    %92 = vector.load %arg6[%c0_90, %c672] : memref<128x896xbf16, #tpu.memory_space<vmem>>, vector<64x32xbf16>
    tpu.vector_store %arg6[%c0_90, %c672], %91 {strides = array<i32>} : memref<128x896xbf16, #tpu.memory_space<vmem>>, vector<64x32xbf16>,
    %c8_91 = arith.constant 8 : index
    %c0_92 = arith.constant 0 : index
    %c0_93 = arith.constant 0 : index
    %93 = vector.load %arg5[%c8_91, %c0_92, %c0_93] : memref<24x24x32xf32, #tpu.memory_space<vmem>>, vector<8x8x32xf32>
    %94 = vector.shape_cast %93 : vector<8x8x32xf32> to vector<64x32xf32>
    %95 = arith.truncf %94 : vector<64x32xf32> to vector<64x32xbf16>
    %c0_94 = arith.constant 0 : index
    %c704 = arith.constant 704 : index
    %96 = vector.load %arg6[%c0_94, %c704] : memref<128x896xbf16, #tpu.memory_space<vmem>>, vector<64x32xbf16>
    tpu.vector_store %arg6[%c0_94, %c704], %95 {strides = array<i32>} : memref<128x896xbf16, #tpu.memory_space<vmem>>, vector<64x32xbf16>,
    %c8_95 = arith.constant 8 : index
    %c8_96 = arith.constant 8 : index
    %c0_97 = arith.constant 0 : index
    %97 = vector.load %arg5[%c8_95, %c8_96, %c0_97] : memref<24x24x32xf32, #tpu.memory_space<vmem>>, vector<8x8x32xf32>
    %98 = vector.shape_cast %97 : vector<8x8x32xf32> to vector<64x32xf32>
    %99 = arith.truncf %98 : vector<64x32xf32> to vector<64x32xbf16>
    %c0_98 = arith.constant 0 : index
    %c736 = arith.constant 736 : index
    %100 = vector.load %arg6[%c0_98, %c736] : memref<128x896xbf16, #tpu.memory_space<vmem>>, vector<64x32xbf16>
    tpu.vector_store %arg6[%c0_98, %c736], %99 {strides = array<i32>} : memref<128x896xbf16, #tpu.memory_space<vmem>>, vector<64x32xbf16>,
    %c8_99 = arith.constant 8 : index
    %c16_100 = arith.constant 16 : index
    %c0_101 = arith.constant 0 : index
    %101 = vector.load %arg5[%c8_99, %c16_100, %c0_101] : memref<24x24x32xf32, #tpu.memory_space<vmem>>, vector<8x8x32xf32>
    %102 = vector.shape_cast %101 : vector<8x8x32xf32> to vector<64x32xf32>
    %103 = arith.truncf %102 : vector<64x32xf32> to vector<64x32xbf16>
    %c0_102 = arith.constant 0 : index
    %c768 = arith.constant 768 : index
    %104 = vector.load %arg6[%c0_102, %c768] : memref<128x896xbf16, #tpu.memory_space<vmem>>, vector<64x32xbf16>
    tpu.vector_store %arg6[%c0_102, %c768], %103 {strides = array<i32>} : memref<128x896xbf16, #tpu.memory_space<vmem>>, vector<64x32xbf16>,
    %c16_103 = arith.constant 16 : index
    %c0_104 = arith.constant 0 : index
    %c0_105 = arith.constant 0 : index
    %105 = vector.load %arg5[%c16_103, %c0_104, %c0_105] : memref<24x24x32xf32, #tpu.memory_space<vmem>>, vector<8x8x32xf32>
    %106 = vector.shape_cast %105 : vector<8x8x32xf32> to vector<64x32xf32>
    %107 = arith.truncf %106 : vector<64x32xf32> to vector<64x32xbf16>
    %c0_106 = arith.constant 0 : index
    %c800 = arith.constant 800 : index
    %108 = vector.load %arg6[%c0_106, %c800] : memref<128x896xbf16, #tpu.memory_space<vmem>>, vector<64x32xbf16>
    tpu.vector_store %arg6[%c0_106, %c800], %107 {strides = array<i32>} : memref<128x896xbf16, #tpu.memory_space<vmem>>, vector<64x32xbf16>,
    %c16_107 = arith.constant 16 : index
    %c8_108 = arith.constant 8 : index
    %c0_109 = arith.constant 0 : index
    %109 = vector.load %arg5[%c16_107, %c8_108, %c0_109] : memref<24x24x32xf32, #tpu.memory_space<vmem>>, vector<8x8x32xf32>
    %110 = vector.shape_cast %109 : vector<8x8x32xf32> to vector<64x32xf32>
    %111 = arith.truncf %110 : vector<64x32xf32> to vector<64x32xbf16>
    %c0_110 = arith.constant 0 : index
    %c832 = arith.constant 832 : index
    %112 = vector.load %arg6[%c0_110, %c832] : memref<128x896xbf16, #tpu.memory_space<vmem>>, vector<64x32xbf16>
    tpu.vector_store %arg6[%c0_110, %c832], %111 {strides = array<i32>} : memref<128x896xbf16, #tpu.memory_space<vmem>>, vector<64x32xbf16>,
    %c16_111 = arith.constant 16 : index
    %c16_112 = arith.constant 16 : index
    %c0_113 = arith.constant 0 : index
    %113 = vector.load %arg5[%c16_111, %c16_112, %c0_113] : memref<24x24x32xf32, #tpu.memory_space<vmem>>, vector<8x8x32xf32>
    %114 = vector.shape_cast %113 : vector<8x8x32xf32> to vector<64x32xf32>
    %115 = arith.truncf %114 : vector<64x32xf32> to vector<64x32xbf16>
    %c0_114 = arith.constant 0 : index
    %c864 = arith.constant 864 : index
    %116 = vector.load %arg6[%c0_114, %c864] : memref<128x896xbf16, #tpu.memory_space<vmem>>, vector<64x32xbf16>
    tpu.vector_store %arg6[%c0_114, %c864], %115 {strides = array<i32>} : memref<128x896xbf16, #tpu.memory_space<vmem>>, vector<64x32xbf16>,
    %c8_115 = arith.constant 8 : index
    %c0_116 = arith.constant 0 : index
    %c0_117 = arith.constant 0 : index
    %117 = vector.load %arg1[%c8_115, %c0_116, %c0_117] : memref<16x8x32xbf16, #tpu.memory_space<vmem>>, vector<8x8x32xbf16>
    %118 = arith.extf %117 : vector<8x8x32xbf16> to vector<8x8x32xf32>
    %c8_118 = arith.constant 8 : index
    %c8_119 = arith.constant 8 : index
    %c0_120 = arith.constant 0 : index
    %119 = vector.load %arg5[%c8_118, %c8_119, %c0_120] : memref<24x24x32xf32, #tpu.memory_space<vmem>>, vector<8x8x32xf32>
    tpu.vector_store %arg5[%c8_118, %c8_119, %c0_120], %118 {strides = array<i32>} : memref<24x24x32xf32, #tpu.memory_space<vmem>>, vector<8x8x32xf32>,
    %c7_121 = arith.constant 7 : index
    %c7_122 = arith.constant 7 : index
    %c0_123 = arith.constant 0 : index
    %120 = vector.load %arg5[%c7_121, %c7_122, %c0_123] : memref<24x24x32xf32, #tpu.memory_space<vmem>>, vector<8x8x32xf32>
    %121 = vector.shape_cast %120 : vector<8x8x32xf32> to vector<64x32xf32>
    %122 = arith.truncf %121 : vector<64x32xf32> to vector<64x32xbf16>
    %c64_124 = arith.constant 64 : index
    %c0_125 = arith.constant 0 : index
    %123 = vector.load %arg6[%c64_124, %c0_125] : memref<128x896xbf16, #tpu.memory_space<vmem>>, vector<64x32xbf16>
    tpu.vector_store %arg6[%c64_124, %c0_125], %122 {strides = array<i32>} : memref<128x896xbf16, #tpu.memory_space<vmem>>, vector<64x32xbf16>,
    %c7_126 = arith.constant 7 : index
    %c8_127 = arith.constant 8 : index
    %c0_128 = arith.constant 0 : index
    %124 = vector.load %arg5[%c7_126, %c8_127, %c0_128] : memref<24x24x32xf32, #tpu.memory_space<vmem>>, vector<8x8x32xf32>
    %125 = vector.shape_cast %124 : vector<8x8x32xf32> to vector<64x32xf32>
    %126 = arith.truncf %125 : vector<64x32xf32> to vector<64x32xbf16>
    %c64_129 = arith.constant 64 : index
    %c32_130 = arith.constant 32 : index
    %127 = vector.load %arg6[%c64_129, %c32_130] : memref<128x896xbf16, #tpu.memory_space<vmem>>, vector<64x32xbf16>
    tpu.vector_store %arg6[%c64_129, %c32_130], %126 {strides = array<i32>} : memref<128x896xbf16, #tpu.memory_space<vmem>>, vector<64x32xbf16>,
    %c7_131 = arith.constant 7 : index
    %c9_132 = arith.constant 9 : index
    %c0_133 = arith.constant 0 : index
    %128 = vector.load %arg5[%c7_131, %c9_132, %c0_133] : memref<24x24x32xf32, #tpu.memory_space<vmem>>, vector<8x8x32xf32>
    %129 = vector.shape_cast %128 : vector<8x8x32xf32> to vector<64x32xf32>
    %130 = arith.truncf %129 : vector<64x32xf32> to vector<64x32xbf16>
    %c64_134 = arith.constant 64 : index
    %c64_135 = arith.constant 64 : index
    %131 = vector.load %arg6[%c64_134, %c64_135] : memref<128x896xbf16, #tpu.memory_space<vmem>>, vector<64x32xbf16>
    tpu.vector_store %arg6[%c64_134, %c64_135], %130 {strides = array<i32>} : memref<128x896xbf16, #tpu.memory_space<vmem>>, vector<64x32xbf16>,
    %c8_136 = arith.constant 8 : index
    %c7_137 = arith.constant 7 : index
    %c0_138 = arith.constant 0 : index
    %132 = vector.load %arg5[%c8_136, %c7_137, %c0_138] : memref<24x24x32xf32, #tpu.memory_space<vmem>>, vector<8x8x32xf32>
    %133 = vector.shape_cast %132 : vector<8x8x32xf32> to vector<64x32xf32>
    %134 = arith.truncf %133 : vector<64x32xf32> to vector<64x32xbf16>
    %c64_139 = arith.constant 64 : index
    %c96_140 = arith.constant 96 : index
    %135 = vector.load %arg6[%c64_139, %c96_140] : memref<128x896xbf16, #tpu.memory_space<vmem>>, vector<64x32xbf16>
    tpu.vector_store %arg6[%c64_139, %c96_140], %134 {strides = array<i32>} : memref<128x896xbf16, #tpu.memory_space<vmem>>, vector<64x32xbf16>,
    %c8_141 = arith.constant 8 : index
    %c8_142 = arith.constant 8 : index
    %c0_143 = arith.constant 0 : index
    %136 = vector.load %arg5[%c8_141, %c8_142, %c0_143] : memref<24x24x32xf32, #tpu.memory_space<vmem>>, vector<8x8x32xf32>
    %137 = vector.shape_cast %136 : vector<8x8x32xf32> to vector<64x32xf32>
    %138 = arith.truncf %137 : vector<64x32xf32> to vector<64x32xbf16>
    %c64_144 = arith.constant 64 : index
    %c128_145 = arith.constant 128 : index
    %139 = vector.load %arg6[%c64_144, %c128_145] : memref<128x896xbf16, #tpu.memory_space<vmem>>, vector<64x32xbf16>
    tpu.vector_store %arg6[%c64_144, %c128_145], %138 {strides = array<i32>} : memref<128x896xbf16, #tpu.memory_space<vmem>>, vector<64x32xbf16>,
    %c8_146 = arith.constant 8 : index
    %c9_147 = arith.constant 9 : index
    %c0_148 = arith.constant 0 : index
    %140 = vector.load %arg5[%c8_146, %c9_147, %c0_148] : memref<24x24x32xf32, #tpu.memory_space<vmem>>, vector<8x8x32xf32>
    %141 = vector.shape_cast %140 : vector<8x8x32xf32> to vector<64x32xf32>
    %142 = arith.truncf %141 : vector<64x32xf32> to vector<64x32xbf16>
    %c64_149 = arith.constant 64 : index
    %c160_150 = arith.constant 160 : index
    %143 = vector.load %arg6[%c64_149, %c160_150] : memref<128x896xbf16, #tpu.memory_space<vmem>>, vector<64x32xbf16>
    tpu.vector_store %arg6[%c64_149, %c160_150], %142 {strides = array<i32>} : memref<128x896xbf16, #tpu.memory_space<vmem>>, vector<64x32xbf16>,
    %c9_151 = arith.constant 9 : index
    %c7_152 = arith.constant 7 : index
    %c0_153 = arith.constant 0 : index
    %144 = vector.load %arg5[%c9_151, %c7_152, %c0_153] : memref<24x24x32xf32, #tpu.memory_space<vmem>>, vector<8x8x32xf32>
    %145 = vector.shape_cast %144 : vector<8x8x32xf32> to vector<64x32xf32>
    %146 = arith.truncf %145 : vector<64x32xf32> to vector<64x32xbf16>
    %c64_154 = arith.constant 64 : index
    %c192_155 = arith.constant 192 : index
    %147 = vector.load %arg6[%c64_154, %c192_155] : memref<128x896xbf16, #tpu.memory_space<vmem>>, vector<64x32xbf16>
    tpu.vector_store %arg6[%c64_154, %c192_155], %146 {strides = array<i32>} : memref<128x896xbf16, #tpu.memory_space<vmem>>, vector<64x32xbf16>,
    %c9_156 = arith.constant 9 : index
    %c8_157 = arith.constant 8 : index
    %c0_158 = arith.constant 0 : index
    %148 = vector.load %arg5[%c9_156, %c8_157, %c0_158] : memref<24x24x32xf32, #tpu.memory_space<vmem>>, vector<8x8x32xf32>
    %149 = vector.shape_cast %148 : vector<8x8x32xf32> to vector<64x32xf32>
    %150 = arith.truncf %149 : vector<64x32xf32> to vector<64x32xbf16>
    %c64_159 = arith.constant 64 : index
    %c224_160 = arith.constant 224 : index
    %151 = vector.load %arg6[%c64_159, %c224_160] : memref<128x896xbf16, #tpu.memory_space<vmem>>, vector<64x32xbf16>
    tpu.vector_store %arg6[%c64_159, %c224_160], %150 {strides = array<i32>} : memref<128x896xbf16, #tpu.memory_space<vmem>>, vector<64x32xbf16>,
    %c9_161 = arith.constant 9 : index
    %c9_162 = arith.constant 9 : index
    %c0_163 = arith.constant 0 : index
    %152 = vector.load %arg5[%c9_161, %c9_162, %c0_163] : memref<24x24x32xf32, #tpu.memory_space<vmem>>, vector<8x8x32xf32>
    %153 = vector.shape_cast %152 : vector<8x8x32xf32> to vector<64x32xf32>
    %154 = arith.truncf %153 : vector<64x32xf32> to vector<64x32xbf16>
    %c64_164 = arith.constant 64 : index
    %c256_165 = arith.constant 256 : index
    %155 = vector.load %arg6[%c64_164, %c256_165] : memref<128x896xbf16, #tpu.memory_space<vmem>>, vector<64x32xbf16>
    tpu.vector_store %arg6[%c64_164, %c256_165], %154 {strides = array<i32>} : memref<128x896xbf16, #tpu.memory_space<vmem>>, vector<64x32xbf16>,
    %c8_166 = arith.constant 8 : index
    %c8_167 = arith.constant 8 : index
    %c0_168 = arith.constant 0 : index
    %156 = vector.load %arg5[%c8_166, %c8_167, %c0_168] : memref<24x24x32xf32, #tpu.memory_space<vmem>>, vector<8x8x32xf32>
    %157 = vector.shape_cast %156 : vector<8x8x32xf32> to vector<64x32xf32>
    %158 = arith.truncf %157 : vector<64x32xf32> to vector<64x32xbf16>
    %c64_169 = arith.constant 64 : index
    %c288_170 = arith.constant 288 : index
    %159 = vector.load %arg6[%c64_169, %c288_170] : memref<128x896xbf16, #tpu.memory_space<vmem>>, vector<64x32xbf16>
    tpu.vector_store %arg6[%c64_169, %c288_170], %158 {strides = array<i32>} : memref<128x896xbf16, #tpu.memory_space<vmem>>, vector<64x32xbf16>,
    %c4_171 = arith.constant 4 : index
    %c4_172 = arith.constant 4 : index
    %c0_173 = arith.constant 0 : index
    %160 = vector.load %arg5[%c4_171, %c4_172, %c0_173] : memref<24x24x32xf32, #tpu.memory_space<vmem>>, vector<8x8x32xf32>
    %161 = vector.shape_cast %160 : vector<8x8x32xf32> to vector<64x32xf32>
    %162 = arith.truncf %161 : vector<64x32xf32> to vector<64x32xbf16>
    %c64_174 = arith.constant 64 : index
    %c320_175 = arith.constant 320 : index
    %163 = vector.load %arg6[%c64_174, %c320_175] : memref<128x896xbf16, #tpu.memory_space<vmem>>, vector<64x32xbf16>
    tpu.vector_store %arg6[%c64_174, %c320_175], %162 {strides = array<i32>} : memref<128x896xbf16, #tpu.memory_space<vmem>>, vector<64x32xbf16>,
    %c4_176 = arith.constant 4 : index
    %c8_177 = arith.constant 8 : index
    %c0_178 = arith.constant 0 : index
    %164 = vector.load %arg5[%c4_176, %c8_177, %c0_178] : memref<24x24x32xf32, #tpu.memory_space<vmem>>, vector<8x8x32xf32>
    %165 = vector.shape_cast %164 : vector<8x8x32xf32> to vector<64x32xf32>
    %166 = arith.truncf %165 : vector<64x32xf32> to vector<64x32xbf16>
    %c64_179 = arith.constant 64 : index
    %c352_180 = arith.constant 352 : index
    %167 = vector.load %arg6[%c64_179, %c352_180] : memref<128x896xbf16, #tpu.memory_space<vmem>>, vector<64x32xbf16>
    tpu.vector_store %arg6[%c64_179, %c352_180], %166 {strides = array<i32>} : memref<128x896xbf16, #tpu.memory_space<vmem>>, vector<64x32xbf16>,
    %c4_181 = arith.constant 4 : index
    %c12_182 = arith.constant 12 : index
    %c0_183 = arith.constant 0 : index
    %168 = vector.load %arg5[%c4_181, %c12_182, %c0_183] : memref<24x24x32xf32, #tpu.memory_space<vmem>>, vector<8x8x32xf32>
    %169 = vector.shape_cast %168 : vector<8x8x32xf32> to vector<64x32xf32>
    %170 = arith.truncf %169 : vector<64x32xf32> to vector<64x32xbf16>
    %c64_184 = arith.constant 64 : index
    %c384_185 = arith.constant 384 : index
    %171 = vector.load %arg6[%c64_184, %c384_185] : memref<128x896xbf16, #tpu.memory_space<vmem>>, vector<64x32xbf16>
    tpu.vector_store %arg6[%c64_184, %c384_185], %170 {strides = array<i32>} : memref<128x896xbf16, #tpu.memory_space<vmem>>, vector<64x32xbf16>,
    %c8_186 = arith.constant 8 : index
    %c4_187 = arith.constant 4 : index
    %c0_188 = arith.constant 0 : index
    %172 = vector.load %arg5[%c8_186, %c4_187, %c0_188] : memref<24x24x32xf32, #tpu.memory_space<vmem>>, vector<8x8x32xf32>
    %173 = vector.shape_cast %172 : vector<8x8x32xf32> to vector<64x32xf32>
    %174 = arith.truncf %173 : vector<64x32xf32> to vector<64x32xbf16>
    %c64_189 = arith.constant 64 : index
    %c416_190 = arith.constant 416 : index
    %175 = vector.load %arg6[%c64_189, %c416_190] : memref<128x896xbf16, #tpu.memory_space<vmem>>, vector<64x32xbf16>
    tpu.vector_store %arg6[%c64_189, %c416_190], %174 {strides = array<i32>} : memref<128x896xbf16, #tpu.memory_space<vmem>>, vector<64x32xbf16>,
    %c8_191 = arith.constant 8 : index
    %c8_192 = arith.constant 8 : index
    %c0_193 = arith.constant 0 : index
    %176 = vector.load %arg5[%c8_191, %c8_192, %c0_193] : memref<24x24x32xf32, #tpu.memory_space<vmem>>, vector<8x8x32xf32>
    %177 = vector.shape_cast %176 : vector<8x8x32xf32> to vector<64x32xf32>
    %178 = arith.truncf %177 : vector<64x32xf32> to vector<64x32xbf16>
    %c64_194 = arith.constant 64 : index
    %c448_195 = arith.constant 448 : index
    %179 = vector.load %arg6[%c64_194, %c448_195] : memref<128x896xbf16, #tpu.memory_space<vmem>>, vector<64x32xbf16>
    tpu.vector_store %arg6[%c64_194, %c448_195], %178 {strides = array<i32>} : memref<128x896xbf16, #tpu.memory_space<vmem>>, vector<64x32xbf16>,
    %c8_196 = arith.constant 8 : index
    %c12_197 = arith.constant 12 : index
    %c0_198 = arith.constant 0 : index
    %180 = vector.load %arg5[%c8_196, %c12_197, %c0_198] : memref<24x24x32xf32, #tpu.memory_space<vmem>>, vector<8x8x32xf32>
    %181 = vector.shape_cast %180 : vector<8x8x32xf32> to vector<64x32xf32>
    %182 = arith.truncf %181 : vector<64x32xf32> to vector<64x32xbf16>
    %c64_199 = arith.constant 64 : index
    %c480_200 = arith.constant 480 : index
    %183 = vector.load %arg6[%c64_199, %c480_200] : memref<128x896xbf16, #tpu.memory_space<vmem>>, vector<64x32xbf16>
    tpu.vector_store %arg6[%c64_199, %c480_200], %182 {strides = array<i32>} : memref<128x896xbf16, #tpu.memory_space<vmem>>, vector<64x32xbf16>,
    %c12_201 = arith.constant 12 : index
    %c4_202 = arith.constant 4 : index
    %c0_203 = arith.constant 0 : index
    %184 = vector.load %arg5[%c12_201, %c4_202, %c0_203] : memref<24x24x32xf32, #tpu.memory_space<vmem>>, vector<8x8x32xf32>
    %185 = vector.shape_cast %184 : vector<8x8x32xf32> to vector<64x32xf32>
    %186 = arith.truncf %185 : vector<64x32xf32> to vector<64x32xbf16>
    %c64_204 = arith.constant 64 : index
    %c512_205 = arith.constant 512 : index
    %187 = vector.load %arg6[%c64_204, %c512_205] : memref<128x896xbf16, #tpu.memory_space<vmem>>, vector<64x32xbf16>
    tpu.vector_store %arg6[%c64_204, %c512_205], %186 {strides = array<i32>} : memref<128x896xbf16, #tpu.memory_space<vmem>>, vector<64x32xbf16>,
    %c12_206 = arith.constant 12 : index
    %c8_207 = arith.constant 8 : index
    %c0_208 = arith.constant 0 : index
    %188 = vector.load %arg5[%c12_206, %c8_207, %c0_208] : memref<24x24x32xf32, #tpu.memory_space<vmem>>, vector<8x8x32xf32>
    %189 = vector.shape_cast %188 : vector<8x8x32xf32> to vector<64x32xf32>
    %190 = arith.truncf %189 : vector<64x32xf32> to vector<64x32xbf16>
    %c64_209 = arith.constant 64 : index
    %c544_210 = arith.constant 544 : index
    %191 = vector.load %arg6[%c64_209, %c544_210] : memref<128x896xbf16, #tpu.memory_space<vmem>>, vector<64x32xbf16>
    tpu.vector_store %arg6[%c64_209, %c544_210], %190 {strides = array<i32>} : memref<128x896xbf16, #tpu.memory_space<vmem>>, vector<64x32xbf16>,
    %c12_211 = arith.constant 12 : index
    %c12_212 = arith.constant 12 : index
    %c0_213 = arith.constant 0 : index
    %192 = vector.load %arg5[%c12_211, %c12_212, %c0_213] : memref<24x24x32xf32, #tpu.memory_space<vmem>>, vector<8x8x32xf32>
    %193 = vector.shape_cast %192 : vector<8x8x32xf32> to vector<64x32xf32>
    %194 = arith.truncf %193 : vector<64x32xf32> to vector<64x32xbf16>
    %c64_214 = arith.constant 64 : index
    %c576_215 = arith.constant 576 : index
    %195 = vector.load %arg6[%c64_214, %c576_215] : memref<128x896xbf16, #tpu.memory_space<vmem>>, vector<64x32xbf16>
    tpu.vector_store %arg6[%c64_214, %c576_215], %194 {strides = array<i32>} : memref<128x896xbf16, #tpu.memory_space<vmem>>, vector<64x32xbf16>,
    %c0_216 = arith.constant 0 : index
    %c0_217 = arith.constant 0 : index
    %c0_218 = arith.constant 0 : index
    %196 = vector.load %arg5[%c0_216, %c0_217, %c0_218] : memref<24x24x32xf32, #tpu.memory_space<vmem>>, vector<8x8x32xf32>
    %197 = vector.shape_cast %196 : vector<8x8x32xf32> to vector<64x32xf32>
    %198 = arith.truncf %197 : vector<64x32xf32> to vector<64x32xbf16>
    %c64_219 = arith.constant 64 : index
    %c608_220 = arith.constant 608 : index
    %199 = vector.load %arg6[%c64_219, %c608_220] : memref<128x896xbf16, #tpu.memory_space<vmem>>, vector<64x32xbf16>
    tpu.vector_store %arg6[%c64_219, %c608_220], %198 {strides = array<i32>} : memref<128x896xbf16, #tpu.memory_space<vmem>>, vector<64x32xbf16>,
    %c0_221 = arith.constant 0 : index
    %c8_222 = arith.constant 8 : index
    %c0_223 = arith.constant 0 : index
    %200 = vector.load %arg5[%c0_221, %c8_222, %c0_223] : memref<24x24x32xf32, #tpu.memory_space<vmem>>, vector<8x8x32xf32>
    %201 = vector.shape_cast %200 : vector<8x8x32xf32> to vector<64x32xf32>
    %202 = arith.truncf %201 : vector<64x32xf32> to vector<64x32xbf16>
    %c64_224 = arith.constant 64 : index
    %c640_225 = arith.constant 640 : index
    %203 = vector.load %arg6[%c64_224, %c640_225] : memref<128x896xbf16, #tpu.memory_space<vmem>>, vector<64x32xbf16>
    tpu.vector_store %arg6[%c64_224, %c640_225], %202 {strides = array<i32>} : memref<128x896xbf16, #tpu.memory_space<vmem>>, vector<64x32xbf16>,
    %c0_226 = arith.constant 0 : index
    %c16_227 = arith.constant 16 : index
    %c0_228 = arith.constant 0 : index
    %204 = vector.load %arg5[%c0_226, %c16_227, %c0_228] : memref<24x24x32xf32, #tpu.memory_space<vmem>>, vector<8x8x32xf32>
    %205 = vector.shape_cast %204 : vector<8x8x32xf32> to vector<64x32xf32>
    %206 = arith.truncf %205 : vector<64x32xf32> to vector<64x32xbf16>
    %c64_229 = arith.constant 64 : index
    %c672_230 = arith.constant 672 : index
    %207 = vector.load %arg6[%c64_229, %c672_230] : memref<128x896xbf16, #tpu.memory_space<vmem>>, vector<64x32xbf16>
    tpu.vector_store %arg6[%c64_229, %c672_230], %206 {strides = array<i32>} : memref<128x896xbf16, #tpu.memory_space<vmem>>, vector<64x32xbf16>,
    %c8_231 = arith.constant 8 : index
    %c0_232 = arith.constant 0 : index
    %c0_233 = arith.constant 0 : index
    %208 = vector.load %arg5[%c8_231, %c0_232, %c0_233] : memref<24x24x32xf32, #tpu.memory_space<vmem>>, vector<8x8x32xf32>
    %209 = vector.shape_cast %208 : vector<8x8x32xf32> to vector<64x32xf32>
    %210 = arith.truncf %209 : vector<64x32xf32> to vector<64x32xbf16>
    %c64_234 = arith.constant 64 : index
    %c704_235 = arith.constant 704 : index
    %211 = vector.load %arg6[%c64_234, %c704_235] : memref<128x896xbf16, #tpu.memory_space<vmem>>, vector<64x32xbf16>
    tpu.vector_store %arg6[%c64_234, %c704_235], %210 {strides = array<i32>} : memref<128x896xbf16, #tpu.memory_space<vmem>>, vector<64x32xbf16>,
    %c8_236 = arith.constant 8 : index
    %c8_237 = arith.constant 8 : index
    %c0_238 = arith.constant 0 : index
    %212 = vector.load %arg5[%c8_236, %c8_237, %c0_238] : memref<24x24x32xf32, #tpu.memory_space<vmem>>, vector<8x8x32xf32>
    %213 = vector.shape_cast %212 : vector<8x8x32xf32> to vector<64x32xf32>
    %214 = arith.truncf %213 : vector<64x32xf32> to vector<64x32xbf16>
    %c64_239 = arith.constant 64 : index
    %c736_240 = arith.constant 736 : index
    %215 = vector.load %arg6[%c64_239, %c736_240] : memref<128x896xbf16, #tpu.memory_space<vmem>>, vector<64x32xbf16>
    tpu.vector_store %arg6[%c64_239, %c736_240], %214 {strides = array<i32>} : memref<128x896xbf16, #tpu.memory_space<vmem>>, vector<64x32xbf16>,
    %c8_241 = arith.constant 8 : index
    %c16_242 = arith.constant 16 : index
    %c0_243 = arith.constant 0 : index
    %216 = vector.load %arg5[%c8_241, %c16_242, %c0_243] : memref<24x24x32xf32, #tpu.memory_space<vmem>>, vector<8x8x32xf32>
    %217 = vector.shape_cast %216 : vector<8x8x32xf32> to vector<64x32xf32>
    %218 = arith.truncf %217 : vector<64x32xf32> to vector<64x32xbf16>
    %c64_244 = arith.constant 64 : index
    %c768_245 = arith.constant 768 : index
    %219 = vector.load %arg6[%c64_244, %c768_245] : memref<128x896xbf16, #tpu.memory_space<vmem>>, vector<64x32xbf16>
    tpu.vector_store %arg6[%c64_244, %c768_245], %218 {strides = array<i32>} : memref<128x896xbf16, #tpu.memory_space<vmem>>, vector<64x32xbf16>,
    %c16_246 = arith.constant 16 : index
    %c0_247 = arith.constant 0 : index
    %c0_248 = arith.constant 0 : index
    %220 = vector.load %arg5[%c16_246, %c0_247, %c0_248] : memref<24x24x32xf32, #tpu.memory_space<vmem>>, vector<8x8x32xf32>
    %221 = vector.shape_cast %220 : vector<8x8x32xf32> to vector<64x32xf32>
    %222 = arith.truncf %221 : vector<64x32xf32> to vector<64x32xbf16>
    %c64_249 = arith.constant 64 : index
    %c800_250 = arith.constant 800 : index
    %223 = vector.load %arg6[%c64_249, %c800_250] : memref<128x896xbf16, #tpu.memory_space<vmem>>, vector<64x32xbf16>
    tpu.vector_store %arg6[%c64_249, %c800_250], %222 {strides = array<i32>} : memref<128x896xbf16, #tpu.memory_space<vmem>>, vector<64x32xbf16>,
    %c16_251 = arith.constant 16 : index
    %c8_252 = arith.constant 8 : index
    %c0_253 = arith.constant 0 : index
    %224 = vector.load %arg5[%c16_251, %c8_252, %c0_253] : memref<24x24x32xf32, #tpu.memory_space<vmem>>, vector<8x8x32xf32>
    %225 = vector.shape_cast %224 : vector<8x8x32xf32> to vector<64x32xf32>
    %226 = arith.truncf %225 : vector<64x32xf32> to vector<64x32xbf16>
    %c64_254 = arith.constant 64 : index
    %c832_255 = arith.constant 832 : index
    %227 = vector.load %arg6[%c64_254, %c832_255] : memref<128x896xbf16, #tpu.memory_space<vmem>>, vector<64x32xbf16>
    tpu.vector_store %arg6[%c64_254, %c832_255], %226 {strides = array<i32>} : memref<128x896xbf16, #tpu.memory_space<vmem>>, vector<64x32xbf16>,
    %c16_256 = arith.constant 16 : index
    %c16_257 = arith.constant 16 : index
    %c0_258 = arith.constant 0 : index
    %228 = vector.load %arg5[%c16_256, %c16_257, %c0_258] : memref<24x24x32xf32, #tpu.memory_space<vmem>>, vector<8x8x32xf32>
    %229 = vector.shape_cast %228 : vector<8x8x32xf32> to vector<64x32xf32>
    %230 = arith.truncf %229 : vector<64x32xf32> to vector<64x32xbf16>
    %c64_259 = arith.constant 64 : index
    %c864_260 = arith.constant 864 : index
    %231 = vector.load %arg6[%c64_259, %c864_260] : memref<128x896xbf16, #tpu.memory_space<vmem>>, vector<64x32xbf16>
    tpu.vector_store %arg6[%c64_259, %c864_260], %230 {strides = array<i32>} : memref<128x896xbf16, #tpu.memory_space<vmem>>, vector<64x32xbf16>,
    %c0_261 = arith.constant 0 : index
    %c0_262 = arith.constant 0 : index
    %232 = vector.load %arg6[%c0_261, %c0_262] : memref<128x896xbf16, #tpu.memory_space<vmem>>, vector<128x896xbf16>
    %c0_263 = arith.constant 0 : index
    %c0_264 = arith.constant 0 : index
    %233 = vector.load %arg2[%c0_263, %c0_264] : memref<896x128xbf16, #tpu.memory_space<vmem>>, vector<896x128xbf16>
    %cst_265 = arith.constant dense<0.000000e+00> : vector<128x128xf32>
    %234 = tpu.matmul %232, %233, %cst_265 {dimension_numbers = #tpu.dot_dimension_numbers<[1], [0], [0], [1], [0, 0, 1, 1], [], []>} : vector<128x896xbf16>, vector<896x128xbf16>, vector<128x128xf32> -> vector<128x128xf32>
    %c0_266 = arith.constant 0 : index
    %c0_267 = arith.constant 0 : index
    %235 = vector.load %arg3[%c0_266, %c0_267] : memref<1x128xf32, #tpu.memory_space<vmem>>, vector<1x128xf32>
    %236 = vector.broadcast %235 : vector<1x128xf32> to vector<128x128xf32>
    %237 = arith.addf %234, %236 : vector<128x128xf32>
    %c0_268 = arith.constant 0 : index
    %c0_269 = arith.constant 0 : index
    %238 = vector.load %arg4[%c0_268, %c0_269] : memref<128x128xf32, #tpu.memory_space<vmem>>, vector<128x128xf32>
    tpu.vector_store %arg4[%c0_268, %c0_269], %237 {strides = array<i32>} : memref<128x128xf32, #tpu.memory_space<vmem>>, vector<128x128xf32>,
    return
  }
  func.func @transform_0(%arg0: i32) -> (i32, i32, i32) {
    %c0_i32 = arith.constant 0 : i32
    %c0_i32_0 = arith.constant 0 : i32
    %c0_i32_1 = arith.constant 0 : i32
    return %arg0, %c0_i32, %c0_i32_0 : i32, i32, i32
  }
  func.func @transform_1(%arg0: i32) -> (i32, i32) {
    %c0_i32 = arith.constant 0 : i32
    %c0_i32_0 = arith.constant 0 : i32
    %c0_i32_1 = arith.constant 0 : i32
    return %c0_i32, %c0_i32_0 : i32, i32
  }
  func.func @transform_2(%arg0: i32) -> (i32, i32) {
    %c0_i32 = arith.constant 0 : i32
    %c0_i32_0 = arith.constant 0 : i32
    %c0_i32_1 = arith.constant 0 : i32
    return %c0_i32, %c0_i32_0 : i32, i32
  }
  func.func @transform_3(%arg0: i32) -> (i32, i32) {
    %c0_i32 = arith.constant 0 : i32
    %c0_i32_0 = arith.constant 0 : i32
    return %arg0, %c0_i32 : i32, i32
  }
}

</mosaic_0001>

<llo_original>
// kernel: tile.8
$region0: #{tile.8}
  #allocation0 [shape = 's32[1]{0}', space=sflag, size = 0x4, scoped, tag = 'scoped memory for tile.8']
  %s0 = inlined_call_operand.vmem [shape: f32[16], index: 0, kind: input, shape index: {}]
  %s1 = inlined_call_operand.vmem [shape: f32[8,16], index: 1, kind: output, shape index: {}]
  // Predicated region
  $region2: #{tile.8} parent=0 // pred_check
    _
  $region3: #{tile.8} parent=0 // pred_check_branch
    %3 = sbr.rel (0) target = $region5
  $region4: #{tile.8} parent=0 // pred_region
    _
  $region5: #{tile.8} parent=0 // pred_fallthru
    _
  %v4 = vld [vmem:[%s0] ss:$0 sm:$0xff]
  %5 = vst [vmem:[%s1] sm:$0xff] %v4

// kernel: tile.9
$region0: #{tile.9}
  %s0 = inlined_call_operand.vmem [shape: f32[8,16], index: 0, kind: input, shape index: {}]
  %s1 = inlined_call_operand.vmem [shape: f32[1,128], index: 1, kind: output, shape index: {}]
  $region1: #{tile.9} parent=0
    #allocation0 [shape = 'u8[4096]{0}', space=vmem, size = 0x1000, scoped, tag = 'scoped mem for output reshape']
    %v2 = vld [vmem:[%s0] sm:$0x1]
    %vm3 = vcmask 130048
    %4 = vst.msk [vmem:[#allocation0] sm:$0x1] %vm3, %v2
    %s5 = scalar_lea.vmem %s0, 7
    %v6 = vld [vmem:[%s5] sm:$0x1]
    %7 = vrot.lane.b32.xlu0 %v6, 112
    %v8 = vpop.permute.xlu0 %7
    %vm9 = vcmask 1048448
    %10 = vst.msk [vmem:[#allocation0] sm:$0x1] %vm9, %v8
    %s11 = scalar_lea.vmem %s0, 6
    %v12 = vld [vmem:[%s11] sm:$0x1]
    %13 = vrot.lane.b32.xlu0 %v12, 96
    %v14 = vpop.permute.xlu0 %13
    %vm15 = vcmask 917248
    %16 = vst.msk [vmem:[#allocation0] sm:$0x1] %vm15, %v14
    %s17 = scalar_lea.vmem %s0, 5
    %v18 = vld [vmem:[%s17] sm:$0x1]
    %19 = vrot.lane.b32.xlu0 %v18, 80
    %v20 = vpop.permute.xlu0 %19
    %vm21 = vcmask 786048
    %22 = vst.msk [vmem:[#allocation0] sm:$0x1] %vm21, %v20
    %s23 = scalar_lea.vmem %s0, 4
    %v24 = vld [vmem:[%s23] sm:$0x1]
    %25 = vrot.lane.b32.xlu0 %v24, 64
    %v26 = vpop.permute.xlu0 %25
    %vm27 = vcmask 654848
    %28 = vst.msk [vmem:[#allocation0] sm:$0x1] %vm27, %v26
    %s29 = scalar_lea.vmem %s0, 3
    %v30 = vld [vmem:[%s29] sm:$0x1]
    %31 = vrot.lane.b32.xlu0 %v30, 48
    %v32 = vpop.permute.xlu0 %31
    %vm33 = vcmask 523648
    %34 = vst.msk [vmem:[#allocation0] sm:$0x1] %vm33, %v32
    %s35 = scalar_lea.vmem %s0, 2
    %v36 = vld [vmem:[%s35] sm:$0x1]
    %37 = vrot.lane.b32.xlu0 %v36, 32
    %v38 = vpop.permute.xlu0 %37
    %vm39 = vcmask 392448
    %40 = vst.msk [vmem:[#allocation0] sm:$0x1] %vm39, %v38
    %s41 = scalar_lea.vmem %s0, 1
    %v42 = vld [vmem:[%s41] sm:$0x1]
    %43 = vrot.lane.b32.xlu0 %v42, 16
    %v44 = vpop.permute.xlu0 %43
    %vm45 = vcmask 261248
    %46 = vst.msk [vmem:[#allocation0] sm:$0x1] %vm45, %v44
    %s48 = sshll.u32 1, 1
    %s49 = ssub.s32 %s48, 1
    %v51 = vld [vmem:[#allocation0] sm:%s49]
    %s52 = sshll.u32 1, 1
    %s53 = ssub.s32 %s52, 1
    %54 = vst [vmem:[%s1] sm:%s53] %v51

// kernel: aspp_forward.1
$region0: #{aspp_forward.1}
  #allocation0 [shape = 'u32[]', space=smem, size = 0x4, offset = 0x4, fixed_abs, tag = 'smem constant byte address 0x4 - core index']
  #allocation1 [shape = 'u32[144,128]{1,0:T(1,128)}', space=vmem, size = 0x12000, scoped, tag = 'internal scratch']
  #allocation2 [shape = 'f32[24,24,32]{2,1,0:T(8,128)}', space=vmem, size = 0x48000, scoped, tag = 'scratch operand']
  #allocation3 [shape = 'bf16[128,896]{1,0:T(8,128)(2,1)}', space=vmem, size = 0x38000, scoped, tag = 'scratch operand']
  %s0 = inlined_call_operand.vmem [shape: bf16[16,8,32], index: 0, kind: input, shape index: {}]
  %s1 = inlined_call_operand.vmem [shape: bf16[896,128], index: 1, kind: input, shape index: {}]
  %s2 = inlined_call_operand.vmem [shape: f32[1,128], index: 2, kind: input, shape index: {}]
  %s3 = inlined_call_operand.vmem [shape: f32[128,128], index: 3, kind: output, shape index: {}]
  %s4 = sld [smem:[#allocation0]]
  $region22: #{aspp_forward.1} parent=0
    _
  %s6 = ssub.s32 1, %s4
  %s7 = scalar_select 0, %s6, %s4
  // Predicated region
  $region2: #{aspp_forward.1} parent=0 // pred_check
    _
  $region3: #{aspp_forward.1} parent=0 // pred_check_branch
    %9 = sbr.rel (0) target = $region5
  $region4: #{aspp_forward.1} parent=0 // pred_region
    _
  $region5: #{aspp_forward.1} parent=0 // pred_fallthru
    _
  // Predicated region
  $region6: #{aspp_forward.1} parent=0 // pred_check
    _
  $region7: #{aspp_forward.1} parent=0 // pred_check_branch
    %11 = sbr.rel (0) target = $region9
  $region8: #{aspp_forward.1} parent=0 // pred_region
    _
  $region9: #{aspp_forward.1} parent=0 // pred_fallthru
    _
  // Predicated region
  $region10: #{aspp_forward.1} parent=0 // pred_check
    _
  $region11: #{aspp_forward.1} parent=0 // pred_check_branch
    %13 = sbr.rel (0) target = $region13
  $region12: #{aspp_forward.1} parent=0 // pred_region
    _
  $region13: #{aspp_forward.1} parent=0 // pred_fallthru
    _
  %vm15 = vcmask 261120
  %16 = vst.msk [vmem:[#allocation2] sm:$0xff] %vm15, 0.0
  %17 = vst.msk [vmem:[#allocation2 + $0x8] sm:$0xff] %vm15, 0.0
  %18 = vst.msk [vmem:[#allocation2 + $0x10] sm:$0xff] %vm15, 0.0
  %19 = vst.msk [vmem:[#allocation2 + $0x18] sm:$0xff] %vm15, 0.0
  %20 = vst.msk [vmem:[#allocation2 + $0x20] sm:$0xff] %vm15, 0.0
  %21 = vst.msk [vmem:[#allocation2 + $0x28] sm:$0xff] %vm15, 0.0
  %22 = vst.msk [vmem:[#allocation2 + $0x30] sm:$0xff] %vm15, 0.0
  %23 = vst.msk [vmem:[#allocation2 + $0x38] sm:$0xff] %vm15, 0.0
  %24 = vst.msk [vmem:[#allocation2 + $0x40] sm:$0xff] %vm15, 0.0
  %25 = vst.msk [vmem:[#allocation2 + $0x48] sm:$0xff] %vm15, 0.0
  %26 = vst.msk [vmem:[#allocation2 + $0x50] sm:$0xff] %vm15, 0.0
  %27 = vst.msk [vmem:[#allocation2 + $0x58] sm:$0xff] %vm15, 0.0
  %28 = vst.msk [vmem:[#allocation2 + $0x60] sm:$0xff] %vm15, 0.0
  %29 = vst.msk [vmem:[#allocation2 + $0x68] sm:$0xff] %vm15, 0.0
  %30 = vst.msk [vmem:[#allocation2 + $0x70] sm:$0xff] %vm15, 0.0
  %31 = vst.msk [vmem:[#allocation2 + $0x78] sm:$0xff] %vm15, 0.0
  %32 = vst.msk [vmem:[#allocation2 + $0x80] sm:$0xff] %vm15, 0.0
  %33 = vst.msk [vmem:[#allocation2 + $0x88] sm:$0xff] %vm15, 0.0
  %34 = vst.msk [vmem:[#allocation2 + $0x90] sm:$0xff] %vm15, 0.0
  %35 = vst.msk [vmem:[#allocation2 + $0x98] sm:$0xff] %vm15, 0.0
  %36 = vst.msk [vmem:[#allocation2 + $0xa0] sm:$0xff] %vm15, 0.0
  %37 = vst.msk [vmem:[#allocation2 + $0xa8] sm:$0xff] %vm15, 0.0
  %38 = vst.msk [vmem:[#allocation2 + $0xb0] sm:$0xff] %vm15, 0.0
  %39 = vst.msk [vmem:[#allocation2 + $0xb8] sm:$0xff] %vm15, 0.0
  %40 = vst.msk [vmem:[#allocation2 + $0xc0] sm:$0xff] %vm15, 0.0
  %41 = vst.msk [vmem:[#allocation2 + $0xc8] sm:$0xff] %vm15, 0.0
  %42 = vst.msk [vmem:[#allocation2 + $0xd0] sm:$0xff] %vm15, 0.0
  %43 = vst.msk [vmem:[#allocation2 + $0xd8] sm:$0xff] %vm15, 0.0
  %44 = vst.msk [vmem:[#allocation2 + $0xe0] sm:$0xff] %vm15, 0.0
  %45 = vst.msk [vmem:[#allocation2 + $0xe8] sm:$0xff] %vm15, 0.0
  %46 = vst.msk [vmem:[#allocation2 + $0xf0] sm:$0xff] %vm15, 0.0
  %47 = vst.msk [vmem:[#allocation2 + $0xf8] sm:$0xff] %vm15, 0.0
  %48 = vst.msk [vmem:[#allocation2 + $0x100] sm:$0xff] %vm15, 0.0
  %49 = vst.msk [vmem:[#allocation2 + $0x108] sm:$0xff] %vm15, 0.0
  %50 = vst.msk [vmem:[#allocation2 + $0x110] sm:$0xff] %vm15, 0.0
  %51 = vst.msk [vmem:[#allocation2 + $0x118] sm:$0xff] %vm15, 0.0
  %52 = vst.msk [vmem:[#allocation2 + $0x120] sm:$0xff] %vm15, 0.0
  %53 = vst.msk [vmem:[#allocation2 + $0x128] sm:$0xff] %vm15, 0.0
  %54 = vst.msk [vmem:[#allocation2 + $0x130] sm:$0xff] %vm15, 0.0
  %55 = vst.msk [vmem:[#allocation2 + $0x138] sm:$0xff] %vm15, 0.0
  %56 = vst.msk [vmem:[#allocation2 + $0x140] sm:$0xff] %vm15, 0.0
  %57 = vst.msk [vmem:[#allocation2 + $0x148] sm:$0xff] %vm15, 0.0
  %58 = vst.msk [vmem:[#allocation2 + $0x150] sm:$0xff] %vm15, 0.0
  %59 = vst.msk [vmem:[#allocation2 + $0x158] sm:$0xff] %vm15, 0.0
  %60 = vst.msk [vmem:[#allocation2 + $0x160] sm:$0xff] %vm15, 0.0
  %61 = vst.msk [vmem:[#allocation2 + $0x168] sm:$0xff] %vm15, 0.0
  %62 = vst.msk [vmem:[#allocation2 + $0x170] sm:$0xff] %vm15, 0.0
  %63 = vst.msk [vmem:[#allocation2 + $0x178] sm:$0xff] %vm15, 0.0
  %64 = vst.msk [vmem:[#allocation2 + $0x180] sm:$0xff] %vm15, 0.0
  %65 = vst.msk [vmem:[#allocation2 + $0x188] sm:$0xff] %vm15, 0.0
  %66 = vst.msk [vmem:[#allocation2 + $0x190] sm:$0xff] %vm15, 0.0
  %67 = vst.msk [vmem:[#allocation2 + $0x198] sm:$0xff] %vm15, 0.0
  %68 = vst.msk [vmem:[#allocation2 + $0x1a0] sm:$0xff] %vm15, 0.0
  %69 = vst.msk [vmem:[#allocation2 + $0x1a8] sm:$0xff] %vm15, 0.0
  %70 = vst.msk [vmem:[#allocation2 + $0x1b0] sm:$0xff] %vm15, 0.0
  %71 = vst.msk [vmem:[#allocation2 + $0x1b8] sm:$0xff] %vm15, 0.0
  %72 = vst.msk [vmem:[#allocation2 + $0x1c0] sm:$0xff] %vm15, 0.0
  %73 = vst.msk [vmem:[#allocation2 + $0x1c8] sm:$0xff] %vm15, 0.0
  %74 = vst.msk [vmem:[#allocation2 + $0x1d0] sm:$0xff] %vm15, 0.0
  %75 = vst.msk [vmem:[#allocation2 + $0x1d8] sm:$0xff] %vm15, 0.0
  %76 = vst.msk [vmem:[#allocation2 + $0x1e0] sm:$0xff] %vm15, 0.0
  %77 = vst.msk [vmem:[#allocation2 + $0x1e8] sm:$0xff] %vm15, 0.0
  %78 = vst.msk [vmem:[#allocation2 + $0x1f0] sm:$0xff] %vm15, 0.0
  %79 = vst.msk [vmem:[#allocation2 + $0x1f8] sm:$0xff] %vm15, 0.0
  %80 = vst.msk [vmem:[#allocation2 + $0x200] sm:$0xff] %vm15, 0.0
  %81 = vst.msk [vmem:[#allocation2 + $0x208] sm:$0xff] %vm15, 0.0
  %82 = vst.msk [vmem:[#allocation2 + $0x210] sm:$0xff] %vm15, 0.0
  %83 = vst.msk [vmem:[#allocation2 + $0x218] sm:$0xff] %vm15, 0.0
  %84 = vst.msk [vmem:[#allocation2 + $0x220] sm:$0xff] %vm15, 0.0
  %85 = vst.msk [vmem:[#allocation2 + $0x228] sm:$0xff] %vm15, 0.0
  %86 = vst.msk [vmem:[#allocation2 + $0x230] sm:$0xff] %vm15, 0.0
  %87 = vst.msk [vmem:[#allocation2 + $0x238] sm:$0xff] %vm15, 0.0
  %v88 = vld [vmem:[%s0] sm:$0xf]
  %v89 = vld [vmem:[%s0 + $0x4] sm:$0xf]
  %v90 = vld [vmem:[%s0 + $0x8] sm:$0xf]
  %v91 = vld [vmem:[%s0 + $0xc] sm:$0xf]
  %v92 = vld [vmem:[%s0 + $0x10] sm:$0xf]
  %v93 = vld [vmem:[%s0 + $0x14] sm:$0xf]
  %v94 = vld [vmem:[%s0 + $0x18] sm:$0xf]
  %v95 = vld [vmem:[%s0 + $0x1c] sm:$0xf]
  %v96 = vunpack.c.l.bf16 %v88
  %v97 = vunpack.c.l.bf16 %v89
  %v98 = vunpack.c.l.bf16 %v90
  %v99 = vunpack.c.l.bf16 %v91
  %v100 = vunpack.c.l.bf16 %v92
  %v101 = vunpack.c.l.bf16 %v93
  %v102 = vunpack.c.l.bf16 %v94
  %v103 = vunpack.c.l.bf16 %v95
  %s104 = scalar_lea.vmem [#allocation2], 192
  %105 = vst.msk [vmem:[%s104 + $0x8] sm:$0xff] %vm15, %v96
  %106 = vst.msk [vmem:[%s104 + $0x20] sm:$0xff] %vm15, %v97
  %107 = vst.msk [vmem:[%s104 + $0x38] sm:$0xff] %vm15, %v98
  %108 = vst.msk [vmem:[%s104 + $0x50] sm:$0xff] %vm15, %v99
  %109 = vst.msk [vmem:[%s104 + $0x68] sm:$0xff] %vm15, %v100
  %110 = vst.msk [vmem:[%s104 + $0x80] sm:$0xff] %vm15, %v101
  %111 = vst.msk [vmem:[%s104 + $0x98] sm:$0xff] %vm15, %v102
  %112 = vst.msk [vmem:[%s104 + $0xb0] sm:$0xff] %vm15, %v103
  %s113 = scalar_lea.vmem [#allocation2], 168
  %v114 = vld [vmem:[%s113 + $0x7] sm:$0xff]
  %v115 = vld [vmem:[%s113 + $0x1f] sm:$0xff]
  %v116 = vld [vmem:[%s113 + $0x37] sm:$0xff]
  %v117 = vld [vmem:[%s113 + $0x4f] sm:$0xff]
  %v118 = vld [vmem:[%s113 + $0x67] sm:$0xff]
  %v119 = vld [vmem:[%s113 + $0x7f] sm:$0xff]
  %v120 = vld [vmem:[%s113 + $0x97] sm:$0xff]
  %v121 = vld [vmem:[%s113 + $0xaf] sm:$0xff]
  %v122 = vpack.c.bf16 %v115, %v114
  %v123 = vpack.c.bf16 %v117, %v116
  %v124 = vpack.c.bf16 %v119, %v118
  %v125 = vpack.c.bf16 %v121, %v120
  %v130 = vunpack.c.l.b16 %v122
  %v131 = vunpack.c.h.b16 %v122
  %v132 = vunpack.c.l.b16 %v123
  %v133 = vunpack.c.h.b16 %v123
  %v134 = vunpack.c.l.b16 %v124
  %v135 = vunpack.c.h.b16 %v124
  %v136 = vunpack.c.l.b16 %v125
  %v137 = vunpack.c.h.b16 %v125
  %v138 = vpack.c.b16 %v130, %v130
  %v139 = vpack.c.b16 %v131, %v131
  %v140 = vpack.c.b16 %v132, %v132
  %v141 = vpack.c.b16 %v133, %v133
  %v142 = vpack.c.b16 %v134, %v134
  %v143 = vpack.c.b16 %v135, %v135
  %v144 = vpack.c.b16 %v136, %v136
  %v145 = vpack.c.b16 %v137, %v137
  %vm154 = vcmask 257024
  %155 = vst.msk [vmem:[#allocation3] sm:$0xf] %vm154, %v138
  %156 = vst.msk [vmem:[#allocation3 + $0x1c] sm:$0xf] %vm154, %v139
  %157 = vst.msk [vmem:[#allocation3 + $0x38] sm:$0xf] %vm154, %v140
  %158 = vst.msk [vmem:[#allocation3 + $0x54] sm:$0xf] %vm154, %v141
  %159 = vst.msk [vmem:[#allocation3 + $0x70] sm:$0xf] %vm154, %v142
  %160 = vst.msk [vmem:[#allocation3 + $0x8c] sm:$0xf] %vm154, %v143
  %161 = vst.msk [vmem:[#allocation3 + $0xa8] sm:$0xf] %vm154, %v144
  %162 = vst.msk [vmem:[#allocation3 + $0xc4] sm:$0xf] %vm154, %v145
  %v163 = vld [vmem:[%s113 + $0x8] sm:$0xff]
  %v164 = vld [vmem:[%s113 + $0x20] sm:$0xff]
  %v165 = vld [vmem:[%s113 + $0x38] sm:$0xff]
  %v166 = vld [vmem:[%s113 + $0x50] sm:$0xff]
  %v167 = vld [vmem:[%s113 + $0x68] sm:$0xff]
  %v168 = vld [vmem:[%s113 + $0x80] sm:$0xff]
  %v169 = vld [vmem:[%s113 + $0x98] sm:$0xff]
  %v170 = vld [vmem:[%s113 + $0xb0] sm:$0xff]
  %v171 = vpack.c.bf16 %v164, %v163
  %v172 = vpack.c.bf16 %v166, %v165
  %v173 = vpack.c.bf16 %v168, %v167
  %v174 = vpack.c.bf16 %v170, %v169
  %v179 = vunpack.c.l.b16 %v171
  %v180 = vunpack.c.h.b16 %v171
  %v181 = vunpack.c.l.b16 %v172
  %v182 = vunpack.c.h.b16 %v172
  %v183 = vunpack.c.l.b16 %v173
  %v184 = vunpack.c.h.b16 %v173
  %v185 = vunpack.c.l.b16 %v174
  %v186 = vunpack.c.h.b16 %v174
  %v187 = vpack.c.b16 %v179, %v179
  %v188 = vpack.c.b16 %v180, %v180
  %v189 = vpack.c.b16 %v181, %v181
  %v190 = vpack.c.b16 %v182, %v182
  %v191 = vpack.c.b16 %v183, %v183
  %v192 = vpack.c.b16 %v184, %v184
  %v193 = vpack.c.b16 %v185, %v185
  %v194 = vpack.c.b16 %v186, %v186
  %195 = vrot.lane.b32.xlu0 %v187, 32
  %v196 = vpop.permute.xlu0 %195
  %197 = vrot.lane.b32.xlu0 %v188, 32
  %v198 = vpop.permute.xlu0 %197
  %199 = vrot.lane.b32.xlu0 %v189, 32
  %v200 = vpop.permute.xlu0 %199
  %201 = vrot.lane.b32.xlu0 %v190, 32
  %v202 = vpop.permute.xlu0 %201
  %203 = vrot.lane.b32.xlu0 %v191, 32
  %v204 = vpop.permute.xlu0 %203
  %205 = vrot.lane.b32.xlu0 %v192, 32
  %v206 = vpop.permute.xlu0 %205
  %207 = vrot.lane.b32.xlu0 %v193, 32
  %v208 = vpop.permute.xlu0 %207
  %209 = vrot.lane.b32.xlu0 %v194, 32
  %v210 = vpop.permute.xlu0 %209
  %vm219 = vcmask 519424
  %220 = vst.msk [vmem:[#allocation3] sm:$0xf] %vm219, %v196
  %221 = vst.msk [vmem:[#allocation3 + $0x1c] sm:$0xf] %vm219, %v198
  %222 = vst.msk [vmem:[#allocation3 + $0x38] sm:$0xf] %vm219, %v200
  %223 = vst.msk [vmem:[#allocation3 + $0x54] sm:$0xf] %vm219, %v202
  %224 = vst.msk [vmem:[#allocation3 + $0x70] sm:$0xf] %vm219, %v204
  %225 = vst.msk [vmem:[#allocation3 + $0x8c] sm:$0xf] %vm219, %v206
  %226 = vst.msk [vmem:[#allocation3 + $0xa8] sm:$0xf] %vm219, %v208
  %227 = vst.msk [vmem:[#allocation3 + $0xc4] sm:$0xf] %vm219, %v210
  %v228 = vld [vmem:[%s113 + $0x9] sm:$0xff]
  %v229 = vld [vmem:[%s113 + $0x21] sm:$0xff]
  %v230 = vld [vmem:[%s113 + $0x39] sm:$0xff]
  %v231 = vld [vmem:[%s113 + $0x51] sm:$0xff]
  %v232 = vld [vmem:[%s113 + $0x69] sm:$0xff]
  %v233 = vld [vmem:[%s113 + $0x81] sm:$0xff]
  %v234 = vld [vmem:[%s113 + $0x99] sm:$0xff]
  %v235 = vld [vmem:[%s113 + $0xb1] sm:$0xff]
  %v236 = vpack.c.bf16 %v229, %v228
  %v237 = vpack.c.bf16 %v231, %v230
  %v238 = vpack.c.bf16 %v233, %v232
  %v239 = vpack.c.bf16 %v235, %v234
  %v244 = vunpack.c.l.b16 %v236
  %v245 = vunpack.c.h.b16 %v236
  %v246 = vunpack.c.l.b16 %v237
  %v247 = vunpack.c.h.b16 %v237
  %v248 = vunpack.c.l.b16 %v238
  %v249 = vunpack.c.h.b16 %v238
  %v250 = vunpack.c.l.b16 %v239
  %v251 = vunpack.c.h.b16 %v239
  %v252 = vpack.c.b16 %v244, %v244
  %v253 = vpack.c.b16 %v245, %v245
  %v254 = vpack.c.b16 %v246, %v246
  %v255 = vpack.c.b16 %v247, %v247
  %v256 = vpack.c.b16 %v248, %v248
  %v257 = vpack.c.b16 %v249, %v249
  %v258 = vpack.c.b16 %v250, %v250
  %v259 = vpack.c.b16 %v251, %v251
  %260 = vrot.lane.b32.xlu0 %v252, 64
  %v261 = vpop.permute.xlu0 %260
  %262 = vrot.lane.b32.xlu0 %v253, 64
  %v263 = vpop.permute.xlu0 %262
  %264 = vrot.lane.b32.xlu0 %v254, 64
  %v265 = vpop.permute.xlu0 %264
  %266 = vrot.lane.b32.xlu0 %v255, 64
  %v267 = vpop.permute.xlu0 %266
  %268 = vrot.lane.b32.xlu0 %v256, 64
  %v269 = vpop.permute.xlu0 %268
  %270 = vrot.lane.b32.xlu0 %v257, 64
  %v271 = vpop.permute.xlu0 %270
  %272 = vrot.lane.b32.xlu0 %v258, 64
  %v273 = vpop.permute.xlu0 %272
  %274 = vrot.lane.b32.xlu0 %v259, 64
  %v275 = vpop.permute.xlu0 %274
  %vm284 = vcmask 781824
  %285 = vst.msk [vmem:[#allocation3] sm:$0xf] %vm284, %v261
  %286 = vst.msk [vmem:[#allocation3 + $0x1c] sm:$0xf] %vm284, %v263
  %287 = vst.msk [vmem:[#allocation3 + $0x38] sm:$0xf] %vm284, %v265
  %288 = vst.msk [vmem:[#allocation3 + $0x54] sm:$0xf] %vm284, %v267
  %289 = vst.msk [vmem:[#allocation3 + $0x70] sm:$0xf] %vm284, %v269
  %290 = vst.msk [vmem:[#allocation3 + $0x8c] sm:$0xf] %vm284, %v271
  %291 = vst.msk [vmem:[#allocation3 + $0xa8] sm:$0xf] %vm284, %v273
  %292 = vst.msk [vmem:[#allocation3 + $0xc4] sm:$0xf] %vm284, %v275
  %v293 = vld [vmem:[%s104 + $0x7] sm:$0xff]
  %v294 = vld [vmem:[%s104 + $0x1f] sm:$0xff]
  %v295 = vld [vmem:[%s104 + $0x37] sm:$0xff]
  %v296 = vld [vmem:[%s104 + $0x4f] sm:$0xff]
  %v297 = vld [vmem:[%s104 + $0x67] sm:$0xff]
  %v298 = vld [vmem:[%s104 + $0x7f] sm:$0xff]
  %v299 = vld [vmem:[%s104 + $0x97] sm:$0xff]
  %v300 = vld [vmem:[%s104 + $0xaf] sm:$0xff]
  %v301 = vpack.c.bf16 %v294, %v293
  %v302 = vpack.c.bf16 %v296, %v295
  %v303 = vpack.c.bf16 %v298, %v297
  %v304 = vpack.c.bf16 %v300, %v299
  %v309 = vunpack.c.l.b16 %v301
  %v310 = vunpack.c.h.b16 %v301
  %v311 = vunpack.c.l.b16 %v302
  %v312 = vunpack.c.h.b16 %v302
  %v313 = vunpack.c.l.b16 %v303
  %v314 = vunpack.c.h.b16 %v303
  %v315 = vunpack.c.l.b16 %v304
  %v316 = vunpack.c.h.b16 %v304
  %v317 = vpack.c.b16 %v309, %v309
  %v318 = vpack.c.b16 %v310, %v310
  %v319 = vpack.c.b16 %v311, %v311
  %v320 = vpack.c.b16 %v312, %v312
  %v321 = vpack.c.b16 %v313, %v313
  %v322 = vpack.c.b16 %v314, %v314
  %v323 = vpack.c.b16 %v315, %v315
  %v324 = vpack.c.b16 %v316, %v316
  %325 = vrot.lane.b32.xlu0 %v317, 96
  %v326 = vpop.permute.xlu0 %325
  %327 = vrot.lane.b32.xlu0 %v318, 96
  %v328 = vpop.permute.xlu0 %327
  %329 = vrot.lane.b32.xlu0 %v319, 96
  %v330 = vpop.permute.xlu0 %329
  %331 = vrot.lane.b32.xlu0 %v320, 96
  %v332 = vpop.permute.xlu0 %331
  %333 = vrot.lane.b32.xlu0 %v321, 96
  %v334 = vpop.permute.xlu0 %333
  %335 = vrot.lane.b32.xlu0 %v322, 96
  %v336 = vpop.permute.xlu0 %335
  %337 = vrot.lane.b32.xlu0 %v323, 96
  %v338 = vpop.permute.xlu0 %337
  %339 = vrot.lane.b32.xlu0 %v324, 96
  %v340 = vpop.permute.xlu0 %339
  %vm349 = vcmask 1044224
  %350 = vst.msk [vmem:[#allocation3] sm:$0xf] %vm349, %v326
  %351 = vst.msk [vmem:[#allocation3 + $0x1c] sm:$0xf] %vm349, %v328
  %352 = vst.msk [vmem:[#allocation3 + $0x38] sm:$0xf] %vm349, %v330
  %353 = vst.msk [vmem:[#allocation3 + $0x54] sm:$0xf] %vm349, %v332
  %354 = vst.msk [vmem:[#allocation3 + $0x70] sm:$0xf] %vm349, %v334
  %355 = vst.msk [vmem:[#allocation3 + $0x8c] sm:$0xf] %vm349, %v336
  %356 = vst.msk [vmem:[#allocation3 + $0xa8] sm:$0xf] %vm349, %v338
  %357 = vst.msk [vmem:[#allocation3 + $0xc4] sm:$0xf] %vm349, %v340
  %v358 = vld [vmem:[%s104 + $0x8] sm:$0xff]
  %v359 = vld [vmem:[%s104 + $0x20] sm:$0xff]
  %v360 = vld [vmem:[%s104 + $0x38] sm:$0xff]
  %v361 = vld [vmem:[%s104 + $0x50] sm:$0xff]
  %v362 = vld [vmem:[%s104 + $0x68] sm:$0xff]
  %v363 = vld [vmem:[%s104 + $0x80] sm:$0xff]
  %v364 = vld [vmem:[%s104 + $0x98] sm:$0xff]
  %v365 = vld [vmem:[%s104 + $0xb0] sm:$0xff]
  %v366 = vpack.c.bf16 %v359, %v358
  %v367 = vpack.c.bf16 %v361, %v360
  %v368 = vpack.c.bf16 %v363, %v362
  %v369 = vpack.c.bf16 %v365, %v364
  %v374 = vunpack.c.l.b16 %v366
  %v375 = vunpack.c.h.b16 %v366
  %v376 = vunpack.c.l.b16 %v367
  %v377 = vunpack.c.h.b16 %v367
  %v378 = vunpack.c.l.b16 %v368
  %v379 = vunpack.c.h.b16 %v368
  %v380 = vunpack.c.l.b16 %v369
  %v381 = vunpack.c.h.b16 %v369
  %v382 = vpack.c.b16 %v374, %v374
  %v383 = vpack.c.b16 %v375, %v375
  %v384 = vpack.c.b16 %v376, %v376
  %v385 = vpack.c.b16 %v377, %v377
  %v386 = vpack.c.b16 %v378, %v378
  %v387 = vpack.c.b16 %v379, %v379
  %v388 = vpack.c.b16 %v380, %v380
  %v389 = vpack.c.b16 %v381, %v381
  %398 = vst.msk [vmem:[#allocation3 + $0x4] sm:$0xf] %vm154, %v382
  %399 = vst.msk [vmem:[#allocation3 + $0x20] sm:$0xf] %vm154, %v383
  %400 = vst.msk [vmem:[#allocation3 + $0x3c] sm:$0xf] %vm154, %v384
  %401 = vst.msk [vmem:[#allocation3 + $0x58] sm:$0xf] %vm154, %v385
  %402 = vst.msk [vmem:[#allocation3 + $0x74] sm:$0xf] %vm154, %v386
  %403 = vst.msk [vmem:[#allocation3 + $0x90] sm:$0xf] %vm154, %v387
  %404 = vst.msk [vmem:[#allocation3 + $0xac] sm:$0xf] %vm154, %v388
  %405 = vst.msk [vmem:[#allocation3 + $0xc8] sm:$0xf] %vm154, %v389
  %v406 = vld [vmem:[%s104 + $0x9] sm:$0xff]
  %v407 = vld [vmem:[%s104 + $0x21] sm:$0xff]
  %v408 = vld [vmem:[%s104 + $0x39] sm:$0xff]
  %v409 = vld [vmem:[%s104 + $0x51] sm:$0xff]
  %v410 = vld [vmem:[%s104 + $0x69] sm:$0xff]
  %v411 = vld [vmem:[%s104 + $0x81] sm:$0xff]
  %v412 = vld [vmem:[%s104 + $0x99] sm:$0xff]
  %v413 = vld [vmem:[%s104 + $0xb1] sm:$0xff]
  %v414 = vpack.c.bf16 %v407, %v406
  %v415 = vpack.c.bf16 %v409, %v408
  %v416 = vpack.c.bf16 %v411, %v410
  %v417 = vpack.c.bf16 %v413, %v412
  %v422 = vunpack.c.l.b16 %v414
  %v423 = vunpack.c.h.b16 %v414
  %v424 = vunpack.c.l.b16 %v415
  %v425 = vunpack.c.h.b16 %v415
  %v426 = vunpack.c.l.b16 %v416
  %v427 = vunpack.c.h.b16 %v416
  %v428 = vunpack.c.l.b16 %v417
  %v429 = vunpack.c.h.b16 %v417
  %v430 = vpack.c.b16 %v422, %v422
  %v431 = vpack.c.b16 %v423, %v423
  %v432 = vpack.c.b16 %v424, %v424
  %v433 = vpack.c.b16 %v425, %v425
  %v434 = vpack.c.b16 %v426, %v426
  %v435 = vpack.c.b16 %v427, %v427
  %v436 = vpack.c.b16 %v428, %v428
  %v437 = vpack.c.b16 %v429, %v429
  %438 = vrot.lane.b32.xlu0 %v430, 32
  %v439 = vpop.permute.xlu0 %438
  %440 = vrot.lane.b32.xlu0 %v431, 32
  %v441 = vpop.permute.xlu0 %440
  %442 = vrot.lane.b32.xlu0 %v432, 32
  %v443 = vpop.permute.xlu0 %442
  %444 = vrot.lane.b32.xlu0 %v433, 32
  %v445 = vpop.permute.xlu0 %444
  %446 = vrot.lane.b32.xlu0 %v434, 32
  %v447 = vpop.permute.xlu0 %446
  %448 = vrot.lane.b32.xlu0 %v435, 32
  %v449 = vpop.permute.xlu0 %448
  %450 = vrot.lane.b32.xlu0 %v436, 32
  %v451 = vpop.permute.xlu0 %450
  %452 = vrot.lane.b32.xlu0 %v437, 32
  %v453 = vpop.permute.xlu0 %452
  %462 = vst.msk [vmem:[#allocation3 + $0x4] sm:$0xf] %vm219, %v439
  %463 = vst.msk [vmem:[#allocation3 + $0x20] sm:$0xf] %vm219, %v441
  %464 = vst.msk [vmem:[#allocation3 + $0x3c] sm:$0xf] %vm219, %v443
  %465 = vst.msk [vmem:[#allocation3 + $0x58] sm:$0xf] %vm219, %v445
  %466 = vst.msk [vmem:[#allocation3 + $0x74] sm:$0xf] %vm219, %v447
  %467 = vst.msk [vmem:[#allocation3 + $0x90] sm:$0xf] %vm219, %v449
  %468 = vst.msk [vmem:[#allocation3 + $0xac] sm:$0xf] %vm219, %v451
  %469 = vst.msk [vmem:[#allocation3 + $0xc8] sm:$0xf] %vm219, %v453
  %s470 = scalar_lea.vmem [#allocation2], 216
  %v471 = vld [vmem:[%s470 + $0x7] sm:$0xff]
  %v472 = vld [vmem:[%s470 + $0x1f] sm:$0xff]
  %v473 = vld [vmem:[%s470 + $0x37] sm:$0xff]
  %v474 = vld [vmem:[%s470 + $0x4f] sm:$0xff]
  %v475 = vld [vmem:[%s470 + $0x67] sm:$0xff]
  %v476 = vld [vmem:[%s470 + $0x7f] sm:$0xff]
  %v477 = vld [vmem:[%s470 + $0x97] sm:$0xff]
  %v478 = vld [vmem:[%s470 + $0xaf] sm:$0xff]
  %v479 = vpack.c.bf16 %v472, %v471
  %v480 = vpack.c.bf16 %v474, %v473
  %v481 = vpack.c.bf16 %v476, %v475
  %v482 = vpack.c.bf16 %v478, %v477
  %v487 = vunpack.c.l.b16 %v479
  %v488 = vunpack.c.h.b16 %v479
  %v489 = vunpack.c.l.b16 %v480
  %v490 = vunpack.c.h.b16 %v480
  %v491 = vunpack.c.l.b16 %v481
  %v492 = vunpack.c.h.b16 %v481
  %v493 = vunpack.c.l.b16 %v482
  %v494 = vunpack.c.h.b16 %v482
  %v495 = vpack.c.b16 %v487, %v487
  %v496 = vpack.c.b16 %v488, %v488
  %v497 = vpack.c.b16 %v489, %v489
  %v498 = vpack.c.b16 %v490, %v490
  %v499 = vpack.c.b16 %v491, %v491
  %v500 = vpack.c.b16 %v492, %v492
  %v501 = vpack.c.b16 %v493, %v493
  %v502 = vpack.c.b16 %v494, %v494
  %503 = vrot.lane.b32.xlu0 %v495, 64
  %v504 = vpop.permute.xlu0 %503
  %505 = vrot.lane.b32.xlu0 %v496, 64
  %v506 = vpop.permute.xlu0 %505
  %507 = vrot.lane.b32.xlu0 %v497, 64
  %v508 = vpop.permute.xlu0 %507
  %509 = vrot.lane.b32.xlu0 %v498, 64
  %v510 = vpop.permute.xlu0 %509
  %511 = vrot.lane.b32.xlu0 %v499, 64
  %v512 = vpop.permute.xlu0 %511
  %513 = vrot.lane.b32.xlu0 %v500, 64
  %v514 = vpop.permute.xlu0 %513
  %515 = vrot.lane.b32.xlu0 %v501, 64
  %v516 = vpop.permute.xlu0 %515
  %517 = vrot.lane.b32.xlu0 %v502, 64
  %v518 = vpop.permute.xlu0 %517
  %527 = vst.msk [vmem:[#allocation3 + $0x4] sm:$0xf] %vm284, %v504
  %528 = vst.msk [vmem:[#allocation3 + $0x20] sm:$0xf] %vm284, %v506
  %529 = vst.msk [vmem:[#allocation3 + $0x3c] sm:$0xf] %vm284, %v508
  %530 = vst.msk [vmem:[#allocation3 + $0x58] sm:$0xf] %vm284, %v510
  %531 = vst.msk [vmem:[#allocation3 + $0x74] sm:$0xf] %vm284, %v512
  %532 = vst.msk [vmem:[#allocation3 + $0x90] sm:$0xf] %vm284, %v514
  %533 = vst.msk [vmem:[#allocation3 + $0xac] sm:$0xf] %vm284, %v516
  %534 = vst.msk [vmem:[#allocation3 + $0xc8] sm:$0xf] %vm284, %v518
  %v535 = vld [vmem:[%s470 + $0x8] sm:$0xff]
  %v536 = vld [vmem:[%s470 + $0x20] sm:$0xff]
  %v537 = vld [vmem:[%s470 + $0x38] sm:$0xff]
  %v538 = vld [vmem:[%s470 + $0x50] sm:$0xff]
  %v539 = vld [vmem:[%s470 + $0x68] sm:$0xff]
  %v540 = vld [vmem:[%s470 + $0x80] sm:$0xff]
  %v541 = vld [vmem:[%s470 + $0x98] sm:$0xff]
  %v542 = vld [vmem:[%s470 + $0xb0] sm:$0xff]
  %v543 = vpack.c.bf16 %v536, %v535
  %v544 = vpack.c.bf16 %v538, %v537
  %v545 = vpack.c.bf16 %v540, %v539
  %v546 = vpack.c.bf16 %v542, %v541
  %v551 = vunpack.c.l.b16 %v543
  %v552 = vunpack.c.h.b16 %v543
  %v553 = vunpack.c.l.b16 %v544
  %v554 = vunpack.c.h.b16 %v544
  %v555 = vunpack.c.l.b16 %v545
  %v556 = vunpack.c.h.b16 %v545
  %v557 = vunpack.c.l.b16 %v546
  %v558 = vunpack.c.h.b16 %v546
  %v559 = vpack.c.b16 %v551, %v551
  %v560 = vpack.c.b16 %v552, %v552
  %v561 = vpack.c.b16 %v553, %v553
  %v562 = vpack.c.b16 %v554, %v554
  %v563 = vpack.c.b16 %v555, %v555
  %v564 = vpack.c.b16 %v556, %v556
  %v565 = vpack.c.b16 %v557, %v557
  %v566 = vpack.c.b16 %v558, %v558
  %567 = vrot.lane.b32.xlu0 %v559, 96
  %v568 = vpop.permute.xlu0 %567
  %569 = vrot.lane.b32.xlu0 %v560, 96
  %v570 = vpop.permute.xlu0 %569
  %571 = vrot.lane.b32.xlu0 %v561, 96
  %v572 = vpop.permute.xlu0 %571
  %573 = vrot.lane.b32.xlu0 %v562, 96
  %v574 = vpop.permute.xlu0 %573
  %575 = vrot.lane.b32.xlu0 %v563, 96
  %v576 = vpop.permute.xlu0 %575
  %577 = vrot.lane.b32.xlu0 %v564, 96
  %v578 = vpop.permute.xlu0 %577
  %579 = vrot.lane.b32.xlu0 %v565, 96
  %v580 = vpop.permute.xlu0 %579
  %581 = vrot.lane.b32.xlu0 %v566, 96
  %v582 = vpop.permute.xlu0 %581
  %591 = vst.msk [vmem:[#allocation3 + $0x4] sm:$0xf] %vm349, %v568
  %592 = vst.msk [vmem:[#allocation3 + $0x20] sm:$0xf] %vm349, %v570
  %593 = vst.msk [vmem:[#allocation3 + $0x3c] sm:$0xf] %vm349, %v572
  %594 = vst.msk [vmem:[#allocation3 + $0x58] sm:$0xf] %vm349, %v574
  %595 = vst.msk [vmem:[#allocation3 + $0x74] sm:$0xf] %vm349, %v576
  %596 = vst.msk [vmem:[#allocation3 + $0x90] sm:$0xf] %vm349, %v578
  %597 = vst.msk [vmem:[#allocation3 + $0xac] sm:$0xf] %vm349, %v580
  %598 = vst.msk [vmem:[#allocation3 + $0xc8] sm:$0xf] %vm349, %v582
  %v599 = vld [vmem:[%s470 + $0x9] sm:$0xff]
  %v600 = vld [vmem:[%s470 + $0x21] sm:$0xff]
  %v601 = vld [vmem:[%s470 + $0x39] sm:$0xff]
  %v602 = vld [vmem:[%s470 + $0x51] sm:$0xff]
  %v603 = vld [vmem:[%s470 + $0x69] sm:$0xff]
  %v604 = vld [vmem:[%s470 + $0x81] sm:$0xff]
  %v605 = vld [vmem:[%s470 + $0x99] sm:$0xff]
  %v606 = vld [vmem:[%s470 + $0xb1] sm:$0xff]
  %v607 = vpack.c.bf16 %v600, %v599
  %v608 = vpack.c.bf16 %v602, %v601
  %v609 = vpack.c.bf16 %v604, %v603
  %v610 = vpack.c.bf16 %v606, %v605
  %v615 = vunpack.c.l.b16 %v607
  %v616 = vunpack.c.h.b16 %v607
  %v617 = vunpack.c.l.b16 %v608
  %v618 = vunpack.c.h.b16 %v608
  %v619 = vunpack.c.l.b16 %v609
  %v620 = vunpack.c.h.b16 %v609
  %v621 = vunpack.c.l.b16 %v610
  %v622 = vunpack.c.h.b16 %v610
  %v623 = vpack.c.b16 %v615, %v615
  %v624 = vpack.c.b16 %v616, %v616
  %v625 = vpack.c.b16 %v617, %v617
  %v626 = vpack.c.b16 %v618, %v618
  %v627 = vpack.c.b16 %v619, %v619
  %v628 = vpack.c.b16 %v620, %v620
  %v629 = vpack.c.b16 %v621, %v621
  %v630 = vpack.c.b16 %v622, %v622
  %639 = vst.msk [vmem:[#allocation3 + $0x8] sm:$0xf] %vm154, %v623
  %640 = vst.msk [vmem:[#allocation3 + $0x24] sm:$0xf] %vm154, %v624
  %641 = vst.msk [vmem:[#allocation3 + $0x40] sm:$0xf] %vm154, %v625
  %642 = vst.msk [vmem:[#allocation3 + $0x5c] sm:$0xf] %vm154, %v626
  %643 = vst.msk [vmem:[#allocation3 + $0x78] sm:$0xf] %vm154, %v627
  %644 = vst.msk [vmem:[#allocation3 + $0x94] sm:$0xf] %vm154, %v628
  %645 = vst.msk [vmem:[#allocation3 + $0xb0] sm:$0xf] %vm154, %v629
  %646 = vst.msk [vmem:[#allocation3 + $0xcc] sm:$0xf] %vm154, %v630
  %v647 = vld [vmem:[%s104 + $0x8] sm:$0xff]
  %v648 = vld [vmem:[%s104 + $0x20] sm:$0xff]
  %v649 = vld [vmem:[%s104 + $0x38] sm:$0xff]
  %v650 = vld [vmem:[%s104 + $0x50] sm:$0xff]
  %v651 = vld [vmem:[%s104 + $0x68] sm:$0xff]
  %v652 = vld [vmem:[%s104 + $0x80] sm:$0xff]
  %v653 = vld [vmem:[%s104 + $0x98] sm:$0xff]
  %v654 = vld [vmem:[%s104 + $0xb0] sm:$0xff]
  %v655 = vpack.c.bf16 %v648, %v647
  %v656 = vpack.c.bf16 %v650, %v649
  %v657 = vpack.c.bf16 %v652, %v651
  %v658 = vpack.c.bf16 %v654, %v653
  %v663 = vunpack.c.l.b16 %v655
  %v664 = vunpack.c.h.b16 %v655
  %v665 = vunpack.c.l.b16 %v656
  %v666 = vunpack.c.h.b16 %v656
  %v667 = vunpack.c.l.b16 %v657
  %v668 = vunpack.c.h.b16 %v657
  %v669 = vunpack.c.l.b16 %v658
  %v670 = vunpack.c.h.b16 %v658
  %v671 = vpack.c.b16 %v663, %v663
  %v672 = vpack.c.b16 %v664, %v664
  %v673 = vpack.c.b16 %v665, %v665
  %v674 = vpack.c.b16 %v666, %v666
  %v675 = vpack.c.b16 %v667, %v667
  %v676 = vpack.c.b16 %v668, %v668
  %v677 = vpack.c.b16 %v669, %v669
  %v678 = vpack.c.b16 %v670, %v670
  %679 = vrot.lane.b32.xlu0 %v671, 32
  %v680 = vpop.permute.xlu0 %679
  %681 = vrot.lane.b32.xlu0 %v672, 32
  %v682 = vpop.permute.xlu0 %681
  %683 = vrot.lane.b32.xlu0 %v673, 32
  %v684 = vpop.permute.xlu0 %683
  %685 = vrot.lane.b32.xlu0 %v674, 32
  %v686 = vpop.permute.xlu0 %685
  %687 = vrot.lane.b32.xlu0 %v675, 32
  %v688 = vpop.permute.xlu0 %687
  %689 = vrot.lane.b32.xlu0 %v676, 32
  %v690 = vpop.permute.xlu0 %689
  %691 = vrot.lane.b32.xlu0 %v677, 32
  %v692 = vpop.permute.xlu0 %691
  %693 = vrot.lane.b32.xlu0 %v678, 32
  %v694 = vpop.permute.xlu0 %693
  %703 = vst.msk [vmem:[#allocation3 + $0x8] sm:$0xf] %vm219, %v680
  %704 = vst.msk [vmem:[#allocation3 + $0x24] sm:$0xf] %vm219, %v682
  %705 = vst.msk [vmem:[#allocation3 + $0x40] sm:$0xf] %vm219, %v684
  %706 = vst.msk [vmem:[#allocation3 + $0x5c] sm:$0xf] %vm219, %v686
  %707 = vst.msk [vmem:[#allocation3 + $0x78] sm:$0xf] %vm219, %v688
  %708 = vst.msk [vmem:[#allocation3 + $0x94] sm:$0xf] %vm219, %v690
  %709 = vst.msk [vmem:[#allocation3 + $0xb0] sm:$0xf] %vm219, %v692
  %710 = vst.msk [vmem:[#allocation3 + $0xcc] sm:$0xf] %vm219, %v694
  %s711 = scalar_lea.vmem [#allocation2], 96
  %v712 = vld [vmem:[%s711 + $0x4] sm:$0xff]
  %v713 = vld [vmem:[%s711 + $0x1c] sm:$0xff]
  %v714 = vld [vmem:[%s711 + $0x34] sm:$0xff]
  %v715 = vld [vmem:[%s711 + $0x4c] sm:$0xff]
  %v716 = vld [vmem:[%s711 + $0x64] sm:$0xff]
  %v717 = vld [vmem:[%s711 + $0x7c] sm:$0xff]
  %v718 = vld [vmem:[%s711 + $0x94] sm:$0xff]
  %v719 = vld [vmem:[%s711 + $0xac] sm:$0xff]
  %v720 = vpack.c.bf16 %v713, %v712
  %v721 = vpack.c.bf16 %v715, %v714
  %v722 = vpack.c.bf16 %v717, %v716
  %v723 = vpack.c.bf16 %v719, %v718
  %v728 = vunpack.c.l.b16 %v720
  %v729 = vunpack.c.h.b16 %v720
  %v730 = vunpack.c.l.b16 %v721
  %v731 = vunpack.c.h.b16 %v721
  %v732 = vunpack.c.l.b16 %v722
  %v733 = vunpack.c.h.b16 %v722
  %v734 = vunpack.c.l.b16 %v723
  %v735 = vunpack.c.h.b16 %v723
  %v736 = vpack.c.b16 %v728, %v728
  %v737 = vpack.c.b16 %v729, %v729
  %v738 = vpack.c.b16 %v730, %v730
  %v739 = vpack.c.b16 %v731, %v731
  %v740 = vpack.c.b16 %v732, %v732
  %v741 = vpack.c.b16 %v733, %v733
  %v742 = vpack.c.b16 %v734, %v734
  %v743 = vpack.c.b16 %v735, %v735
  %744 = vrot.lane.b32.xlu0 %v736, 64
  %v745 = vpop.permute.xlu0 %744
  %746 = vrot.lane.b32.xlu0 %v737, 64
  %v747 = vpop.permute.xlu0 %746
  %748 = vrot.lane.b32.xlu0 %v738, 64
  %v749 = vpop.permute.xlu0 %748
  %750 = vrot.lane.b32.xlu0 %v739, 64
  %v751 = vpop.permute.xlu0 %750
  %752 = vrot.lane.b32.xlu0 %v740, 64
  %v753 = vpop.permute.xlu0 %752
  %754 = vrot.lane.b32.xlu0 %v741, 64
  %v755 = vpop.permute.xlu0 %754
  %756 = vrot.lane.b32.xlu0 %v742, 64
  %v757 = vpop.permute.xlu0 %756
  %758 = vrot.lane.b32.xlu0 %v743, 64
  %v759 = vpop.permute.xlu0 %758
  %768 = vst.msk [vmem:[#allocation3 + $0x8] sm:$0xf] %vm284, %v745
  %769 = vst.msk [vmem:[#allocation3 + $0x24] sm:$0xf] %vm284, %v747
  %770 = vst.msk [vmem:[#allocation3 + $0x40] sm:$0xf] %vm284, %v749
  %771 = vst.msk [vmem:[#allocation3 + $0x5c] sm:$0xf] %vm284, %v751
  %772 = vst.msk [vmem:[#allocation3 + $0x78] sm:$0xf] %vm284, %v753
  %773 = vst.msk [vmem:[#allocation3 + $0x94] sm:$0xf] %vm284, %v755
  %774 = vst.msk [vmem:[#allocation3 + $0xb0] sm:$0xf] %vm284, %v757
  %775 = vst.msk [vmem:[#allocation3 + $0xcc] sm:$0xf] %vm284, %v759
  %v776 = vld [vmem:[%s711 + $0x8] sm:$0xff]
  %v777 = vld [vmem:[%s711 + $0x20] sm:$0xff]
  %v778 = vld [vmem:[%s711 + $0x38] sm:$0xff]
  %v779 = vld [vmem:[%s711 + $0x50] sm:$0xff]
  %v780 = vld [vmem:[%s711 + $0x68] sm:$0xff]
  %v781 = vld [vmem:[%s711 + $0x80] sm:$0xff]
  %v782 = vld [vmem:[%s711 + $0x98] sm:$0xff]
  %v783 = vld [vmem:[%s711 + $0xb0] sm:$0xff]
  %v784 = vpack.c.bf16 %v777, %v776
  %v785 = vpack.c.bf16 %v779, %v778
  %v786 = vpack.c.bf16 %v781, %v780
  %v787 = vpack.c.bf16 %v783, %v782
  %v792 = vunpack.c.l.b16 %v784
  %v793 = vunpack.c.h.b16 %v784
  %v794 = vunpack.c.l.b16 %v785
  %v795 = vunpack.c.h.b16 %v785
  %v796 = vunpack.c.l.b16 %v786
  %v797 = vunpack.c.h.b16 %v786
  %v798 = vunpack.c.l.b16 %v787
  %v799 = vunpack.c.h.b16 %v787
  %v800 = vpack.c.b16 %v792, %v792
  %v801 = vpack.c.b16 %v793, %v793
  %v802 = vpack.c.b16 %v794, %v794
  %v803 = vpack.c.b16 %v795, %v795
  %v804 = vpack.c.b16 %v796, %v796
  %v805 = vpack.c.b16 %v797, %v797
  %v806 = vpack.c.b16 %v798, %v798
  %v807 = vpack.c.b16 %v799, %v799
  %808 = vrot.lane.b32.xlu0 %v800, 96
  %v809 = vpop.permute.xlu0 %808
  %810 = vrot.lane.b32.xlu0 %v801, 96
  %v811 = vpop.permute.xlu0 %810
  %812 = vrot.lane.b32.xlu0 %v802, 96
  %v813 = vpop.permute.xlu0 %812
  %814 = vrot.lane.b32.xlu0 %v803, 96
  %v815 = vpop.permute.xlu0 %814
  %816 = vrot.lane.b32.xlu0 %v804, 96
  %v817 = vpop.permute.xlu0 %816
  %818 = vrot.lane.b32.xlu0 %v805, 96
  %v819 = vpop.permute.xlu0 %818
  %820 = vrot.lane.b32.xlu0 %v806, 96
  %v821 = vpop.permute.xlu0 %820
  %822 = vrot.lane.b32.xlu0 %v807, 96
  %v823 = vpop.permute.xlu0 %822
  %832 = vst.msk [vmem:[#allocation3 + $0x8] sm:$0xf] %vm349, %v809
  %833 = vst.msk [vmem:[#allocation3 + $0x24] sm:$0xf] %vm349, %v811
  %834 = vst.msk [vmem:[#allocation3 + $0x40] sm:$0xf] %vm349, %v813
  %835 = vst.msk [vmem:[#allocation3 + $0x5c] sm:$0xf] %vm349, %v815
  %836 = vst.msk [vmem:[#allocation3 + $0x78] sm:$0xf] %vm349, %v817
  %837 = vst.msk [vmem:[#allocation3 + $0x94] sm:$0xf] %vm349, %v819
  %838 = vst.msk [vmem:[#allocation3 + $0xb0] sm:$0xf] %vm349, %v821
  %839 = vst.msk [vmem:[#allocation3 + $0xcc] sm:$0xf] %vm349, %v823
  %v840 = vld [vmem:[%s711 + $0xc] sm:$0xff]
  %v841 = vld [vmem:[%s711 + $0x24] sm:$0xff]
  %v842 = vld [vmem:[%s711 + $0x3c] sm:$0xff]
  %v843 = vld [vmem:[%s711 + $0x54] sm:$0xff]
  %v844 = vld [vmem:[%s711 + $0x6c] sm:$0xff]
  %v845 = vld [vmem:[%s711 + $0x84] sm:$0xff]
  %v846 = vld [vmem:[%s711 + $0x9c] sm:$0xff]
  %v847 = vld [vmem:[%s711 + $0xb4] sm:$0xff]
  %v848 = vpack.c.bf16 %v841, %v840
  %v849 = vpack.c.bf16 %v843, %v842
  %v850 = vpack.c.bf16 %v845, %v844
  %v851 = vpack.c.bf16 %v847, %v846
  %v856 = vunpack.c.l.b16 %v848
  %v857 = vunpack.c.h.b16 %v848
  %v858 = vunpack.c.l.b16 %v849
  %v859 = vunpack.c.h.b16 %v849
  %v860 = vunpack.c.l.b16 %v850
  %v861 = vunpack.c.h.b16 %v850
  %v862 = vunpack.c.l.b16 %v851
  %v863 = vunpack.c.h.b16 %v851
  %v864 = vpack.c.b16 %v856, %v856
  %v865 = vpack.c.b16 %v857, %v857
  %v866 = vpack.c.b16 %v858, %v858
  %v867 = vpack.c.b16 %v859, %v859
  %v868 = vpack.c.b16 %v860, %v860
  %v869 = vpack.c.b16 %v861, %v861
  %v870 = vpack.c.b16 %v862, %v862
  %v871 = vpack.c.b16 %v863, %v863
  %880 = vst.msk [vmem:[#allocation3 + $0xc] sm:$0xf] %vm154, %v864
  %881 = vst.msk [vmem:[#allocation3 + $0x28] sm:$0xf] %vm154, %v865
  %882 = vst.msk [vmem:[#allocation3 + $0x44] sm:$0xf] %vm154, %v866
  %883 = vst.msk [vmem:[#allocation3 + $0x60] sm:$0xf] %vm154, %v867
  %884 = vst.msk [vmem:[#allocation3 + $0x7c] sm:$0xf] %vm154, %v868
  %885 = vst.msk [vmem:[#allocation3 + $0x98] sm:$0xf] %vm154, %v869
  %886 = vst.msk [vmem:[#allocation3 + $0xb4] sm:$0xf] %vm154, %v870
  %887 = vst.msk [vmem:[#allocation3 + $0xd0] sm:$0xf] %vm154, %v871
  %v888 = vld [vmem:[%s104 + $0x4] sm:$0xff]
  %v889 = vld [vmem:[%s104 + $0x1c] sm:$0xff]
  %v890 = vld [vmem:[%s104 + $0x34] sm:$0xff]
  %v891 = vld [vmem:[%s104 + $0x4c] sm:$0xff]
  %v892 = vld [vmem:[%s104 + $0x64] sm:$0xff]
  %v893 = vld [vmem:[%s104 + $0x7c] sm:$0xff]
  %v894 = vld [vmem:[%s104 + $0x94] sm:$0xff]
  %v895 = vld [vmem:[%s104 + $0xac] sm:$0xff]
  %v896 = vpack.c.bf16 %v889, %v888
  %v897 = vpack.c.bf16 %v891, %v890
  %v898 = vpack.c.bf16 %v893, %v892
  %v899 = vpack.c.bf16 %v895, %v894
  %v904 = vunpack.c.l.b16 %v896
  %v905 = vunpack.c.h.b16 %v896
  %v906 = vunpack.c.l.b16 %v897
  %v907 = vunpack.c.h.b16 %v897
  %v908 = vunpack.c.l.b16 %v898
  %v909 = vunpack.c.h.b16 %v898
  %v910 = vunpack.c.l.b16 %v899
  %v911 = vunpack.c.h.b16 %v899
  %v912 = vpack.c.b16 %v904, %v904
  %v913 = vpack.c.b16 %v905, %v905
  %v914 = vpack.c.b16 %v906, %v906
  %v915 = vpack.c.b16 %v907, %v907
  %v916 = vpack.c.b16 %v908, %v908
  %v917 = vpack.c.b16 %v909, %v909
  %v918 = vpack.c.b16 %v910, %v910
  %v919 = vpack.c.b16 %v911, %v911
  %920 = vrot.lane.b32.xlu0 %v912, 32
  %v921 = vpop.permute.xlu0 %920
  %922 = vrot.lane.b32.xlu0 %v913, 32
  %v923 = vpop.permute.xlu0 %922
  %924 = vrot.lane.b32.xlu0 %v914, 32
  %v925 = vpop.permute.xlu0 %924
  %926 = vrot.lane.b32.xlu0 %v915, 32
  %v927 = vpop.permute.xlu0 %926
  %928 = vrot.lane.b32.xlu0 %v916, 32
  %v929 = vpop.permute.xlu0 %928
  %930 = vrot.lane.b32.xlu0 %v917, 32
  %v931 = vpop.permute.xlu0 %930
  %932 = vrot.lane.b32.xlu0 %v918, 32
  %v933 = vpop.permute.xlu0 %932
  %934 = vrot.lane.b32.xlu0 %v919, 32
  %v935 = vpop.permute.xlu0 %934
  %944 = vst.msk [vmem:[#allocation3 + $0xc] sm:$0xf] %vm219, %v921
  %945 = vst.msk [vmem:[#allocation3 + $0x28] sm:$0xf] %vm219, %v923
  %946 = vst.msk [vmem:[#allocation3 + $0x44] sm:$0xf] %vm219, %v925
  %947 = vst.msk [vmem:[#allocation3 + $0x60] sm:$0xf] %vm219, %v927
  %948 = vst.msk [vmem:[#allocation3 + $0x7c] sm:$0xf] %vm219, %v929
  %949 = vst.msk [vmem:[#allocation3 + $0x98] sm:$0xf] %vm219, %v931
  %950 = vst.msk [vmem:[#allocation3 + $0xb4] sm:$0xf] %vm219, %v933
  %951 = vst.msk [vmem:[#allocation3 + $0xd0] sm:$0xf] %vm219, %v935
  %v952 = vld [vmem:[%s104 + $0x8] sm:$0xff]
  %v953 = vld [vmem:[%s104 + $0x20] sm:$0xff]
  %v954 = vld [vmem:[%s104 + $0x38] sm:$0xff]
  %v955 = vld [vmem:[%s104 + $0x50] sm:$0xff]
  %v956 = vld [vmem:[%s104 + $0x68] sm:$0xff]
  %v957 = vld [vmem:[%s104 + $0x80] sm:$0xff]
  %v958 = vld [vmem:[%s104 + $0x98] sm:$0xff]
  %v959 = vld [vmem:[%s104 + $0xb0] sm:$0xff]
  %v960 = vpack.c.bf16 %v953, %v952
  %v961 = vpack.c.bf16 %v955, %v954
  %v962 = vpack.c.bf16 %v957, %v956
  %v963 = vpack.c.bf16 %v959, %v958
  %v968 = vunpack.c.l.b16 %v960
  %v969 = vunpack.c.h.b16 %v960
  %v970 = vunpack.c.l.b16 %v961
  %v971 = vunpack.c.h.b16 %v961
  %v972 = vunpack.c.l.b16 %v962
  %v973 = vunpack.c.h.b16 %v962
  %v974 = vunpack.c.l.b16 %v963
  %v975 = vunpack.c.h.b16 %v963
  %v976 = vpack.c.b16 %v968, %v968
  %v977 = vpack.c.b16 %v969, %v969
  %v978 = vpack.c.b16 %v970, %v970
  %v979 = vpack.c.b16 %v971, %v971
  %v980 = vpack.c.b16 %v972, %v972
  %v981 = vpack.c.b16 %v973, %v973
  %v982 = vpack.c.b16 %v974, %v974
  %v983 = vpack.c.b16 %v975, %v975
  %984 = vrot.lane.b32.xlu0 %v976, 64
  %v985 = vpop.permute.xlu0 %984
  %986 = vrot.lane.b32.xlu0 %v977, 64
  %v987 = vpop.permute.xlu0 %986
  %988 = vrot.lane.b32.xlu0 %v978, 64
  %v989 = vpop.permute.xlu0 %988
  %990 = vrot.lane.b32.xlu0 %v979, 64
  %v991 = vpop.permute.xlu0 %990
  %992 = vrot.lane.b32.xlu0 %v980, 64
  %v993 = vpop.permute.xlu0 %992
  %994 = vrot.lane.b32.xlu0 %v981, 64
  %v995 = vpop.permute.xlu0 %994
  %996 = vrot.lane.b32.xlu0 %v982, 64
  %v997 = vpop.permute.xlu0 %996
  %998 = vrot.lane.b32.xlu0 %v983, 64
  %v999 = vpop.permute.xlu0 %998
  %1008 = vst.msk [vmem:[#allocation3 + $0xc] sm:$0xf] %vm284, %v985
  %1009 = vst.msk [vmem:[#allocation3 + $0x28] sm:$0xf] %vm284, %v987
  %1010 = vst.msk [vmem:[#allocation3 + $0x44] sm:$0xf] %vm284, %v989
  %1011 = vst.msk [vmem:[#allocation3 + $0x60] sm:$0xf] %vm284, %v991
  %1012 = vst.msk [vmem:[#allocation3 + $0x7c] sm:$0xf] %vm284, %v993
  %1013 = vst.msk [vmem:[#allocation3 + $0x98] sm:$0xf] %vm284, %v995
  %1014 = vst.msk [vmem:[#allocation3 + $0xb4] sm:$0xf] %vm284, %v997
  %1015 = vst.msk [vmem:[#allocation3 + $0xd0] sm:$0xf] %vm284, %v999
  %v1016 = vld [vmem:[%s104 + $0xc] sm:$0xff]
  %v1017 = vld [vmem:[%s104 + $0x24] sm:$0xff]
  %v1018 = vld [vmem:[%s104 + $0x3c] sm:$0xff]
  %v1019 = vld [vmem:[%s104 + $0x54] sm:$0xff]
  %v1020 = vld [vmem:[%s104 + $0x6c] sm:$0xff]
  %v1021 = vld [vmem:[%s104 + $0x84] sm:$0xff]
  %v1022 = vld [vmem:[%s104 + $0x9c] sm:$0xff]
  %v1023 = vld [vmem:[%s104 + $0xb4] sm:$0xff]
  %v1024 = vpack.c.bf16 %v1017, %v1016
  %v1025 = vpack.c.bf16 %v1019, %v1018
  %v1026 = vpack.c.bf16 %v1021, %v1020
  %v1027 = vpack.c.bf16 %v1023, %v1022
  %v1032 = vunpack.c.l.b16 %v1024
  %v1033 = vunpack.c.h.b16 %v1024
  %v1034 = vunpack.c.l.b16 %v1025
  %v1035 = vunpack.c.h.b16 %v1025
  %v1036 = vunpack.c.l.b16 %v1026
  %v1037 = vunpack.c.h.b16 %v1026
  %v1038 = vunpack.c.l.b16 %v1027
  %v1039 = vunpack.c.h.b16 %v1027
  %v1040 = vpack.c.b16 %v1032, %v1032
  %v1041 = vpack.c.b16 %v1033, %v1033
  %v1042 = vpack.c.b16 %v1034, %v1034
  %v1043 = vpack.c.b16 %v1035, %v1035
  %v1044 = vpack.c.b16 %v1036, %v1036
  %v1045 = vpack.c.b16 %v1037, %v1037
  %v1046 = vpack.c.b16 %v1038, %v1038
  %v1047 = vpack.c.b16 %v1039, %v1039
  %1048 = vrot.lane.b32.xlu0 %v1040, 96
  %v1049 = vpop.permute.xlu0 %1048
  %1050 = vrot.lane.b32.xlu0 %v1041, 96
  %v1051 = vpop.permute.xlu0 %1050
  %1052 = vrot.lane.b32.xlu0 %v1042, 96
  %v1053 = vpop.permute.xlu0 %1052
  %1054 = vrot.lane.b32.xlu0 %v1043, 96
  %v1055 = vpop.permute.xlu0 %1054
  %1056 = vrot.lane.b32.xlu0 %v1044, 96
  %v1057 = vpop.permute.xlu0 %1056
  %1058 = vrot.lane.b32.xlu0 %v1045, 96
  %v1059 = vpop.permute.xlu0 %1058
  %1060 = vrot.lane.b32.xlu0 %v1046, 96
  %v1061 = vpop.permute.xlu0 %1060
  %1062 = vrot.lane.b32.xlu0 %v1047, 96
  %v1063 = vpop.permute.xlu0 %1062
  %1072 = vst.msk [vmem:[#allocation3 + $0xc] sm:$0xf] %vm349, %v1049
  %1073 = vst.msk [vmem:[#allocation3 + $0x28] sm:$0xf] %vm349, %v1051
  %1074 = vst.msk [vmem:[#allocation3 + $0x44] sm:$0xf] %vm349, %v1053
  %1075 = vst.msk [vmem:[#allocation3 + $0x60] sm:$0xf] %vm349, %v1055
  %1076 = vst.msk [vmem:[#allocation3 + $0x7c] sm:$0xf] %vm349, %v1057
  %1077 = vst.msk [vmem:[#allocation3 + $0x98] sm:$0xf] %vm349, %v1059
  %1078 = vst.msk [vmem:[#allocation3 + $0xb4] sm:$0xf] %vm349, %v1061
  %1079 = vst.msk [vmem:[#allocation3 + $0xd0] sm:$0xf] %vm349, %v1063
  %s1080 = scalar_lea.vmem [#allocation2], 288
  %v1081 = vld [vmem:[%s1080 + $0x4] sm:$0xff]
  %v1082 = vld [vmem:[%s1080 + $0x1c] sm:$0xff]
  %v1083 = vld [vmem:[%s1080 + $0x34] sm:$0xff]
  %v1084 = vld [vmem:[%s1080 + $0x4c] sm:$0xff]
  %v1085 = vld [vmem:[%s1080 + $0x64] sm:$0xff]
  %v1086 = vld [vmem:[%s1080 + $0x7c] sm:$0xff]
  %v1087 = vld [vmem:[%s1080 + $0x94] sm:$0xff]
  %v1088 = vld [vmem:[%s1080 + $0xac] sm:$0xff]
  %v1089 = vpack.c.bf16 %v1082, %v1081
  %v1090 = vpack.c.bf16 %v1084, %v1083
  %v1091 = vpack.c.bf16 %v1086, %v1085
  %v1092 = vpack.c.bf16 %v1088, %v1087
  %v1097 = vunpack.c.l.b16 %v1089
  %v1098 = vunpack.c.h.b16 %v1089
  %v1099 = vunpack.c.l.b16 %v1090
  %v1100 = vunpack.c.h.b16 %v1090
  %v1101 = vunpack.c.l.b16 %v1091
  %v1102 = vunpack.c.h.b16 %v1091
  %v1103 = vunpack.c.l.b16 %v1092
  %v1104 = vunpack.c.h.b16 %v1092
  %v1105 = vpack.c.b16 %v1097, %v1097
  %v1106 = vpack.c.b16 %v1098, %v1098
  %v1107 = vpack.c.b16 %v1099, %v1099
  %v1108 = vpack.c.b16 %v1100, %v1100
  %v1109 = vpack.c.b16 %v1101, %v1101
  %v1110 = vpack.c.b16 %v1102, %v1102
  %v1111 = vpack.c.b16 %v1103, %v1103
  %v1112 = vpack.c.b16 %v1104, %v1104
  %1121 = vst.msk [vmem:[#allocation3 + $0x10] sm:$0xf] %vm154, %v1105
  %1122 = vst.msk [vmem:[#allocation3 + $0x2c] sm:$0xf] %vm154, %v1106
  %1123 = vst.msk [vmem:[#allocation3 + $0x48] sm:$0xf] %vm154, %v1107
  %1124 = vst.msk [vmem:[#allocation3 + $0x64] sm:$0xf] %vm154, %v1108
  %1125 = vst.msk [vmem:[#allocation3 + $0x80] sm:$0xf] %vm154, %v1109
  %1126 = vst.msk [vmem:[#allocation3 + $0x9c] sm:$0xf] %vm154, %v1110
  %1127 = vst.msk [vmem:[#allocation3 + $0xb8] sm:$0xf] %vm154, %v1111
  %1128 = vst.msk [vmem:[#allocation3 + $0xd4] sm:$0xf] %vm154, %v1112
  %v1129 = vld [vmem:[%s1080 + $0x8] sm:$0xff]
  %v1130 = vld [vmem:[%s1080 + $0x20] sm:$0xff]
  %v1131 = vld [vmem:[%s1080 + $0x38] sm:$0xff]
  %v1132 = vld [vmem:[%s1080 + $0x50] sm:$0xff]
  %v1133 = vld [vmem:[%s1080 + $0x68] sm:$0xff]
  %v1134 = vld [vmem:[%s1080 + $0x80] sm:$0xff]
  %v1135 = vld [vmem:[%s1080 + $0x98] sm:$0xff]
  %v1136 = vld [vmem:[%s1080 + $0xb0] sm:$0xff]
  %v1137 = vpack.c.bf16 %v1130, %v1129
  %v1138 = vpack.c.bf16 %v1132, %v1131
  %v1139 = vpack.c.bf16 %v1134, %v1133
  %v1140 = vpack.c.bf16 %v1136, %v1135
  %v1145 = vunpack.c.l.b16 %v1137
  %v1146 = vunpack.c.h.b16 %v1137
  %v1147 = vunpack.c.l.b16 %v1138
  %v1148 = vunpack.c.h.b16 %v1138
  %v1149 = vunpack.c.l.b16 %v1139
  %v1150 = vunpack.c.h.b16 %v1139
  %v1151 = vunpack.c.l.b16 %v1140
  %v1152 = vunpack.c.h.b16 %v1140
  %v1153 = vpack.c.b16 %v1145, %v1145
  %v1154 = vpack.c.b16 %v1146, %v1146
  %v1155 = vpack.c.b16 %v1147, %v1147
  %v1156 = vpack.c.b16 %v1148, %v1148
  %v1157 = vpack.c.b16 %v1149, %v1149
  %v1158 = vpack.c.b16 %v1150, %v1150
  %v1159 = vpack.c.b16 %v1151, %v1151
  %v1160 = vpack.c.b16 %v1152, %v1152
  %1161 = vrot.lane.b32.xlu0 %v1153, 32
  %v1162 = vpop.permute.xlu0 %1161
  %1163 = vrot.lane.b32.xlu0 %v1154, 32
  %v1164 = vpop.permute.xlu0 %1163
  %1165 = vrot.lane.b32.xlu0 %v1155, 32
  %v1166 = vpop.permute.xlu0 %1165
  %1167 = vrot.lane.b32.xlu0 %v1156, 32
  %v1168 = vpop.permute.xlu0 %1167
  %1169 = vrot.lane.b32.xlu0 %v1157, 32
  %v1170 = vpop.permute.xlu0 %1169
  %1171 = vrot.lane.b32.xlu0 %v1158, 32
  %v1172 = vpop.permute.xlu0 %1171
  %1173 = vrot.lane.b32.xlu0 %v1159, 32
  %v1174 = vpop.permute.xlu0 %1173
  %1175 = vrot.lane.b32.xlu0 %v1160, 32
  %v1176 = vpop.permute.xlu0 %1175
  %1185 = vst.msk [vmem:[#allocation3 + $0x10] sm:$0xf] %vm219, %v1162
  %1186 = vst.msk [vmem:[#allocation3 + $0x2c] sm:$0xf] %vm219, %v1164
  %1187 = vst.msk [vmem:[#allocation3 + $0x48] sm:$0xf] %vm219, %v1166
  %1188 = vst.msk [vmem:[#allocation3 + $0x64] sm:$0xf] %vm219, %v1168
  %1189 = vst.msk [vmem:[#allocation3 + $0x80] sm:$0xf] %vm219, %v1170
  %1190 = vst.msk [vmem:[#allocation3 + $0x9c] sm:$0xf] %vm219, %v1172
  %1191 = vst.msk [vmem:[#allocation3 + $0xb8] sm:$0xf] %vm219, %v1174
  %1192 = vst.msk [vmem:[#allocation3 + $0xd4] sm:$0xf] %vm219, %v1176
  %v1193 = vld [vmem:[%s1080 + $0xc] sm:$0xff]
  %v1194 = vld [vmem:[%s1080 + $0x24] sm:$0xff]
  %v1195 = vld [vmem:[%s1080 + $0x3c] sm:$0xff]
  %v1196 = vld [vmem:[%s1080 + $0x54] sm:$0xff]
  %v1197 = vld [vmem:[%s1080 + $0x6c] sm:$0xff]
  %v1198 = vld [vmem:[%s1080 + $0x84] sm:$0xff]
  %v1199 = vld [vmem:[%s1080 + $0x9c] sm:$0xff]
  %v1200 = vld [vmem:[%s1080 + $0xb4] sm:$0xff]
  %v1201 = vpack.c.bf16 %v1194, %v1193
  %v1202 = vpack.c.bf16 %v1196, %v1195
  %v1203 = vpack.c.bf16 %v1198, %v1197
  %v1204 = vpack.c.bf16 %v1200, %v1199
  %v1209 = vunpack.c.l.b16 %v1201
  %v1210 = vunpack.c.h.b16 %v1201
  %v1211 = vunpack.c.l.b16 %v1202
  %v1212 = vunpack.c.h.b16 %v1202
  %v1213 = vunpack.c.l.b16 %v1203
  %v1214 = vunpack.c.h.b16 %v1203
  %v1215 = vunpack.c.l.b16 %v1204
  %v1216 = vunpack.c.h.b16 %v1204
  %v1217 = vpack.c.b16 %v1209, %v1209
  %v1218 = vpack.c.b16 %v1210, %v1210
  %v1219 = vpack.c.b16 %v1211, %v1211
  %v1220 = vpack.c.b16 %v1212, %v1212
  %v1221 = vpack.c.b16 %v1213, %v1213
  %v1222 = vpack.c.b16 %v1214, %v1214
  %v1223 = vpack.c.b16 %v1215, %v1215
  %v1224 = vpack.c.b16 %v1216, %v1216
  %1225 = vrot.lane.b32.xlu0 %v1217, 64
  %v1226 = vpop.permute.xlu0 %1225
  %1227 = vrot.lane.b32.xlu0 %v1218, 64
  %v1228 = vpop.permute.xlu0 %1227
  %1229 = vrot.lane.b32.xlu0 %v1219, 64
  %v1230 = vpop.permute.xlu0 %1229
  %1231 = vrot.lane.b32.xlu0 %v1220, 64
  %v1232 = vpop.permute.xlu0 %1231
  %1233 = vrot.lane.b32.xlu0 %v1221, 64
  %v1234 = vpop.permute.xlu0 %1233
  %1235 = vrot.lane.b32.xlu0 %v1222, 64
  %v1236 = vpop.permute.xlu0 %1235
  %1237 = vrot.lane.b32.xlu0 %v1223, 64
  %v1238 = vpop.permute.xlu0 %1237
  %1239 = vrot.lane.b32.xlu0 %v1224, 64
  %v1240 = vpop.permute.xlu0 %1239
  %1249 = vst.msk [vmem:[#allocation3 + $0x10] sm:$0xf] %vm284, %v1226
  %1250 = vst.msk [vmem:[#allocation3 + $0x2c] sm:$0xf] %vm284, %v1228
  %1251 = vst.msk [vmem:[#allocation3 + $0x48] sm:$0xf] %vm284, %v1230
  %1252 = vst.msk [vmem:[#allocation3 + $0x64] sm:$0xf] %vm284, %v1232
  %1253 = vst.msk [vmem:[#allocation3 + $0x80] sm:$0xf] %vm284, %v1234
  %1254 = vst.msk [vmem:[#allocation3 + $0x9c] sm:$0xf] %vm284, %v1236
  %1255 = vst.msk [vmem:[#allocation3 + $0xb8] sm:$0xf] %vm284, %v1238
  %1256 = vst.msk [vmem:[#allocation3 + $0xd4] sm:$0xf] %vm284, %v1240
  %v1257 = vld [vmem:[#allocation2] sm:$0xff]
  %v1258 = vld [vmem:[#allocation2 + $0x18] sm:$0xff]
  %v1259 = vld [vmem:[#allocation2 + $0x30] sm:$0xff]
  %v1260 = vld [vmem:[#allocation2 + $0x48] sm:$0xff]
  %v1261 = vld [vmem:[#allocation2 + $0x60] sm:$0xff]
  %v1262 = vld [vmem:[#allocation2 + $0x78] sm:$0xff]
  %v1263 = vld [vmem:[#allocation2 + $0x90] sm:$0xff]
  %v1264 = vld [vmem:[#allocation2 + $0xa8] sm:$0xff]
  %v1265 = vpack.c.bf16 %v1258, %v1257
  %v1266 = vpack.c.bf16 %v1260, %v1259
  %v1267 = vpack.c.bf16 %v1262, %v1261
  %v1268 = vpack.c.bf16 %v1264, %v1263
  %v1273 = vunpack.c.l.b16 %v1265
  %v1274 = vunpack.c.h.b16 %v1265
  %v1275 = vunpack.c.l.b16 %v1266
  %v1276 = vunpack.c.h.b16 %v1266
  %v1277 = vunpack.c.l.b16 %v1267
  %v1278 = vunpack.c.h.b16 %v1267
  %v1279 = vunpack.c.l.b16 %v1268
  %v1280 = vunpack.c.h.b16 %v1268
  %v1281 = vpack.c.b16 %v1273, %v1273
  %v1282 = vpack.c.b16 %v1274, %v1274
  %v1283 = vpack.c.b16 %v1275, %v1275
  %v1284 = vpack.c.b16 %v1276, %v1276
  %v1285 = vpack.c.b16 %v1277, %v1277
  %v1286 = vpack.c.b16 %v1278, %v1278
  %v1287 = vpack.c.b16 %v1279, %v1279
  %v1288 = vpack.c.b16 %v1280, %v1280
  %1289 = vrot.lane.b32.xlu0 %v1281, 96
  %v1290 = vpop.permute.xlu0 %1289
  %1291 = vrot.lane.b32.xlu0 %v1282, 96
  %v1292 = vpop.permute.xlu0 %1291
  %1293 = vrot.lane.b32.xlu0 %v1283, 96
  %v1294 = vpop.permute.xlu0 %1293
  %1295 = vrot.lane.b32.xlu0 %v1284, 96
  %v1296 = vpop.permute.xlu0 %1295
  %1297 = vrot.lane.b32.xlu0 %v1285, 96
  %v1298 = vpop.permute.xlu0 %1297
  %1299 = vrot.lane.b32.xlu0 %v1286, 96
  %v1300 = vpop.permute.xlu0 %1299
  %1301 = vrot.lane.b32.xlu0 %v1287, 96
  %v1302 = vpop.permute.xlu0 %1301
  %1303 = vrot.lane.b32.xlu0 %v1288, 96
  %v1304 = vpop.permute.xlu0 %1303
  %1313 = vst.msk [vmem:[#allocation3 + $0x10] sm:$0xf] %vm349, %v1290
  %1314 = vst.msk [vmem:[#allocation3 + $0x2c] sm:$0xf] %vm349, %v1292
  %1315 = vst.msk [vmem:[#allocation3 + $0x48] sm:$0xf] %vm349, %v1294
  %1316 = vst.msk [vmem:[#allocation3 + $0x64] sm:$0xf] %vm349, %v1296
  %1317 = vst.msk [vmem:[#allocation3 + $0x80] sm:$0xf] %vm349, %v1298
  %1318 = vst.msk [vmem:[#allocation3 + $0x9c] sm:$0xf] %vm349, %v1300
  %1319 = vst.msk [vmem:[#allocation3 + $0xb8] sm:$0xf] %vm349, %v1302
  %1320 = vst.msk [vmem:[#allocation3 + $0xd4] sm:$0xf] %vm349, %v1304
  %v1321 = vld [vmem:[#allocation2 + $0x8] sm:$0xff]
  %v1322 = vld [vmem:[#allocation2 + $0x20] sm:$0xff]
  %v1323 = vld [vmem:[#allocation2 + $0x38] sm:$0xff]
  %v1324 = vld [vmem:[#allocation2 + $0x50] sm:$0xff]
  %v1325 = vld [vmem:[#allocation2 + $0x68] sm:$0xff]
  %v1326 = vld [vmem:[#allocation2 + $0x80] sm:$0xff]
  %v1327 = vld [vmem:[#allocation2 + $0x98] sm:$0xff]
  %v1328 = vld [vmem:[#allocation2 + $0xb0] sm:$0xff]
  %v1329 = vpack.c.bf16 %v1322, %v1321
  %v1330 = vpack.c.bf16 %v1324, %v1323
  %v1331 = vpack.c.bf16 %v1326, %v1325
  %v1332 = vpack.c.bf16 %v1328, %v1327
  %v1337 = vunpack.c.l.b16 %v1329
  %v1338 = vunpack.c.h.b16 %v1329
  %v1339 = vunpack.c.l.b16 %v1330
  %v1340 = vunpack.c.h.b16 %v1330
  %v1341 = vunpack.c.l.b16 %v1331
  %v1342 = vunpack.c.h.b16 %v1331
  %v1343 = vunpack.c.l.b16 %v1332
  %v1344 = vunpack.c.h.b16 %v1332
  %v1345 = vpack.c.b16 %v1337, %v1337
  %v1346 = vpack.c.b16 %v1338, %v1338
  %v1347 = vpack.c.b16 %v1339, %v1339
  %v1348 = vpack.c.b16 %v1340, %v1340
  %v1349 = vpack.c.b16 %v1341, %v1341
  %v1350 = vpack.c.b16 %v1342, %v1342
  %v1351 = vpack.c.b16 %v1343, %v1343
  %v1352 = vpack.c.b16 %v1344, %v1344
  %1361 = vst.msk [vmem:[#allocation3 + $0x14] sm:$0xf] %vm154, %v1345
  %1362 = vst.msk [vmem:[#allocation3 + $0x30] sm:$0xf] %vm154, %v1346
  %1363 = vst.msk [vmem:[#allocation3 + $0x4c] sm:$0xf] %vm154, %v1347
  %1364 = vst.msk [vmem:[#allocation3 + $0x68] sm:$0xf] %vm154, %v1348
  %1365 = vst.msk [vmem:[#allocation3 + $0x84] sm:$0xf] %vm154, %v1349
  %1366 = vst.msk [vmem:[#allocation3 + $0xa0] sm:$0xf] %vm154, %v1350
  %1367 = vst.msk [vmem:[#allocation3 + $0xbc] sm:$0xf] %vm154, %v1351
  %1368 = vst.msk [vmem:[#allocation3 + $0xd8] sm:$0xf] %vm154, %v1352
  %v1369 = vld [vmem:[#allocation2 + $0x10] sm:$0xff]
  %v1370 = vld [vmem:[#allocation2 + $0x28] sm:$0xff]
  %v1371 = vld [vmem:[#allocation2 + $0x40] sm:$0xff]
  %v1372 = vld [vmem:[#allocation2 + $0x58] sm:$0xff]
  %v1373 = vld [vmem:[#allocation2 + $0x70] sm:$0xff]
  %v1374 = vld [vmem:[#allocation2 + $0x88] sm:$0xff]
  %v1375 = vld [vmem:[#allocation2 + $0xa0] sm:$0xff]
  %v1376 = vld [vmem:[#allocation2 + $0xb8] sm:$0xff]
  %v1377 = vpack.c.bf16 %v1370, %v1369
  %v1378 = vpack.c.bf16 %v1372, %v1371
  %v1379 = vpack.c.bf16 %v1374, %v1373
  %v1380 = vpack.c.bf16 %v1376, %v1375
  %v1385 = vunpack.c.l.b16 %v1377
  %v1386 = vunpack.c.h.b16 %v1377
  %v1387 = vunpack.c.l.b16 %v1378
  %v1388 = vunpack.c.h.b16 %v1378
  %v1389 = vunpack.c.l.b16 %v1379
  %v1390 = vunpack.c.h.b16 %v1379
  %v1391 = vunpack.c.l.b16 %v1380
  %v1392 = vunpack.c.h.b16 %v1380
  %v1393 = vpack.c.b16 %v1385, %v1385
  %v1394 = vpack.c.b16 %v1386, %v1386
  %v1395 = vpack.c.b16 %v1387, %v1387
  %v1396 = vpack.c.b16 %v1388, %v1388
  %v1397 = vpack.c.b16 %v1389, %v1389
  %v1398 = vpack.c.b16 %v1390, %v1390
  %v1399 = vpack.c.b16 %v1391, %v1391
  %v1400 = vpack.c.b16 %v1392, %v1392
  %1401 = vrot.lane.b32.xlu0 %v1393, 32
  %v1402 = vpop.permute.xlu0 %1401
  %1403 = vrot.lane.b32.xlu0 %v1394, 32
  %v1404 = vpop.permute.xlu0 %1403
  %1405 = vrot.lane.b32.xlu0 %v1395, 32
  %v1406 = vpop.permute.xlu0 %1405
  %1407 = vrot.lane.b32.xlu0 %v1396, 32
  %v1408 = vpop.permute.xlu0 %1407
  %1409 = vrot.lane.b32.xlu0 %v1397, 32
  %v1410 = vpop.permute.xlu0 %1409
  %1411 = vrot.lane.b32.xlu0 %v1398, 32
  %v1412 = vpop.permute.xlu0 %1411
  %1413 = vrot.lane.b32.xlu0 %v1399, 32
  %v1414 = vpop.permute.xlu0 %1413
  %1415 = vrot.lane.b32.xlu0 %v1400, 32
  %v1416 = vpop.permute.xlu0 %1415
  %1425 = vst.msk [vmem:[#allocation3 + $0x14] sm:$0xf] %vm219, %v1402
  %1426 = vst.msk [vmem:[#allocation3 + $0x30] sm:$0xf] %vm219, %v1404
  %1427 = vst.msk [vmem:[#allocation3 + $0x4c] sm:$0xf] %vm219, %v1406
  %1428 = vst.msk [vmem:[#allocation3 + $0x68] sm:$0xf] %vm219, %v1408
  %1429 = vst.msk [vmem:[#allocation3 + $0x84] sm:$0xf] %vm219, %v1410
  %1430 = vst.msk [vmem:[#allocation3 + $0xa0] sm:$0xf] %vm219, %v1412
  %1431 = vst.msk [vmem:[#allocation3 + $0xbc] sm:$0xf] %vm219, %v1414
  %1432 = vst.msk [vmem:[#allocation3 + $0xd8] sm:$0xf] %vm219, %v1416
  %v1433 = vld [vmem:[%s104] sm:$0xff]
  %v1434 = vld [vmem:[%s104 + $0x18] sm:$0xff]
  %v1435 = vld [vmem:[%s104 + $0x30] sm:$0xff]
  %v1436 = vld [vmem:[%s104 + $0x48] sm:$0xff]
  %v1437 = vld [vmem:[%s104 + $0x60] sm:$0xff]
  %v1438 = vld [vmem:[%s104 + $0x78] sm:$0xff]
  %v1439 = vld [vmem:[%s104 + $0x90] sm:$0xff]
  %v1440 = vld [vmem:[%s104 + $0xa8] sm:$0xff]
  %v1441 = vpack.c.bf16 %v1434, %v1433
  %v1442 = vpack.c.bf16 %v1436, %v1435
  %v1443 = vpack.c.bf16 %v1438, %v1437
  %v1444 = vpack.c.bf16 %v1440, %v1439
  %v1449 = vunpack.c.l.b16 %v1441
  %v1450 = vunpack.c.h.b16 %v1441
  %v1451 = vunpack.c.l.b16 %v1442
  %v1452 = vunpack.c.h.b16 %v1442
  %v1453 = vunpack.c.l.b16 %v1443
  %v1454 = vunpack.c.h.b16 %v1443
  %v1455 = vunpack.c.l.b16 %v1444
  %v1456 = vunpack.c.h.b16 %v1444
  %v1457 = vpack.c.b16 %v1449, %v1449
  %v1458 = vpack.c.b16 %v1450, %v1450
  %v1459 = vpack.c.b16 %v1451, %v1451
  %v1460 = vpack.c.b16 %v1452, %v1452
  %v1461 = vpack.c.b16 %v1453, %v1453
  %v1462 = vpack.c.b16 %v1454, %v1454
  %v1463 = vpack.c.b16 %v1455, %v1455
  %v1464 = vpack.c.b16 %v1456, %v1456
  %1465 = vrot.lane.b32.xlu0 %v1457, 64
  %v1466 = vpop.permute.xlu0 %1465
  %1467 = vrot.lane.b32.xlu0 %v1458, 64
  %v1468 = vpop.permute.xlu0 %1467
  %1469 = vrot.lane.b32.xlu0 %v1459, 64
  %v1470 = vpop.permute.xlu0 %1469
  %1471 = vrot.lane.b32.xlu0 %v1460, 64
  %v1472 = vpop.permute.xlu0 %1471
  %1473 = vrot.lane.b32.xlu0 %v1461, 64
  %v1474 = vpop.permute.xlu0 %1473
  %1475 = vrot.lane.b32.xlu0 %v1462, 64
  %v1476 = vpop.permute.xlu0 %1475
  %1477 = vrot.lane.b32.xlu0 %v1463, 64
  %v1478 = vpop.permute.xlu0 %1477
  %1479 = vrot.lane.b32.xlu0 %v1464, 64
  %v1480 = vpop.permute.xlu0 %1479
  %1489 = vst.msk [vmem:[#allocation3 + $0x14] sm:$0xf] %vm284, %v1466
  %1490 = vst.msk [vmem:[#allocation3 + $0x30] sm:$0xf] %vm284, %v1468
  %1491 = vst.msk [vmem:[#allocation3 + $0x4c] sm:$0xf] %vm284, %v1470
  %1492 = vst.msk [vmem:[#allocation3 + $0x68] sm:$0xf] %vm284, %v1472
  %1493 = vst.msk [vmem:[#allocation3 + $0x84] sm:$0xf] %vm284, %v1474
  %1494 = vst.msk [vmem:[#allocation3 + $0xa0] sm:$0xf] %vm284, %v1476
  %1495 = vst.msk [vmem:[#allocation3 + $0xbc] sm:$0xf] %vm284, %v1478
  %1496 = vst.msk [vmem:[#allocation3 + $0xd8] sm:$0xf] %vm284, %v1480
  %v1497 = vld [vmem:[%s104 + $0x8] sm:$0xff]
  %v1498 = vld [vmem:[%s104 + $0x20] sm:$0xff]
  %v1499 = vld [vmem:[%s104 + $0x38] sm:$0xff]
  %v1500 = vld [vmem:[%s104 + $0x50] sm:$0xff]
  %v1501 = vld [vmem:[%s104 + $0x68] sm:$0xff]
  %v1502 = vld [vmem:[%s104 + $0x80] sm:$0xff]
  %v1503 = vld [vmem:[%s104 + $0x98] sm:$0xff]
  %v1504 = vld [vmem:[%s104 + $0xb0] sm:$0xff]
  %v1505 = vpack.c.bf16 %v1498, %v1497
  %v1506 = vpack.c.bf16 %v1500, %v1499
  %v1507 = vpack.c.bf16 %v1502, %v1501
  %v1508 = vpack.c.bf16 %v1504, %v1503
  %v1513 = vunpack.c.l.b16 %v1505
  %v1514 = vunpack.c.h.b16 %v1505
  %v1515 = vunpack.c.l.b16 %v1506
  %v1516 = vunpack.c.h.b16 %v1506
  %v1517 = vunpack.c.l.b16 %v1507
  %v1518 = vunpack.c.h.b16 %v1507
  %v1519 = vunpack.c.l.b16 %v1508
  %v1520 = vunpack.c.h.b16 %v1508
  %v1521 = vpack.c.b16 %v1513, %v1513
  %v1522 = vpack.c.b16 %v1514, %v1514
  %v1523 = vpack.c.b16 %v1515, %v1515
  %v1524 = vpack.c.b16 %v1516, %v1516
  %v1525 = vpack.c.b16 %v1517, %v1517
  %v1526 = vpack.c.b16 %v1518, %v1518
  %v1527 = vpack.c.b16 %v1519, %v1519
  %v1528 = vpack.c.b16 %v1520, %v1520
  %1529 = vrot.lane.b32.xlu0 %v1521, 96
  %v1530 = vpop.permute.xlu0 %1529
  %1531 = vrot.lane.b32.xlu0 %v1522, 96
  %v1532 = vpop.permute.xlu0 %1531
  %1533 = vrot.lane.b32.xlu0 %v1523, 96
  %v1534 = vpop.permute.xlu0 %1533
  %1535 = vrot.lane.b32.xlu0 %v1524, 96
  %v1536 = vpop.permute.xlu0 %1535
  %1537 = vrot.lane.b32.xlu0 %v1525, 96
  %v1538 = vpop.permute.xlu0 %1537
  %1539 = vrot.lane.b32.xlu0 %v1526, 96
  %v1540 = vpop.permute.xlu0 %1539
  %1541 = vrot.lane.b32.xlu0 %v1527, 96
  %v1542 = vpop.permute.xlu0 %1541
  %1543 = vrot.lane.b32.xlu0 %v1528, 96
  %v1544 = vpop.permute.xlu0 %1543
  %1553 = vst.msk [vmem:[#allocation3 + $0x14] sm:$0xf] %vm349, %v1530
  %1554 = vst.msk [vmem:[#allocation3 + $0x30] sm:$0xf] %vm349, %v1532
  %1555 = vst.msk [vmem:[#allocation3 + $0x4c] sm:$0xf] %vm349, %v1534
  %1556 = vst.msk [vmem:[#allocation3 + $0x68] sm:$0xf] %vm349, %v1536
  %1557 = vst.msk [vmem:[#allocation3 + $0x84] sm:$0xf] %vm349, %v1538
  %1558 = vst.msk [vmem:[#allocation3 + $0xa0] sm:$0xf] %vm349, %v1540
  %1559 = vst.msk [vmem:[#allocation3 + $0xbc] sm:$0xf] %vm349, %v1542
  %1560 = vst.msk [vmem:[#allocation3 + $0xd8] sm:$0xf] %vm349, %v1544
  %v1561 = vld [vmem:[%s104 + $0x10] sm:$0xff]
  %v1562 = vld [vmem:[%s104 + $0x28] sm:$0xff]
  %v1563 = vld [vmem:[%s104 + $0x40] sm:$0xff]
  %v1564 = vld [vmem:[%s104 + $0x58] sm:$0xff]
  %v1565 = vld [vmem:[%s104 + $0x70] sm:$0xff]
  %v1566 = vld [vmem:[%s104 + $0x88] sm:$0xff]
  %v1567 = vld [vmem:[%s104 + $0xa0] sm:$0xff]
  %v1568 = vld [vmem:[%s104 + $0xb8] sm:$0xff]
  %v1569 = vpack.c.bf16 %v1562, %v1561
  %v1570 = vpack.c.bf16 %v1564, %v1563
  %v1571 = vpack.c.bf16 %v1566, %v1565
  %v1572 = vpack.c.bf16 %v1568, %v1567
  %v1577 = vunpack.c.l.b16 %v1569
  %v1578 = vunpack.c.h.b16 %v1569
  %v1579 = vunpack.c.l.b16 %v1570
  %v1580 = vunpack.c.h.b16 %v1570
  %v1581 = vunpack.c.l.b16 %v1571
  %v1582 = vunpack.c.h.b16 %v1571
  %v1583 = vunpack.c.l.b16 %v1572
  %v1584 = vunpack.c.h.b16 %v1572
  %v1585 = vpack.c.b16 %v1577, %v1577
  %v1586 = vpack.c.b16 %v1578, %v1578
  %v1587 = vpack.c.b16 %v1579, %v1579
  %v1588 = vpack.c.b16 %v1580, %v1580
  %v1589 = vpack.c.b16 %v1581, %v1581
  %v1590 = vpack.c.b16 %v1582, %v1582
  %v1591 = vpack.c.b16 %v1583, %v1583
  %v1592 = vpack.c.b16 %v1584, %v1584
  %1601 = vst.msk [vmem:[#allocation3 + $0x18] sm:$0xf] %vm154, %v1585
  %1602 = vst.msk [vmem:[#allocation3 + $0x34] sm:$0xf] %vm154, %v1586
  %1603 = vst.msk [vmem:[#allocation3 + $0x50] sm:$0xf] %vm154, %v1587
  %1604 = vst.msk [vmem:[#allocation3 + $0x6c] sm:$0xf] %vm154, %v1588
  %1605 = vst.msk [vmem:[#allocation3 + $0x88] sm:$0xf] %vm154, %v1589
  %1606 = vst.msk [vmem:[#allocation3 + $0xa4] sm:$0xf] %vm154, %v1590
  %1607 = vst.msk [vmem:[#allocation3 + $0xc0] sm:$0xf] %vm154, %v1591
  %1608 = vst.msk [vmem:[#allocation3 + $0xdc] sm:$0xf] %vm154, %v1592
  %s1609 = scalar_lea.vmem [#allocation2], 384
  %v1610 = vld [vmem:[%s1609] sm:$0xff]
  %v1611 = vld [vmem:[%s1609 + $0x18] sm:$0xff]
  %v1612 = vld [vmem:[%s1609 + $0x30] sm:$0xff]
  %v1613 = vld [vmem:[%s1609 + $0x48] sm:$0xff]
  %v1614 = vld [vmem:[%s1609 + $0x60] sm:$0xff]
  %v1615 = vld [vmem:[%s1609 + $0x78] sm:$0xff]
  %v1616 = vld [vmem:[%s1609 + $0x90] sm:$0xff]
  %v1617 = vld [vmem:[%s1609 + $0xa8] sm:$0xff]
  %v1618 = vpack.c.bf16 %v1611, %v1610
  %v1619 = vpack.c.bf16 %v1613, %v1612
  %v1620 = vpack.c.bf16 %v1615, %v1614
  %v1621 = vpack.c.bf16 %v1617, %v1616
  %v1626 = vunpack.c.l.b16 %v1618
  %v1627 = vunpack.c.h.b16 %v1618
  %v1628 = vunpack.c.l.b16 %v1619
  %v1629 = vunpack.c.h.b16 %v1619
  %v1630 = vunpack.c.l.b16 %v1620
  %v1631 = vunpack.c.h.b16 %v1620
  %v1632 = vunpack.c.l.b16 %v1621
  %v1633 = vunpack.c.h.b16 %v1621
  %v1634 = vpack.c.b16 %v1626, %v1626
  %v1635 = vpack.c.b16 %v1627, %v1627
  %v1636 = vpack.c.b16 %v1628, %v1628
  %v1637 = vpack.c.b16 %v1629, %v1629
  %v1638 = vpack.c.b16 %v1630, %v1630
  %v1639 = vpack.c.b16 %v1631, %v1631
  %v1640 = vpack.c.b16 %v1632, %v1632
  %v1641 = vpack.c.b16 %v1633, %v1633
  %1642 = vrot.lane.b32.xlu0 %v1634, 32
  %v1643 = vpop.permute.xlu0 %1642
  %1644 = vrot.lane.b32.xlu0 %v1635, 32
  %v1645 = vpop.permute.xlu0 %1644
  %1646 = vrot.lane.b32.xlu0 %v1636, 32
  %v1647 = vpop.permute.xlu0 %1646
  %1648 = vrot.lane.b32.xlu0 %v1637, 32
  %v1649 = vpop.permute.xlu0 %1648
  %1650 = vrot.lane.b32.xlu0 %v1638, 32
  %v1651 = vpop.permute.xlu0 %1650
  %1652 = vrot.lane.b32.xlu0 %v1639, 32
  %v1653 = vpop.permute.xlu0 %1652
  %1654 = vrot.lane.b32.xlu0 %v1640, 32
  %v1655 = vpop.permute.xlu0 %1654
  %1656 = vrot.lane.b32.xlu0 %v1641, 32
  %v1657 = vpop.permute.xlu0 %1656
  %1666 = vst.msk [vmem:[#allocation3 + $0x18] sm:$0xf] %vm219, %v1643
  %1667 = vst.msk [vmem:[#allocation3 + $0x34] sm:$0xf] %vm219, %v1645
  %1668 = vst.msk [vmem:[#allocation3 + $0x50] sm:$0xf] %vm219, %v1647
  %1669 = vst.msk [vmem:[#allocation3 + $0x6c] sm:$0xf] %vm219, %v1649
  %1670 = vst.msk [vmem:[#allocation3 + $0x88] sm:$0xf] %vm219, %v1651
  %1671 = vst.msk [vmem:[#allocation3 + $0xa4] sm:$0xf] %vm219, %v1653
  %1672 = vst.msk [vmem:[#allocation3 + $0xc0] sm:$0xf] %vm219, %v1655
  %1673 = vst.msk [vmem:[#allocation3 + $0xdc] sm:$0xf] %vm219, %v1657
  %v1674 = vld [vmem:[%s1609 + $0x8] sm:$0xff]
  %v1675 = vld [vmem:[%s1609 + $0x20] sm:$0xff]
  %v1676 = vld [vmem:[%s1609 + $0x38] sm:$0xff]
  %v1677 = vld [vmem:[%s1609 + $0x50] sm:$0xff]
  %v1678 = vld [vmem:[%s1609 + $0x68] sm:$0xff]
  %v1679 = vld [vmem:[%s1609 + $0x80] sm:$0xff]
  %v1680 = vld [vmem:[%s1609 + $0x98] sm:$0xff]
  %v1681 = vld [vmem:[%s1609 + $0xb0] sm:$0xff]
  %v1682 = vpack.c.bf16 %v1675, %v1674
  %v1683 = vpack.c.bf16 %v1677, %v1676
  %v1684 = vpack.c.bf16 %v1679, %v1678
  %v1685 = vpack.c.bf16 %v1681, %v1680
  %v1690 = vunpack.c.l.b16 %v1682
  %v1691 = vunpack.c.h.b16 %v1682
  %v1692 = vunpack.c.l.b16 %v1683
  %v1693 = vunpack.c.h.b16 %v1683
  %v1694 = vunpack.c.l.b16 %v1684
  %v1695 = vunpack.c.h.b16 %v1684
  %v1696 = vunpack.c.l.b16 %v1685
  %v1697 = vunpack.c.h.b16 %v1685
  %v1698 = vpack.c.b16 %v1690, %v1690
  %v1699 = vpack.c.b16 %v1691, %v1691
  %v1700 = vpack.c.b16 %v1692, %v1692
  %v1701 = vpack.c.b16 %v1693, %v1693
  %v1702 = vpack.c.b16 %v1694, %v1694
  %v1703 = vpack.c.b16 %v1695, %v1695
  %v1704 = vpack.c.b16 %v1696, %v1696
  %v1705 = vpack.c.b16 %v1697, %v1697
  %1706 = vrot.lane.b32.xlu0 %v1698, 64
  %v1707 = vpop.permute.xlu0 %1706
  %1708 = vrot.lane.b32.xlu0 %v1699, 64
  %v1709 = vpop.permute.xlu0 %1708
  %1710 = vrot.lane.b32.xlu0 %v1700, 64
  %v1711 = vpop.permute.xlu0 %1710
  %1712 = vrot.lane.b32.xlu0 %v1701, 64
  %v1713 = vpop.permute.xlu0 %1712
  %1714 = vrot.lane.b32.xlu0 %v1702, 64
  %v1715 = vpop.permute.xlu0 %1714
  %1716 = vrot.lane.b32.xlu0 %v1703, 64
  %v1717 = vpop.permute.xlu0 %1716
  %1718 = vrot.lane.b32.xlu0 %v1704, 64
  %v1719 = vpop.permute.xlu0 %1718
  %1720 = vrot.lane.b32.xlu0 %v1705, 64
  %v1721 = vpop.permute.xlu0 %1720
  %1730 = vst.msk [vmem:[#allocation3 + $0x18] sm:$0xf] %vm284, %v1707
  %1731 = vst.msk [vmem:[#allocation3 + $0x34] sm:$0xf] %vm284, %v1709
  %1732 = vst.msk [vmem:[#allocation3 + $0x50] sm:$0xf] %vm284, %v1711
  %1733 = vst.msk [vmem:[#allocation3 + $0x6c] sm:$0xf] %vm284, %v1713
  %1734 = vst.msk [vmem:[#allocation3 + $0x88] sm:$0xf] %vm284, %v1715
  %1735 = vst.msk [vmem:[#allocation3 + $0xa4] sm:$0xf] %vm284, %v1717
  %1736 = vst.msk [vmem:[#allocation3 + $0xc0] sm:$0xf] %vm284, %v1719
  %1737 = vst.msk [vmem:[#allocation3 + $0xdc] sm:$0xf] %vm284, %v1721
  %v1738 = vld [vmem:[%s1609 + $0x10] sm:$0xff]
  %v1739 = vld [vmem:[%s1609 + $0x28] sm:$0xff]
  %v1740 = vld [vmem:[%s1609 + $0x40] sm:$0xff]
  %v1741 = vld [vmem:[%s1609 + $0x58] sm:$0xff]
  %v1742 = vld [vmem:[%s1609 + $0x70] sm:$0xff]
  %v1743 = vld [vmem:[%s1609 + $0x88] sm:$0xff]
  %v1744 = vld [vmem:[%s1609 + $0xa0] sm:$0xff]
  %v1745 = vld [vmem:[%s1609 + $0xb8] sm:$0xff]
  %v1746 = vpack.c.bf16 %v1739, %v1738
  %v1747 = vpack.c.bf16 %v1741, %v1740
  %v1748 = vpack.c.bf16 %v1743, %v1742
  %v1749 = vpack.c.bf16 %v1745, %v1744
  %v1754 = vunpack.c.l.b16 %v1746
  %v1755 = vunpack.c.h.b16 %v1746
  %v1756 = vunpack.c.l.b16 %v1747
  %v1757 = vunpack.c.h.b16 %v1747
  %v1758 = vunpack.c.l.b16 %v1748
  %v1759 = vunpack.c.h.b16 %v1748
  %v1760 = vunpack.c.l.b16 %v1749
  %v1761 = vunpack.c.h.b16 %v1749
  %v1762 = vpack.c.b16 %v1754, %v1754
  %v1763 = vpack.c.b16 %v1755, %v1755
  %v1764 = vpack.c.b16 %v1756, %v1756
  %v1765 = vpack.c.b16 %v1757, %v1757
  %v1766 = vpack.c.b16 %v1758, %v1758
  %v1767 = vpack.c.b16 %v1759, %v1759
  %v1768 = vpack.c.b16 %v1760, %v1760
  %v1769 = vpack.c.b16 %v1761, %v1761
  %1770 = vrot.lane.b32.xlu0 %v1762, 96
  %v1771 = vpop.permute.xlu0 %1770
  %1772 = vrot.lane.b32.xlu0 %v1763, 96
  %v1773 = vpop.permute.xlu0 %1772
  %1774 = vrot.lane.b32.xlu0 %v1764, 96
  %v1775 = vpop.permute.xlu0 %1774
  %1776 = vrot.lane.b32.xlu0 %v1765, 96
  %v1777 = vpop.permute.xlu0 %1776
  %1778 = vrot.lane.b32.xlu0 %v1766, 96
  %v1779 = vpop.permute.xlu0 %1778
  %1780 = vrot.lane.b32.xlu0 %v1767, 96
  %v1781 = vpop.permute.xlu0 %1780
  %1782 = vrot.lane.b32.xlu0 %v1768, 96
  %v1783 = vpop.permute.xlu0 %1782
  %1784 = vrot.lane.b32.xlu0 %v1769, 96
  %v1785 = vpop.permute.xlu0 %1784
  %1794 = vst.msk [vmem:[#allocation3 + $0x18] sm:$0xf] %vm349, %v1771
  %1795 = vst.msk [vmem:[#allocation3 + $0x34] sm:$0xf] %vm349, %v1773
  %1796 = vst.msk [vmem:[#allocation3 + $0x50] sm:$0xf] %vm349, %v1775
  %1797 = vst.msk [vmem:[#allocation3 + $0x6c] sm:$0xf] %vm349, %v1777
  %1798 = vst.msk [vmem:[#allocation3 + $0x88] sm:$0xf] %vm349, %v1779
  %1799 = vst.msk [vmem:[#allocation3 + $0xa4] sm:$0xf] %vm349, %v1781
  %1800 = vst.msk [vmem:[#allocation3 + $0xc0] sm:$0xf] %vm349, %v1783
  %1801 = vst.msk [vmem:[#allocation3 + $0xdc] sm:$0xf] %vm349, %v1785
  %s1802 = scalar_lea.vmem %s0, 32
  %v1803 = vld [vmem:[%s1802] sm:$0xf]
  %v1804 = vld [vmem:[%s1802 + $0x4] sm:$0xf]
  %v1805 = vld [vmem:[%s1802 + $0x8] sm:$0xf]
  %v1806 = vld [vmem:[%s1802 + $0xc] sm:$0xf]
  %v1807 = vld [vmem:[%s1802 + $0x10] sm:$0xf]
  %v1808 = vld [vmem:[%s1802 + $0x14] sm:$0xf]
  %v1809 = vld [vmem:[%s1802 + $0x18] sm:$0xf]
  %v1810 = vld [vmem:[%s1802 + $0x1c] sm:$0xf]
  %v1811 = vunpack.c.l.bf16 %v1803
  %v1812 = vunpack.c.l.bf16 %v1804
  %v1813 = vunpack.c.l.bf16 %v1805
  %v1814 = vunpack.c.l.bf16 %v1806
  %v1815 = vunpack.c.l.bf16 %v1807
  %v1816 = vunpack.c.l.bf16 %v1808
  %v1817 = vunpack.c.l.bf16 %v1809
  %v1818 = vunpack.c.l.bf16 %v1810
  %1819 = vst.msk [vmem:[%s104 + $0x8] sm:$0xff] %vm15, %v1811
  %1820 = vst.msk [vmem:[%s104 + $0x20] sm:$0xff] %vm15, %v1812
  %1821 = vst.msk [vmem:[%s104 + $0x38] sm:$0xff] %vm15, %v1813
  %1822 = vst.msk [vmem:[%s104 + $0x50] sm:$0xff] %vm15, %v1814
  %1823 = vst.msk [vmem:[%s104 + $0x68] sm:$0xff] %vm15, %v1815
  %1824 = vst.msk [vmem:[%s104 + $0x80] sm:$0xff] %vm15, %v1816
  %1825 = vst.msk [vmem:[%s104 + $0x98] sm:$0xff] %vm15, %v1817
  %1826 = vst.msk [vmem:[%s104 + $0xb0] sm:$0xff] %vm15, %v1818
  %v1827 = vld [vmem:[%s113 + $0x7] sm:$0xff]
  %v1828 = vld [vmem:[%s113 + $0x1f] sm:$0xff]
  %v1829 = vld [vmem:[%s113 + $0x37] sm:$0xff]
  %v1830 = vld [vmem:[%s113 + $0x4f] sm:$0xff]
  %v1831 = vld [vmem:[%s113 + $0x67] sm:$0xff]
  %v1832 = vld [vmem:[%s113 + $0x7f] sm:$0xff]
  %v1833 = vld [vmem:[%s113 + $0x97] sm:$0xff]
  %v1834 = vld [vmem:[%s113 + $0xaf] sm:$0xff]
  %v1835 = vpack.c.bf16 %v1828, %v1827
  %v1836 = vpack.c.bf16 %v1830, %v1829
  %v1837 = vpack.c.bf16 %v1832, %v1831
  %v1838 = vpack.c.bf16 %v1834, %v1833
  %v1843 = vunpack.c.l.b16 %v1835
  %v1844 = vunpack.c.h.b16 %v1835
  %v1845 = vunpack.c.l.b16 %v1836
  %v1846 = vunpack.c.h.b16 %v1836
  %v1847 = vunpack.c.l.b16 %v1837
  %v1848 = vunpack.c.h.b16 %v1837
  %v1849 = vunpack.c.l.b16 %v1838
  %v1850 = vunpack.c.h.b16 %v1838
  %v1851 = vpack.c.b16 %v1843, %v1843
  %v1852 = vpack.c.b16 %v1844, %v1844
  %v1853 = vpack.c.b16 %v1845, %v1845
  %v1854 = vpack.c.b16 %v1846, %v1846
  %v1855 = vpack.c.b16 %v1847, %v1847
  %v1856 = vpack.c.b16 %v1848, %v1848
  %v1857 = vpack.c.b16 %v1849, %v1849
  %v1858 = vpack.c.b16 %v1850, %v1850
  %1867 = vst.msk [vmem:[#allocation3 + $0xe0] sm:$0xf] %vm154, %v1851
  %1868 = vst.msk [vmem:[#allocation3 + $0xfc] sm:$0xf] %vm154, %v1852
  %1869 = vst.msk [vmem:[#allocation3 + $0x118] sm:$0xf] %vm154, %v1853
  %1870 = vst.msk [vmem:[#allocation3 + $0x134] sm:$0xf] %vm154, %v1854
  %1871 = vst.msk [vmem:[#allocation3 + $0x150] sm:$0xf] %vm154, %v1855
  %1872 = vst.msk [vmem:[#allocation3 + $0x16c] sm:$0xf] %vm154, %v1856
  %1873 = vst.msk [vmem:[#allocation3 + $0x188] sm:$0xf] %vm154, %v1857
  %1874 = vst.msk [vmem:[#allocation3 + $0x1a4] sm:$0xf] %vm154, %v1858
  %v1875 = vld [vmem:[%s113 + $0x8] sm:$0xff]
  %v1876 = vld [vmem:[%s113 + $0x20] sm:$0xff]
  %v1877 = vld [vmem:[%s113 + $0x38] sm:$0xff]
  %v1878 = vld [vmem:[%s113 + $0x50] sm:$0xff]
  %v1879 = vld [vmem:[%s113 + $0x68] sm:$0xff]
  %v1880 = vld [vmem:[%s113 + $0x80] sm:$0xff]
  %v1881 = vld [vmem:[%s113 + $0x98] sm:$0xff]
  %v1882 = vld [vmem:[%s113 + $0xb0] sm:$0xff]
  %v1883 = vpack.c.bf16 %v1876, %v1875
  %v1884 = vpack.c.bf16 %v1878, %v1877
  %v1885 = vpack.c.bf16 %v1880, %v1879
  %v1886 = vpack.c.bf16 %v1882, %v1881
  %v1891 = vunpack.c.l.b16 %v1883
  %v1892 = vunpack.c.h.b16 %v1883
  %v1893 = vunpack.c.l.b16 %v1884
  %v1894 = vunpack.c.h.b16 %v1884
  %v1895 = vunpack.c.l.b16 %v1885
  %v1896 = vunpack.c.h.b16 %v1885
  %v1897 = vunpack.c.l.b16 %v1886
  %v1898 = vunpack.c.h.b16 %v1886
  %v1899 = vpack.c.b16 %v1891, %v1891
  %v1900 = vpack.c.b16 %v1892, %v1892
  %v1901 = vpack.c.b16 %v1893, %v1893
  %v1902 = vpack.c.b16 %v1894, %v1894
  %v1903 = vpack.c.b16 %v1895, %v1895
  %v1904 = vpack.c.b16 %v1896, %v1896
  %v1905 = vpack.c.b16 %v1897, %v1897
  %v1906 = vpack.c.b16 %v1898, %v1898
  %1907 = vrot.lane.b32.xlu0 %v1899, 32
  %v1908 = vpop.permute.xlu0 %1907
  %1909 = vrot.lane.b32.xlu0 %v1900, 32
  %v1910 = vpop.permute.xlu0 %1909
  %1911 = vrot.lane.b32.xlu0 %v1901, 32
  %v1912 = vpop.permute.xlu0 %1911
  %1913 = vrot.lane.b32.xlu0 %v1902, 32
  %v1914 = vpop.permute.xlu0 %1913
  %1915 = vrot.lane.b32.xlu0 %v1903, 32
  %v1916 = vpop.permute.xlu0 %1915
  %1917 = vrot.lane.b32.xlu0 %v1904, 32
  %v1918 = vpop.permute.xlu0 %1917
  %1919 = vrot.lane.b32.xlu0 %v1905, 32
  %v1920 = vpop.permute.xlu0 %1919
  %1921 = vrot.lane.b32.xlu0 %v1906, 32
  %v1922 = vpop.permute.xlu0 %1921
  %1931 = vst.msk [vmem:[#allocation3 + $0xe0] sm:$0xf] %vm219, %v1908
  %1932 = vst.msk [vmem:[#allocation3 + $0xfc] sm:$0xf] %vm219, %v1910
  %1933 = vst.msk [vmem:[#allocation3 + $0x118] sm:$0xf] %vm219, %v1912
  %1934 = vst.msk [vmem:[#allocation3 + $0x134] sm:$0xf] %vm219, %v1914
  %1935 = vst.msk [vmem:[#allocation3 + $0x150] sm:$0xf] %vm219, %v1916
  %1936 = vst.msk [vmem:[#allocation3 + $0x16c] sm:$0xf] %vm219, %v1918
  %1937 = vst.msk [vmem:[#allocation3 + $0x188] sm:$0xf] %vm219, %v1920
  %1938 = vst.msk [vmem:[#allocation3 + $0x1a4] sm:$0xf] %vm219, %v1922
  %v1939 = vld [vmem:[%s113 + $0x9] sm:$0xff]
  %v1940 = vld [vmem:[%s113 + $0x21] sm:$0xff]
  %v1941 = vld [vmem:[%s113 + $0x39] sm:$0xff]
  %v1942 = vld [vmem:[%s113 + $0x51] sm:$0xff]
  %v1943 = vld [vmem:[%s113 + $0x69] sm:$0xff]
  %v1944 = vld [vmem:[%s113 + $0x81] sm:$0xff]
  %v1945 = vld [vmem:[%s113 + $0x99] sm:$0xff]
  %v1946 = vld [vmem:[%s113 + $0xb1] sm:$0xff]
  %v1947 = vpack.c.bf16 %v1940, %v1939
  %v1948 = vpack.c.bf16 %v1942, %v1941
  %v1949 = vpack.c.bf16 %v1944, %v1943
  %v1950 = vpack.c.bf16 %v1946, %v1945
  %v1955 = vunpack.c.l.b16 %v1947
  %v1956 = vunpack.c.h.b16 %v1947
  %v1957 = vunpack.c.l.b16 %v1948
  %v1958 = vunpack.c.h.b16 %v1948
  %v1959 = vunpack.c.l.b16 %v1949
  %v1960 = vunpack.c.h.b16 %v1949
  %v1961 = vunpack.c.l.b16 %v1950
  %v1962 = vunpack.c.h.b16 %v1950
  %v1963 = vpack.c.b16 %v1955, %v1955
  %v1964 = vpack.c.b16 %v1956, %v1956
  %v1965 = vpack.c.b16 %v1957, %v1957
  %v1966 = vpack.c.b16 %v1958, %v1958
  %v1967 = vpack.c.b16 %v1959, %v1959
  %v1968 = vpack.c.b16 %v1960, %v1960
  %v1969 = vpack.c.b16 %v1961, %v1961
  %v1970 = vpack.c.b16 %v1962, %v1962
  %1971 = vrot.lane.b32.xlu0 %v1963, 64
  %v1972 = vpop.permute.xlu0 %1971
  %1973 = vrot.lane.b32.xlu0 %v1964, 64
  %v1974 = vpop.permute.xlu0 %1973
  %1975 = vrot.lane.b32.xlu0 %v1965, 64
  %v1976 = vpop.permute.xlu0 %1975
  %1977 = vrot.lane.b32.xlu0 %v1966, 64
  %v1978 = vpop.permute.xlu0 %1977
  %1979 = vrot.lane.b32.xlu0 %v1967, 64
  %v1980 = vpop.permute.xlu0 %1979
  %1981 = vrot.lane.b32.xlu0 %v1968, 64
  %v1982 = vpop.permute.xlu0 %1981
  %1983 = vrot.lane.b32.xlu0 %v1969, 64
  %v1984 = vpop.permute.xlu0 %1983
  %1985 = vrot.lane.b32.xlu0 %v1970, 64
  %v1986 = vpop.permute.xlu0 %1985
  %1995 = vst.msk [vmem:[#allocation3 + $0xe0] sm:$0xf] %vm284, %v1972
  %1996 = vst.msk [vmem:[#allocation3 + $0xfc] sm:$0xf] %vm284, %v1974
  %1997 = vst.msk [vmem:[#allocation3 + $0x118] sm:$0xf] %vm284, %v1976
  %1998 = vst.msk [vmem:[#allocation3 + $0x134] sm:$0xf] %vm284, %v1978
  %1999 = vst.msk [vmem:[#allocation3 + $0x150] sm:$0xf] %vm284, %v1980
  %2000 = vst.msk [vmem:[#allocation3 + $0x16c] sm:$0xf] %vm284, %v1982
  %2001 = vst.msk [vmem:[#allocation3 + $0x188] sm:$0xf] %vm284, %v1984
  %2002 = vst.msk [vmem:[#allocation3 + $0x1a4] sm:$0xf] %vm284, %v1986
  %v2003 = vld [vmem:[%s104 + $0x7] sm:$0xff]
  %v2004 = vld [vmem:[%s104 + $0x1f] sm:$0xff]
  %v2005 = vld [vmem:[%s104 + $0x37] sm:$0xff]
  %v2006 = vld [vmem:[%s104 + $0x4f] sm:$0xff]
  %v2007 = vld [vmem:[%s104 + $0x67] sm:$0xff]
  %v2008 = vld [vmem:[%s104 + $0x7f] sm:$0xff]
  %v2009 = vld [vmem:[%s104 + $0x97] sm:$0xff]
  %v2010 = vld [vmem:[%s104 + $0xaf] sm:$0xff]
  %v2011 = vpack.c.bf16 %v2004, %v2003
  %v2012 = vpack.c.bf16 %v2006, %v2005
  %v2013 = vpack.c.bf16 %v2008, %v2007
  %v2014 = vpack.c.bf16 %v2010, %v2009
  %v2019 = vunpack.c.l.b16 %v2011
  %v2020 = vunpack.c.h.b16 %v2011
  %v2021 = vunpack.c.l.b16 %v2012
  %v2022 = vunpack.c.h.b16 %v2012
  %v2023 = vunpack.c.l.b16 %v2013
  %v2024 = vunpack.c.h.b16 %v2013
  %v2025 = vunpack.c.l.b16 %v2014
  %v2026 = vunpack.c.h.b16 %v2014
  %v2027 = vpack.c.b16 %v2019, %v2019
  %v2028 = vpack.c.b16 %v2020, %v2020
  %v2029 = vpack.c.b16 %v2021, %v2021
  %v2030 = vpack.c.b16 %v2022, %v2022
  %v2031 = vpack.c.b16 %v2023, %v2023
  %v2032 = vpack.c.b16 %v2024, %v2024
  %v2033 = vpack.c.b16 %v2025, %v2025
  %v2034 = vpack.c.b16 %v2026, %v2026
  %2035 = vrot.lane.b32.xlu0 %v2027, 96
  %v2036 = vpop.permute.xlu0 %2035
  %2037 = vrot.lane.b32.xlu0 %v2028, 96
  %v2038 = vpop.permute.xlu0 %2037
  %2039 = vrot.lane.b32.xlu0 %v2029, 96
  %v2040 = vpop.permute.xlu0 %2039
  %2041 = vrot.lane.b32.xlu0 %v2030, 96
  %v2042 = vpop.permute.xlu0 %2041
  %2043 = vrot.lane.b32.xlu0 %v2031, 96
  %v2044 = vpop.permute.xlu0 %2043
  %2045 = vrot.lane.b32.xlu0 %v2032, 96
  %v2046 = vpop.permute.xlu0 %2045
  %2047 = vrot.lane.b32.xlu0 %v2033, 96
  %v2048 = vpop.permute.xlu0 %2047
  %2049 = vrot.lane.b32.xlu0 %v2034, 96
  %v2050 = vpop.permute.xlu0 %2049
  %2059 = vst.msk [vmem:[#allocation3 + $0xe0] sm:$0xf] %vm349, %v2036
  %2060 = vst.msk [vmem:[#allocation3 + $0xfc] sm:$0xf] %vm349, %v2038
  %2061 = vst.msk [vmem:[#allocation3 + $0x118] sm:$0xf] %vm349, %v2040
  %2062 = vst.msk [vmem:[#allocation3 + $0x134] sm:$0xf] %vm349, %v2042
  %2063 = vst.msk [vmem:[#allocation3 + $0x150] sm:$0xf] %vm349, %v2044
  %2064 = vst.msk [vmem:[#allocation3 + $0x16c] sm:$0xf] %vm349, %v2046
  %2065 = vst.msk [vmem:[#allocation3 + $0x188] sm:$0xf] %vm349, %v2048
  %2066 = vst.msk [vmem:[#allocation3 + $0x1a4] sm:$0xf] %vm349, %v2050
  %v2067 = vld [vmem:[%s104 + $0x8] sm:$0xff]
  %v2068 = vld [vmem:[%s104 + $0x20] sm:$0xff]
  %v2069 = vld [vmem:[%s104 + $0x38] sm:$0xff]
  %v2070 = vld [vmem:[%s104 + $0x50] sm:$0xff]
  %v2071 = vld [vmem:[%s104 + $0x68] sm:$0xff]
  %v2072 = vld [vmem:[%s104 + $0x80] sm:$0xff]
  %v2073 = vld [vmem:[%s104 + $0x98] sm:$0xff]
  %v2074 = vld [vmem:[%s104 + $0xb0] sm:$0xff]
  %v2075 = vpack.c.bf16 %v2068, %v2067
  %v2076 = vpack.c.bf16 %v2070, %v2069
  %v2077 = vpack.c.bf16 %v2072, %v2071
  %v2078 = vpack.c.bf16 %v2074, %v2073
  %v2083 = vunpack.c.l.b16 %v2075
  %v2084 = vunpack.c.h.b16 %v2075
  %v2085 = vunpack.c.l.b16 %v2076
  %v2086 = vunpack.c.h.b16 %v2076
  %v2087 = vunpack.c.l.b16 %v2077
  %v2088 = vunpack.c.h.b16 %v2077
  %v2089 = vunpack.c.l.b16 %v2078
  %v2090 = vunpack.c.h.b16 %v2078
  %v2091 = vpack.c.b16 %v2083, %v2083
  %v2092 = vpack.c.b16 %v2084, %v2084
  %v2093 = vpack.c.b16 %v2085, %v2085
  %v2094 = vpack.c.b16 %v2086, %v2086
  %v2095 = vpack.c.b16 %v2087, %v2087
  %v2096 = vpack.c.b16 %v2088, %v2088
  %v2097 = vpack.c.b16 %v2089, %v2089
  %v2098 = vpack.c.b16 %v2090, %v2090
  %2107 = vst.msk [vmem:[#allocation3 + $0xe4] sm:$0xf] %vm154, %v2091
  %2108 = vst.msk [vmem:[#allocation3 + $0x100] sm:$0xf] %vm154, %v2092
  %2109 = vst.msk [vmem:[#allocation3 + $0x11c] sm:$0xf] %vm154, %v2093
  %2110 = vst.msk [vmem:[#allocation3 + $0x138] sm:$0xf] %vm154, %v2094
  %2111 = vst.msk [vmem:[#allocation3 + $0x154] sm:$0xf] %vm154, %v2095
  %2112 = vst.msk [vmem:[#allocation3 + $0x170] sm:$0xf] %vm154, %v2096
  %2113 = vst.msk [vmem:[#allocation3 + $0x18c] sm:$0xf] %vm154, %v2097
  %2114 = vst.msk [vmem:[#allocation3 + $0x1a8] sm:$0xf] %vm154, %v2098
  %v2115 = vld [vmem:[%s104 + $0x9] sm:$0xff]
  %v2116 = vld [vmem:[%s104 + $0x21] sm:$0xff]
  %v2117 = vld [vmem:[%s104 + $0x39] sm:$0xff]
  %v2118 = vld [vmem:[%s104 + $0x51] sm:$0xff]
  %v2119 = vld [vmem:[%s104 + $0x69] sm:$0xff]
  %v2120 = vld [vmem:[%s104 + $0x81] sm:$0xff]
  %v2121 = vld [vmem:[%s104 + $0x99] sm:$0xff]
  %v2122 = vld [vmem:[%s104 + $0xb1] sm:$0xff]
  %v2123 = vpack.c.bf16 %v2116, %v2115
  %v2124 = vpack.c.bf16 %v2118, %v2117
  %v2125 = vpack.c.bf16 %v2120, %v2119
  %v2126 = vpack.c.bf16 %v2122, %v2121
  %v2131 = vunpack.c.l.b16 %v2123
  %v2132 = vunpack.c.h.b16 %v2123
  %v2133 = vunpack.c.l.b16 %v2124
  %v2134 = vunpack.c.h.b16 %v2124
  %v2135 = vunpack.c.l.b16 %v2125
  %v2136 = vunpack.c.h.b16 %v2125
  %v2137 = vunpack.c.l.b16 %v2126
  %v2138 = vunpack.c.h.b16 %v2126
  %v2139 = vpack.c.b16 %v2131, %v2131
  %v2140 = vpack.c.b16 %v2132, %v2132
  %v2141 = vpack.c.b16 %v2133, %v2133
  %v2142 = vpack.c.b16 %v2134, %v2134
  %v2143 = vpack.c.b16 %v2135, %v2135
  %v2144 = vpack.c.b16 %v2136, %v2136
  %v2145 = vpack.c.b16 %v2137, %v2137
  %v2146 = vpack.c.b16 %v2138, %v2138
  %2147 = vrot.lane.b32.xlu0 %v2139, 32
  %v2148 = vpop.permute.xlu0 %2147
  %2149 = vrot.lane.b32.xlu0 %v2140, 32
  %v2150 = vpop.permute.xlu0 %2149
  %2151 = vrot.lane.b32.xlu0 %v2141, 32
  %v2152 = vpop.permute.xlu0 %2151
  %2153 = vrot.lane.b32.xlu0 %v2142, 32
  %v2154 = vpop.permute.xlu0 %2153
  %2155 = vrot.lane.b32.xlu0 %v2143, 32
  %v2156 = vpop.permute.xlu0 %2155
  %2157 = vrot.lane.b32.xlu0 %v2144, 32
  %v2158 = vpop.permute.xlu0 %2157
  %2159 = vrot.lane.b32.xlu0 %v2145, 32
  %v2160 = vpop.permute.xlu0 %2159
  %2161 = vrot.lane.b32.xlu0 %v2146, 32
  %v2162 = vpop.permute.xlu0 %2161
  %2171 = vst.msk [vmem:[#allocation3 + $0xe4] sm:$0xf] %vm219, %v2148
  %2172 = vst.msk [vmem:[#allocation3 + $0x100] sm:$0xf] %vm219, %v2150
  %2173 = vst.msk [vmem:[#allocation3 + $0x11c] sm:$0xf] %vm219, %v2152
  %2174 = vst.msk [vmem:[#allocation3 + $0x138] sm:$0xf] %vm219, %v2154
  %2175 = vst.msk [vmem:[#allocation3 + $0x154] sm:$0xf] %vm219, %v2156
  %2176 = vst.msk [vmem:[#allocation3 + $0x170] sm:$0xf] %vm219, %v2158
  %2177 = vst.msk [vmem:[#allocation3 + $0x18c] sm:$0xf] %vm219, %v2160
  %2178 = vst.msk [vmem:[#allocation3 + $0x1a8] sm:$0xf] %vm219, %v2162
  %v2179 = vld [vmem:[%s470 + $0x7] sm:$0xff]
  %v2180 = vld [vmem:[%s470 + $0x1f] sm:$0xff]
  %v2181 = vld [vmem:[%s470 + $0x37] sm:$0xff]
  %v2182 = vld [vmem:[%s470 + $0x4f] sm:$0xff]
  %v2183 = vld [vmem:[%s470 + $0x67] sm:$0xff]
  %v2184 = vld [vmem:[%s470 + $0x7f] sm:$0xff]
  %v2185 = vld [vmem:[%s470 + $0x97] sm:$0xff]
  %v2186 = vld [vmem:[%s470 + $0xaf] sm:$0xff]
  %v2187 = vpack.c.bf16 %v2180, %v2179
  %v2188 = vpack.c.bf16 %v2182, %v2181
  %v2189 = vpack.c.bf16 %v2184, %v2183
  %v2190 = vpack.c.bf16 %v2186, %v2185
  %v2195 = vunpack.c.l.b16 %v2187
  %v2196 = vunpack.c.h.b16 %v2187
  %v2197 = vunpack.c.l.b16 %v2188
  %v2198 = vunpack.c.h.b16 %v2188
  %v2199 = vunpack.c.l.b16 %v2189
  %v2200 = vunpack.c.h.b16 %v2189
  %v2201 = vunpack.c.l.b16 %v2190
  %v2202 = vunpack.c.h.b16 %v2190
  %v2203 = vpack.c.b16 %v2195, %v2195
  %v2204 = vpack.c.b16 %v2196, %v2196
  %v2205 = vpack.c.b16 %v2197, %v2197
  %v2206 = vpack.c.b16 %v2198, %v2198
  %v2207 = vpack.c.b16 %v2199, %v2199
  %v2208 = vpack.c.b16 %v2200, %v2200
  %v2209 = vpack.c.b16 %v2201, %v2201
  %v2210 = vpack.c.b16 %v2202, %v2202
  %2211 = vrot.lane.b32.xlu0 %v2203, 64
  %v2212 = vpop.permute.xlu0 %2211
  %2213 = vrot.lane.b32.xlu0 %v2204, 64
  %v2214 = vpop.permute.xlu0 %2213
  %2215 = vrot.lane.b32.xlu0 %v2205, 64
  %v2216 = vpop.permute.xlu0 %2215
  %2217 = vrot.lane.b32.xlu0 %v2206, 64
  %v2218 = vpop.permute.xlu0 %2217
  %2219 = vrot.lane.b32.xlu0 %v2207, 64
  %v2220 = vpop.permute.xlu0 %2219
  %2221 = vrot.lane.b32.xlu0 %v2208, 64
  %v2222 = vpop.permute.xlu0 %2221
  %2223 = vrot.lane.b32.xlu0 %v2209, 64
  %v2224 = vpop.permute.xlu0 %2223
  %2225 = vrot.lane.b32.xlu0 %v2210, 64
  %v2226 = vpop.permute.xlu0 %2225
  %2235 = vst.msk [vmem:[#allocation3 + $0xe4] sm:$0xf] %vm284, %v2212
  %2236 = vst.msk [vmem:[#allocation3 + $0x100] sm:$0xf] %vm284, %v2214
  %2237 = vst.msk [vmem:[#allocation3 + $0x11c] sm:$0xf] %vm284, %v2216
  %2238 = vst.msk [vmem:[#allocation3 + $0x138] sm:$0xf] %vm284, %v2218
  %2239 = vst.msk [vmem:[#allocation3 + $0x154] sm:$0xf] %vm284, %v2220
  %2240 = vst.msk [vmem:[#allocation3 + $0x170] sm:$0xf] %vm284, %v2222
  %2241 = vst.msk [vmem:[#allocation3 + $0x18c] sm:$0xf] %vm284, %v2224
  %2242 = vst.msk [vmem:[#allocation3 + $0x1a8] sm:$0xf] %vm284, %v2226
  %v2243 = vld [vmem:[%s470 + $0x8] sm:$0xff]
  %v2244 = vld [vmem:[%s470 + $0x20] sm:$0xff]
  %v2245 = vld [vmem:[%s470 + $0x38] sm:$0xff]
  %v2246 = vld [vmem:[%s470 + $0x50] sm:$0xff]
  %v2247 = vld [vmem:[%s470 + $0x68] sm:$0xff]
  %v2248 = vld [vmem:[%s470 + $0x80] sm:$0xff]
  %v2249 = vld [vmem:[%s470 + $0x98] sm:$0xff]
  %v2250 = vld [vmem:[%s470 + $0xb0] sm:$0xff]
  %v2251 = vpack.c.bf16 %v2244, %v2243
  %v2252 = vpack.c.bf16 %v2246, %v2245
  %v2253 = vpack.c.bf16 %v2248, %v2247
  %v2254 = vpack.c.bf16 %v2250, %v2249
  %v2259 = vunpack.c.l.b16 %v2251
  %v2260 = vunpack.c.h.b16 %v2251
  %v2261 = vunpack.c.l.b16 %v2252
  %v2262 = vunpack.c.h.b16 %v2252
  %v2263 = vunpack.c.l.b16 %v2253
  %v2264 = vunpack.c.h.b16 %v2253
  %v2265 = vunpack.c.l.b16 %v2254
  %v2266 = vunpack.c.h.b16 %v2254
  %v2267 = vpack.c.b16 %v2259, %v2259
  %v2268 = vpack.c.b16 %v2260, %v2260
  %v2269 = vpack.c.b16 %v2261, %v2261
  %v2270 = vpack.c.b16 %v2262, %v2262
  %v2271 = vpack.c.b16 %v2263, %v2263
  %v2272 = vpack.c.b16 %v2264, %v2264
  %v2273 = vpack.c.b16 %v2265, %v2265
  %v2274 = vpack.c.b16 %v2266, %v2266
  %2275 = vrot.lane.b32.xlu0 %v2267, 96
  %v2276 = vpop.permute.xlu0 %2275
  %2277 = vrot.lane.b32.xlu0 %v2268, 96
  %v2278 = vpop.permute.xlu0 %2277
  %2279 = vrot.lane.b32.xlu0 %v2269, 96
  %v2280 = vpop.permute.xlu0 %2279
  %2281 = vrot.lane.b32.xlu0 %v2270, 96
  %v2282 = vpop.permute.xlu0 %2281
  %2283 = vrot.lane.b32.xlu0 %v2271, 96
  %v2284 = vpop.permute.xlu0 %2283
  %2285 = vrot.lane.b32.xlu0 %v2272, 96
  %v2286 = vpop.permute.xlu0 %2285
  %2287 = vrot.lane.b32.xlu0 %v2273, 96
  %v2288 = vpop.permute.xlu0 %2287
  %2289 = vrot.lane.b32.xlu0 %v2274, 96
  %v2290 = vpop.permute.xlu0 %2289
  %2299 = vst.msk [vmem:[#allocation3 + $0xe4] sm:$0xf] %vm349, %v2276
  %2300 = vst.msk [vmem:[#allocation3 + $0x100] sm:$0xf] %vm349, %v2278
  %2301 = vst.msk [vmem:[#allocation3 + $0x11c] sm:$0xf] %vm349, %v2280
  %2302 = vst.msk [vmem:[#allocation3 + $0x138] sm:$0xf] %vm349, %v2282
  %2303 = vst.msk [vmem:[#allocation3 + $0x154] sm:$0xf] %vm349, %v2284
  %2304 = vst.msk [vmem:[#allocation3 + $0x170] sm:$0xf] %vm349, %v2286
  %2305 = vst.msk [vmem:[#allocation3 + $0x18c] sm:$0xf] %vm349, %v2288
  %2306 = vst.msk [vmem:[#allocation3 + $0x1a8] sm:$0xf] %vm349, %v2290
  %v2307 = vld [vmem:[%s470 + $0x9] sm:$0xff]
  %v2308 = vld [vmem:[%s470 + $0x21] sm:$0xff]
  %v2309 = vld [vmem:[%s470 + $0x39] sm:$0xff]
  %v2310 = vld [vmem:[%s470 + $0x51] sm:$0xff]
  %v2311 = vld [vmem:[%s470 + $0x69] sm:$0xff]
  %v2312 = vld [vmem:[%s470 + $0x81] sm:$0xff]
  %v2313 = vld [vmem:[%s470 + $0x99] sm:$0xff]
  %v2314 = vld [vmem:[%s470 + $0xb1] sm:$0xff]
  %v2315 = vpack.c.bf16 %v2308, %v2307
  %v2316 = vpack.c.bf16 %v2310, %v2309
  %v2317 = vpack.c.bf16 %v2312, %v2311
  %v2318 = vpack.c.bf16 %v2314, %v2313
  %v2323 = vunpack.c.l.b16 %v2315
  %v2324 = vunpack.c.h.b16 %v2315
  %v2325 = vunpack.c.l.b16 %v2316
  %v2326 = vunpack.c.h.b16 %v2316
  %v2327 = vunpack.c.l.b16 %v2317
  %v2328 = vunpack.c.h.b16 %v2317
  %v2329 = vunpack.c.l.b16 %v2318
  %v2330 = vunpack.c.h.b16 %v2318
  %v2331 = vpack.c.b16 %v2323, %v2323
  %v2332 = vpack.c.b16 %v2324, %v2324
  %v2333 = vpack.c.b16 %v2325, %v2325
  %v2334 = vpack.c.b16 %v2326, %v2326
  %v2335 = vpack.c.b16 %v2327, %v2327
  %v2336 = vpack.c.b16 %v2328, %v2328
  %v2337 = vpack.c.b16 %v2329, %v2329
  %v2338 = vpack.c.b16 %v2330, %v2330
  %2347 = vst.msk [vmem:[#allocation3 + $0xe8] sm:$0xf] %vm154, %v2331
  %2348 = vst.msk [vmem:[#allocation3 + $0x104] sm:$0xf] %vm154, %v2332
  %2349 = vst.msk [vmem:[#allocation3 + $0x120] sm:$0xf] %vm154, %v2333
  %2350 = vst.msk [vmem:[#allocation3 + $0x13c] sm:$0xf] %vm154, %v2334
  %2351 = vst.msk [vmem:[#allocation3 + $0x158] sm:$0xf] %vm154, %v2335
  %2352 = vst.msk [vmem:[#allocation3 + $0x174] sm:$0xf] %vm154, %v2336
  %2353 = vst.msk [vmem:[#allocation3 + $0x190] sm:$0xf] %vm154, %v2337
  %2354 = vst.msk [vmem:[#allocation3 + $0x1ac] sm:$0xf] %vm154, %v2338
  %v2355 = vld [vmem:[%s104 + $0x8] sm:$0xff]
  %v2356 = vld [vmem:[%s104 + $0x20] sm:$0xff]
  %v2357 = vld [vmem:[%s104 + $0x38] sm:$0xff]
  %v2358 = vld [vmem:[%s104 + $0x50] sm:$0xff]
  %v2359 = vld [vmem:[%s104 + $0x68] sm:$0xff]
  %v2360 = vld [vmem:[%s104 + $0x80] sm:$0xff]
  %v2361 = vld [vmem:[%s104 + $0x98] sm:$0xff]
  %v2362 = vld [vmem:[%s104 + $0xb0] sm:$0xff]
  %v2363 = vpack.c.bf16 %v2356, %v2355
  %v2364 = vpack.c.bf16 %v2358, %v2357
  %v2365 = vpack.c.bf16 %v2360, %v2359
  %v2366 = vpack.c.bf16 %v2362, %v2361
  %v2371 = vunpack.c.l.b16 %v2363
  %v2372 = vunpack.c.h.b16 %v2363
  %v2373 = vunpack.c.l.b16 %v2364
  %v2374 = vunpack.c.h.b16 %v2364
  %v2375 = vunpack.c.l.b16 %v2365
  %v2376 = vunpack.c.h.b16 %v2365
  %v2377 = vunpack.c.l.b16 %v2366
  %v2378 = vunpack.c.h.b16 %v2366
  %v2379 = vpack.c.b16 %v2371, %v2371
  %v2380 = vpack.c.b16 %v2372, %v2372
  %v2381 = vpack.c.b16 %v2373, %v2373
  %v2382 = vpack.c.b16 %v2374, %v2374
  %v2383 = vpack.c.b16 %v2375, %v2375
  %v2384 = vpack.c.b16 %v2376, %v2376
  %v2385 = vpack.c.b16 %v2377, %v2377
  %v2386 = vpack.c.b16 %v2378, %v2378
  %2387 = vrot.lane.b32.xlu0 %v2379, 32
  %v2388 = vpop.permute.xlu0 %2387
  %2389 = vrot.lane.b32.xlu0 %v2380, 32
  %v2390 = vpop.permute.xlu0 %2389
  %2391 = vrot.lane.b32.xlu0 %v2381, 32
  %v2392 = vpop.permute.xlu0 %2391
  %2393 = vrot.lane.b32.xlu0 %v2382, 32
  %v2394 = vpop.permute.xlu0 %2393
  %2395 = vrot.lane.b32.xlu0 %v2383, 32
  %v2396 = vpop.permute.xlu0 %2395
  %2397 = vrot.lane.b32.xlu0 %v2384, 32
  %v2398 = vpop.permute.xlu0 %2397
  %2399 = vrot.lane.b32.xlu0 %v2385, 32
  %v2400 = vpop.permute.xlu0 %2399
  %2401 = vrot.lane.b32.xlu0 %v2386, 32
  %v2402 = vpop.permute.xlu0 %2401
  %2411 = vst.msk [vmem:[#allocation3 + $0xe8] sm:$0xf] %vm219, %v2388
  %2412 = vst.msk [vmem:[#allocation3 + $0x104] sm:$0xf] %vm219, %v2390
  %2413 = vst.msk [vmem:[#allocation3 + $0x120] sm:$0xf] %vm219, %v2392
  %2414 = vst.msk [vmem:[#allocation3 + $0x13c] sm:$0xf] %vm219, %v2394
  %2415 = vst.msk [vmem:[#allocation3 + $0x158] sm:$0xf] %vm219, %v2396
  %2416 = vst.msk [vmem:[#allocation3 + $0x174] sm:$0xf] %vm219, %v2398
  %2417 = vst.msk [vmem:[#allocation3 + $0x190] sm:$0xf] %vm219, %v2400
  %2418 = vst.msk [vmem:[#allocation3 + $0x1ac] sm:$0xf] %vm219, %v2402
  %v2419 = vld [vmem:[%s711 + $0x4] sm:$0xff]
  %v2420 = vld [vmem:[%s711 + $0x1c] sm:$0xff]
  %v2421 = vld [vmem:[%s711 + $0x34] sm:$0xff]
  %v2422 = vld [vmem:[%s711 + $0x4c] sm:$0xff]
  %v2423 = vld [vmem:[%s711 + $0x64] sm:$0xff]
  %v2424 = vld [vmem:[%s711 + $0x7c] sm:$0xff]
  %v2425 = vld [vmem:[%s711 + $0x94] sm:$0xff]
  %v2426 = vld [vmem:[%s711 + $0xac] sm:$0xff]
  %v2427 = vpack.c.bf16 %v2420, %v2419
  %v2428 = vpack.c.bf16 %v2422, %v2421
  %v2429 = vpack.c.bf16 %v2424, %v2423
  %v2430 = vpack.c.bf16 %v2426, %v2425
  %v2435 = vunpack.c.l.b16 %v2427
  %v2436 = vunpack.c.h.b16 %v2427
  %v2437 = vunpack.c.l.b16 %v2428
  %v2438 = vunpack.c.h.b16 %v2428
  %v2439 = vunpack.c.l.b16 %v2429
  %v2440 = vunpack.c.h.b16 %v2429
  %v2441 = vunpack.c.l.b16 %v2430
  %v2442 = vunpack.c.h.b16 %v2430
  %v2443 = vpack.c.b16 %v2435, %v2435
  %v2444 = vpack.c.b16 %v2436, %v2436
  %v2445 = vpack.c.b16 %v2437, %v2437
  %v2446 = vpack.c.b16 %v2438, %v2438
  %v2447 = vpack.c.b16 %v2439, %v2439
  %v2448 = vpack.c.b16 %v2440, %v2440
  %v2449 = vpack.c.b16 %v2441, %v2441
  %v2450 = vpack.c.b16 %v2442, %v2442
  %2451 = vrot.lane.b32.xlu0 %v2443, 64
  %v2452 = vpop.permute.xlu0 %2451
  %2453 = vrot.lane.b32.xlu0 %v2444, 64
  %v2454 = vpop.permute.xlu0 %2453
  %2455 = vrot.lane.b32.xlu0 %v2445, 64
  %v2456 = vpop.permute.xlu0 %2455
  %2457 = vrot.lane.b32.xlu0 %v2446, 64
  %v2458 = vpop.permute.xlu0 %2457
  %2459 = vrot.lane.b32.xlu0 %v2447, 64
  %v2460 = vpop.permute.xlu0 %2459
  %2461 = vrot.lane.b32.xlu0 %v2448, 64
  %v2462 = vpop.permute.xlu0 %2461
  %2463 = vrot.lane.b32.xlu0 %v2449, 64
  %v2464 = vpop.permute.xlu0 %2463
  %2465 = vrot.lane.b32.xlu0 %v2450, 64
  %v2466 = vpop.permute.xlu0 %2465
  %2475 = vst.msk [vmem:[#allocation3 + $0xe8] sm:$0xf] %vm284, %v2452
  %2476 = vst.msk [vmem:[#allocation3 + $0x104] sm:$0xf] %vm284, %v2454
  %2477 = vst.msk [vmem:[#allocation3 + $0x120] sm:$0xf] %vm284, %v2456
  %2478 = vst.msk [vmem:[#allocation3 + $0x13c] sm:$0xf] %vm284, %v2458
  %2479 = vst.msk [vmem:[#allocation3 + $0x158] sm:$0xf] %vm284, %v2460
  %2480 = vst.msk [vmem:[#allocation3 + $0x174] sm:$0xf] %vm284, %v2462
  %2481 = vst.msk [vmem:[#allocation3 + $0x190] sm:$0xf] %vm284, %v2464
  %2482 = vst.msk [vmem:[#allocation3 + $0x1ac] sm:$0xf] %vm284, %v2466
  %v2483 = vld [vmem:[%s711 + $0x8] sm:$0xff]
  %v2484 = vld [vmem:[%s711 + $0x20] sm:$0xff]
  %v2485 = vld [vmem:[%s711 + $0x38] sm:$0xff]
  %v2486 = vld [vmem:[%s711 + $0x50] sm:$0xff]
  %v2487 = vld [vmem:[%s711 + $0x68] sm:$0xff]
  %v2488 = vld [vmem:[%s711 + $0x80] sm:$0xff]
  %v2489 = vld [vmem:[%s711 + $0x98] sm:$0xff]
  %v2490 = vld [vmem:[%s711 + $0xb0] sm:$0xff]
  %v2491 = vpack.c.bf16 %v2484, %v2483
  %v2492 = vpack.c.bf16 %v2486, %v2485
  %v2493 = vpack.c.bf16 %v2488, %v2487
  %v2494 = vpack.c.bf16 %v2490, %v2489
  %v2499 = vunpack.c.l.b16 %v2491
  %v2500 = vunpack.c.h.b16 %v2491
  %v2501 = vunpack.c.l.b16 %v2492
  %v2502 = vunpack.c.h.b16 %v2492
  %v2503 = vunpack.c.l.b16 %v2493
  %v2504 = vunpack.c.h.b16 %v2493
  %v2505 = vunpack.c.l.b16 %v2494
  %v2506 = vunpack.c.h.b16 %v2494
  %v2507 = vpack.c.b16 %v2499, %v2499
  %v2508 = vpack.c.b16 %v2500, %v2500
  %v2509 = vpack.c.b16 %v2501, %v2501
  %v2510 = vpack.c.b16 %v2502, %v2502
  %v2511 = vpack.c.b16 %v2503, %v2503
  %v2512 = vpack.c.b16 %v2504, %v2504
  %v2513 = vpack.c.b16 %v2505, %v2505
  %v2514 = vpack.c.b16 %v2506, %v2506
  %2515 = vrot.lane.b32.xlu0 %v2507, 96
  %v2516 = vpop.permute.xlu0 %2515
  %2517 = vrot.lane.b32.xlu0 %v2508, 96
  %v2518 = vpop.permute.xlu0 %2517
  %2519 = vrot.lane.b32.xlu0 %v2509, 96
  %v2520 = vpop.permute.xlu0 %2519
  %2521 = vrot.lane.b32.xlu0 %v2510, 96
  %v2522 = vpop.permute.xlu0 %2521
  %2523 = vrot.lane.b32.xlu0 %v2511, 96
  %v2524 = vpop.permute.xlu0 %2523
  %2525 = vrot.lane.b32.xlu0 %v2512, 96
  %v2526 = vpop.permute.xlu0 %2525
  %2527 = vrot.lane.b32.xlu0 %v2513, 96
  %v2528 = vpop.permute.xlu0 %2527
  %2529 = vrot.lane.b32.xlu0 %v2514, 96
  %v2530 = vpop.permute.xlu0 %2529
  %2539 = vst.msk [vmem:[#allocation3 + $0xe8] sm:$0xf] %vm349, %v2516
  %2540 = vst.msk [vmem:[#allocation3 + $0x104] sm:$0xf] %vm349, %v2518
  %2541 = vst.msk [vmem:[#allocation3 + $0x120] sm:$0xf] %vm349, %v2520
  %2542 = vst.msk [vmem:[#allocation3 + $0x13c] sm:$0xf] %vm349, %v2522
  %2543 = vst.msk [vmem:[#allocation3 + $0x158] sm:$0xf] %vm349, %v2524
  %2544 = vst.msk [vmem:[#allocation3 + $0x174] sm:$0xf] %vm349, %v2526
  %2545 = vst.msk [vmem:[#allocation3 + $0x190] sm:$0xf] %vm349, %v2528
  %2546 = vst.msk [vmem:[#allocation3 + $0x1ac] sm:$0xf] %vm349, %v2530
  %v2547 = vld [vmem:[%s711 + $0xc] sm:$0xff]
  %v2548 = vld [vmem:[%s711 + $0x24] sm:$0xff]
  %v2549 = vld [vmem:[%s711 + $0x3c] sm:$0xff]
  %v2550 = vld [vmem:[%s711 + $0x54] sm:$0xff]
  %v2551 = vld [vmem:[%s711 + $0x6c] sm:$0xff]
  %v2552 = vld [vmem:[%s711 + $0x84] sm:$0xff]
  %v2553 = vld [vmem:[%s711 + $0x9c] sm:$0xff]
  %v2554 = vld [vmem:[%s711 + $0xb4] sm:$0xff]
  %v2555 = vpack.c.bf16 %v2548, %v2547
  %v2556 = vpack.c.bf16 %v2550, %v2549
  %v2557 = vpack.c.bf16 %v2552, %v2551
  %v2558 = vpack.c.bf16 %v2554, %v2553
  %v2563 = vunpack.c.l.b16 %v2555
  %v2564 = vunpack.c.h.b16 %v2555
  %v2565 = vunpack.c.l.b16 %v2556
  %v2566 = vunpack.c.h.b16 %v2556
  %v2567 = vunpack.c.l.b16 %v2557
  %v2568 = vunpack.c.h.b16 %v2557
  %v2569 = vunpack.c.l.b16 %v2558
  %v2570 = vunpack.c.h.b16 %v2558
  %v2571 = vpack.c.b16 %v2563, %v2563
  %v2572 = vpack.c.b16 %v2564, %v2564
  %v2573 = vpack.c.b16 %v2565, %v2565
  %v2574 = vpack.c.b16 %v2566, %v2566
  %v2575 = vpack.c.b16 %v2567, %v2567
  %v2576 = vpack.c.b16 %v2568, %v2568
  %v2577 = vpack.c.b16 %v2569, %v2569
  %v2578 = vpack.c.b16 %v2570, %v2570
  %2587 = vst.msk [vmem:[#allocation3 + $0xec] sm:$0xf] %vm154, %v2571
  %2588 = vst.msk [vmem:[#allocation3 + $0x108] sm:$0xf] %vm154, %v2572
  %2589 = vst.msk [vmem:[#allocation3 + $0x124] sm:$0xf] %vm154, %v2573
  %2590 = vst.msk [vmem:[#allocation3 + $0x140] sm:$0xf] %vm154, %v2574
  %2591 = vst.msk [vmem:[#allocation3 + $0x15c] sm:$0xf] %vm154, %v2575
  %2592 = vst.msk [vmem:[#allocation3 + $0x178] sm:$0xf] %vm154, %v2576
  %2593 = vst.msk [vmem:[#allocation3 + $0x194] sm:$0xf] %vm154, %v2577
  %2594 = vst.msk [vmem:[#allocation3 + $0x1b0] sm:$0xf] %vm154, %v2578
  %v2595 = vld [vmem:[%s104 + $0x4] sm:$0xff]
  %v2596 = vld [vmem:[%s104 + $0x1c] sm:$0xff]
  %v2597 = vld [vmem:[%s104 + $0x34] sm:$0xff]
  %v2598 = vld [vmem:[%s104 + $0x4c] sm:$0xff]
  %v2599 = vld [vmem:[%s104 + $0x64] sm:$0xff]
  %v2600 = vld [vmem:[%s104 + $0x7c] sm:$0xff]
  %v2601 = vld [vmem:[%s104 + $0x94] sm:$0xff]
  %v2602 = vld [vmem:[%s104 + $0xac] sm:$0xff]
  %v2603 = vpack.c.bf16 %v2596, %v2595
  %v2604 = vpack.c.bf16 %v2598, %v2597
  %v2605 = vpack.c.bf16 %v2600, %v2599
  %v2606 = vpack.c.bf16 %v2602, %v2601
  %v2611 = vunpack.c.l.b16 %v2603
  %v2612 = vunpack.c.h.b16 %v2603
  %v2613 = vunpack.c.l.b16 %v2604
  %v2614 = vunpack.c.h.b16 %v2604
  %v2615 = vunpack.c.l.b16 %v2605
  %v2616 = vunpack.c.h.b16 %v2605
  %v2617 = vunpack.c.l.b16 %v2606
  %v2618 = vunpack.c.h.b16 %v2606
  %v2619 = vpack.c.b16 %v2611, %v2611
  %v2620 = vpack.c.b16 %v2612, %v2612
  %v2621 = vpack.c.b16 %v2613, %v2613
  %v2622 = vpack.c.b16 %v2614, %v2614
  %v2623 = vpack.c.b16 %v2615, %v2615
  %v2624 = vpack.c.b16 %v2616, %v2616
  %v2625 = vpack.c.b16 %v2617, %v2617
  %v2626 = vpack.c.b16 %v2618, %v2618
  %2627 = vrot.lane.b32.xlu0 %v2619, 32
  %v2628 = vpop.permute.xlu0 %2627
  %2629 = vrot.lane.b32.xlu0 %v2620, 32
  %v2630 = vpop.permute.xlu0 %2629
  %2631 = vrot.lane.b32.xlu0 %v2621, 32
  %v2632 = vpop.permute.xlu0 %2631
  %2633 = vrot.lane.b32.xlu0 %v2622, 32
  %v2634 = vpop.permute.xlu0 %2633
  %2635 = vrot.lane.b32.xlu0 %v2623, 32
  %v2636 = vpop.permute.xlu0 %2635
  %2637 = vrot.lane.b32.xlu0 %v2624, 32
  %v2638 = vpop.permute.xlu0 %2637
  %2639 = vrot.lane.b32.xlu0 %v2625, 32
  %v2640 = vpop.permute.xlu0 %2639
  %2641 = vrot.lane.b32.xlu0 %v2626, 32
  %v2642 = vpop.permute.xlu0 %2641
  %2651 = vst.msk [vmem:[#allocation3 + $0xec] sm:$0xf] %vm219, %v2628
  %2652 = vst.msk [vmem:[#allocation3 + $0x108] sm:$0xf] %vm219, %v2630
  %2653 = vst.msk [vmem:[#allocation3 + $0x124] sm:$0xf] %vm219, %v2632
  %2654 = vst.msk [vmem:[#allocation3 + $0x140] sm:$0xf] %vm219, %v2634
  %2655 = vst.msk [vmem:[#allocation3 + $0x15c] sm:$0xf] %vm219, %v2636
  %2656 = vst.msk [vmem:[#allocation3 + $0x178] sm:$0xf] %vm219, %v2638
  %2657 = vst.msk [vmem:[#allocation3 + $0x194] sm:$0xf] %vm219, %v2640
  %2658 = vst.msk [vmem:[#allocation3 + $0x1b0] sm:$0xf] %vm219, %v2642
  %v2659 = vld [vmem:[%s104 + $0x8] sm:$0xff]
  %v2660 = vld [vmem:[%s104 + $0x20] sm:$0xff]
  %v2661 = vld [vmem:[%s104 + $0x38] sm:$0xff]
  %v2662 = vld [vmem:[%s104 + $0x50] sm:$0xff]
  %v2663 = vld [vmem:[%s104 + $0x68] sm:$0xff]
  %v2664 = vld [vmem:[%s104 + $0x80] sm:$0xff]
  %v2665 = vld [vmem:[%s104 + $0x98] sm:$0xff]
  %v2666 = vld [vmem:[%s104 + $0xb0] sm:$0xff]
  %v2667 = vpack.c.bf16 %v2660, %v2659
  %v2668 = vpack.c.bf16 %v2662, %v2661
  %v2669 = vpack.c.bf16 %v2664, %v2663
  %v2670 = vpack.c.bf16 %v2666, %v2665
  %v2675 = vunpack.c.l.b16 %v2667
  %v2676 = vunpack.c.h.b16 %v2667
  %v2677 = vunpack.c.l.b16 %v2668
  %v2678 = vunpack.c.h.b16 %v2668
  %v2679 = vunpack.c.l.b16 %v2669
  %v2680 = vunpack.c.h.b16 %v2669
  %v2681 = vunpack.c.l.b16 %v2670
  %v2682 = vunpack.c.h.b16 %v2670
  %v2683 = vpack.c.b16 %v2675, %v2675
  %v2684 = vpack.c.b16 %v2676, %v2676
  %v2685 = vpack.c.b16 %v2677, %v2677
  %v2686 = vpack.c.b16 %v2678, %v2678
  %v2687 = vpack.c.b16 %v2679, %v2679
  %v2688 = vpack.c.b16 %v2680, %v2680
  %v2689 = vpack.c.b16 %v2681, %v2681
  %v2690 = vpack.c.b16 %v2682, %v2682
  %2691 = vrot.lane.b32.xlu0 %v2683, 64
  %v2692 = vpop.permute.xlu0 %2691
  %2693 = vrot.lane.b32.xlu0 %v2684, 64
  %v2694 = vpop.permute.xlu0 %2693
  %2695 = vrot.lane.b32.xlu0 %v2685, 64
  %v2696 = vpop.permute.xlu0 %2695
  %2697 = vrot.lane.b32.xlu0 %v2686, 64
  %v2698 = vpop.permute.xlu0 %2697
  %2699 = vrot.lane.b32.xlu0 %v2687, 64
  %v2700 = vpop.permute.xlu0 %2699
  %2701 = vrot.lane.b32.xlu0 %v2688, 64
  %v2702 = vpop.permute.xlu0 %2701
  %2703 = vrot.lane.b32.xlu0 %v2689, 64
  %v2704 = vpop.permute.xlu0 %2703
  %2705 = vrot.lane.b32.xlu0 %v2690, 64
  %v2706 = vpop.permute.xlu0 %2705
  %2715 = vst.msk [vmem:[#allocation3 + $0xec] sm:$0xf] %vm284, %v2692
  %2716 = vst.msk [vmem:[#allocation3 + $0x108] sm:$0xf] %vm284, %v2694
  %2717 = vst.msk [vmem:[#allocation3 + $0x124] sm:$0xf] %vm284, %v2696
  %2718 = vst.msk [vmem:[#allocation3 + $0x140] sm:$0xf] %vm284, %v2698
  %2719 = vst.msk [vmem:[#allocation3 + $0x15c] sm:$0xf] %vm284, %v2700
  %2720 = vst.msk [vmem:[#allocation3 + $0x178] sm:$0xf] %vm284, %v2702
  %2721 = vst.msk [vmem:[#allocation3 + $0x194] sm:$0xf] %vm284, %v2704
  %2722 = vst.msk [vmem:[#allocation3 + $0x1b0] sm:$0xf] %vm284, %v2706
  %v2723 = vld [vmem:[%s104 + $0xc] sm:$0xff]
  %v2724 = vld [vmem:[%s104 + $0x24] sm:$0xff]
  %v2725 = vld [vmem:[%s104 + $0x3c] sm:$0xff]
  %v2726 = vld [vmem:[%s104 + $0x54] sm:$0xff]
  %v2727 = vld [vmem:[%s104 + $0x6c] sm:$0xff]
  %v2728 = vld [vmem:[%s104 + $0x84] sm:$0xff]
  %v2729 = vld [vmem:[%s104 + $0x9c] sm:$0xff]
  %v2730 = vld [vmem:[%s104 + $0xb4] sm:$0xff]
  %v2731 = vpack.c.bf16 %v2724, %v2723
  %v2732 = vpack.c.bf16 %v2726, %v2725
  %v2733 = vpack.c.bf16 %v2728, %v2727
  %v2734 = vpack.c.bf16 %v2730, %v2729
  %v2739 = vunpack.c.l.b16 %v2731
  %v2740 = vunpack.c.h.b16 %v2731
  %v2741 = vunpack.c.l.b16 %v2732
  %v2742 = vunpack.c.h.b16 %v2732
  %v2743 = vunpack.c.l.b16 %v2733
  %v2744 = vunpack.c.h.b16 %v2733
  %v2745 = vunpack.c.l.b16 %v2734
  %v2746 = vunpack.c.h.b16 %v2734
  %v2747 = vpack.c.b16 %v2739, %v2739
  %v2748 = vpack.c.b16 %v2740, %v2740
  %v2749 = vpack.c.b16 %v2741, %v2741
  %v2750 = vpack.c.b16 %v2742, %v2742
  %v2751 = vpack.c.b16 %v2743, %v2743
  %v2752 = vpack.c.b16 %v2744, %v2744
  %v2753 = vpack.c.b16 %v2745, %v2745
  %v2754 = vpack.c.b16 %v2746, %v2746
  %2755 = vrot.lane.b32.xlu0 %v2747, 96
  %v2756 = vpop.permute.xlu0 %2755
  %2757 = vrot.lane.b32.xlu0 %v2748, 96
  %v2758 = vpop.permute.xlu0 %2757
  %2759 = vrot.lane.b32.xlu0 %v2749, 96
  %v2760 = vpop.permute.xlu0 %2759
  %2761 = vrot.lane.b32.xlu0 %v2750, 96
  %v2762 = vpop.permute.xlu0 %2761
  %2763 = vrot.lane.b32.xlu0 %v2751, 96
  %v2764 = vpop.permute.xlu0 %2763
  %2765 = vrot.lane.b32.xlu0 %v2752, 96
  %v2766 = vpop.permute.xlu0 %2765
  %2767 = vrot.lane.b32.xlu0 %v2753, 96
  %v2768 = vpop.permute.xlu0 %2767
  %2769 = vrot.lane.b32.xlu0 %v2754, 96
  %v2770 = vpop.permute.xlu0 %2769
  %2779 = vst.msk [vmem:[#allocation3 + $0xec] sm:$0xf] %vm349, %v2756
  %2780 = vst.msk [vmem:[#allocation3 + $0x108] sm:$0xf] %vm349, %v2758
  %2781 = vst.msk [vmem:[#allocation3 + $0x124] sm:$0xf] %vm349, %v2760
  %2782 = vst.msk [vmem:[#allocation3 + $0x140] sm:$0xf] %vm349, %v2762
  %2783 = vst.msk [vmem:[#allocation3 + $0x15c] sm:$0xf] %vm349, %v2764
  %2784 = vst.msk [vmem:[#allocation3 + $0x178] sm:$0xf] %vm349, %v2766
  %2785 = vst.msk [vmem:[#allocation3 + $0x194] sm:$0xf] %vm349, %v2768
  %2786 = vst.msk [vmem:[#allocation3 + $0x1b0] sm:$0xf] %vm349, %v2770
  %v2787 = vld [vmem:[%s1080 + $0x4] sm:$0xff]
  %v2788 = vld [vmem:[%s1080 + $0x1c] sm:$0xff]
  %v2789 = vld [vmem:[%s1080 + $0x34] sm:$0xff]
  %v2790 = vld [vmem:[%s1080 + $0x4c] sm:$0xff]
  %v2791 = vld [vmem:[%s1080 + $0x64] sm:$0xff]
  %v2792 = vld [vmem:[%s1080 + $0x7c] sm:$0xff]
  %v2793 = vld [vmem:[%s1080 + $0x94] sm:$0xff]
  %v2794 = vld [vmem:[%s1080 + $0xac] sm:$0xff]
  %v2795 = vpack.c.bf16 %v2788, %v2787
  %v2796 = vpack.c.bf16 %v2790, %v2789
  %v2797 = vpack.c.bf16 %v2792, %v2791
  %v2798 = vpack.c.bf16 %v2794, %v2793
  %v2803 = vunpack.c.l.b16 %v2795
  %v2804 = vunpack.c.h.b16 %v2795
  %v2805 = vunpack.c.l.b16 %v2796
  %v2806 = vunpack.c.h.b16 %v2796
  %v2807 = vunpack.c.l.b16 %v2797
  %v2808 = vunpack.c.h.b16 %v2797
  %v2809 = vunpack.c.l.b16 %v2798
  %v2810 = vunpack.c.h.b16 %v2798
  %v2811 = vpack.c.b16 %v2803, %v2803
  %v2812 = vpack.c.b16 %v2804, %v2804
  %v2813 = vpack.c.b16 %v2805, %v2805
  %v2814 = vpack.c.b16 %v2806, %v2806
  %v2815 = vpack.c.b16 %v2807, %v2807
  %v2816 = vpack.c.b16 %v2808, %v2808
  %v2817 = vpack.c.b16 %v2809, %v2809
  %v2818 = vpack.c.b16 %v2810, %v2810
  %2827 = vst.msk [vmem:[#allocation3 + $0xf0] sm:$0xf] %vm154, %v2811
  %2828 = vst.msk [vmem:[#allocation3 + $0x10c] sm:$0xf] %vm154, %v2812
  %2829 = vst.msk [vmem:[#allocation3 + $0x128] sm:$0xf] %vm154, %v2813
  %2830 = vst.msk [vmem:[#allocation3 + $0x144] sm:$0xf] %vm154, %v2814
  %2831 = vst.msk [vmem:[#allocation3 + $0x160] sm:$0xf] %vm154, %v2815
  %2832 = vst.msk [vmem:[#allocation3 + $0x17c] sm:$0xf] %vm154, %v2816
  %2833 = vst.msk [vmem:[#allocation3 + $0x198] sm:$0xf] %vm154, %v2817
  %2834 = vst.msk [vmem:[#allocation3 + $0x1b4] sm:$0xf] %vm154, %v2818
  %v2835 = vld [vmem:[%s1080 + $0x8] sm:$0xff]
  %v2836 = vld [vmem:[%s1080 + $0x20] sm:$0xff]
  %v2837 = vld [vmem:[%s1080 + $0x38] sm:$0xff]
  %v2838 = vld [vmem:[%s1080 + $0x50] sm:$0xff]
  %v2839 = vld [vmem:[%s1080 + $0x68] sm:$0xff]
  %v2840 = vld [vmem:[%s1080 + $0x80] sm:$0xff]
  %v2841 = vld [vmem:[%s1080 + $0x98] sm:$0xff]
  %v2842 = vld [vmem:[%s1080 + $0xb0] sm:$0xff]
  %v2843 = vpack.c.bf16 %v2836, %v2835
  %v2844 = vpack.c.bf16 %v2838, %v2837
  %v2845 = vpack.c.bf16 %v2840, %v2839
  %v2846 = vpack.c.bf16 %v2842, %v2841
  %v2851 = vunpack.c.l.b16 %v2843
  %v2852 = vunpack.c.h.b16 %v2843
  %v2853 = vunpack.c.l.b16 %v2844
  %v2854 = vunpack.c.h.b16 %v2844
  %v2855 = vunpack.c.l.b16 %v2845
  %v2856 = vunpack.c.h.b16 %v2845
  %v2857 = vunpack.c.l.b16 %v2846
  %v2858 = vunpack.c.h.b16 %v2846
  %v2859 = vpack.c.b16 %v2851, %v2851
  %v2860 = vpack.c.b16 %v2852, %v2852
  %v2861 = vpack.c.b16 %v2853, %v2853
  %v2862 = vpack.c.b16 %v2854, %v2854
  %v2863 = vpack.c.b16 %v2855, %v2855
  %v2864 = vpack.c.b16 %v2856, %v2856
  %v2865 = vpack.c.b16 %v2857, %v2857
  %v2866 = vpack.c.b16 %v2858, %v2858
  %2867 = vrot.lane.b32.xlu0 %v2859, 32
  %v2868 = vpop.permute.xlu0 %2867
  %2869 = vrot.lane.b32.xlu0 %v2860, 32
  %v2870 = vpop.permute.xlu0 %2869
  %2871 = vrot.lane.b32.xlu0 %v2861, 32
  %v2872 = vpop.permute.xlu0 %2871
  %2873 = vrot.lane.b32.xlu0 %v2862, 32
  %v2874 = vpop.permute.xlu0 %2873
  %2875 = vrot.lane.b32.xlu0 %v2863, 32
  %v2876 = vpop.permute.xlu0 %2875
  %2877 = vrot.lane.b32.xlu0 %v2864, 32
  %v2878 = vpop.permute.xlu0 %2877
  %2879 = vrot.lane.b32.xlu0 %v2865, 32
  %v2880 = vpop.permute.xlu0 %2879
  %2881 = vrot.lane.b32.xlu0 %v2866, 32
  %v2882 = vpop.permute.xlu0 %2881
  %2891 = vst.msk [vmem:[#allocation3 + $0xf0] sm:$0xf] %vm219, %v2868
  %2892 = vst.msk [vmem:[#allocation3 + $0x10c] sm:$0xf] %vm219, %v2870
  %2893 = vst.msk [vmem:[#allocation3 + $0x128] sm:$0xf] %vm219, %v2872
  %2894 = vst.msk [vmem:[#allocation3 + $0x144] sm:$0xf] %vm219, %v2874
  %2895 = vst.msk [vmem:[#allocation3 + $0x160] sm:$0xf] %vm219, %v2876
  %2896 = vst.msk [vmem:[#allocation3 + $0x17c] sm:$0xf] %vm219, %v2878
  %2897 = vst.msk [vmem:[#allocation3 + $0x198] sm:$0xf] %vm219, %v2880
  %2898 = vst.msk [vmem:[#allocation3 + $0x1b4] sm:$0xf] %vm219, %v2882
  %v2899 = vld [vmem:[%s1080 + $0xc] sm:$0xff]
  %v2900 = vld [vmem:[%s1080 + $0x24] sm:$0xff]
  %v2901 = vld [vmem:[%s1080 + $0x3c] sm:$0xff]
  %v2902 = vld [vmem:[%s1080 + $0x54] sm:$0xff]
  %v2903 = vld [vmem:[%s1080 + $0x6c] sm:$0xff]
  %v2904 = vld [vmem:[%s1080 + $0x84] sm:$0xff]
  %v2905 = vld [vmem:[%s1080 + $0x9c] sm:$0xff]
  %v2906 = vld [vmem:[%s1080 + $0xb4] sm:$0xff]
  %v2907 = vpack.c.bf16 %v2900, %v2899
  %v2908 = vpack.c.bf16 %v2902, %v2901
  %v2909 = vpack.c.bf16 %v2904, %v2903
  %v2910 = vpack.c.bf16 %v2906, %v2905
  %v2915 = vunpack.c.l.b16 %v2907
  %v2916 = vunpack.c.h.b16 %v2907
  %v2917 = vunpack.c.l.b16 %v2908
  %v2918 = vunpack.c.h.b16 %v2908
  %v2919 = vunpack.c.l.b16 %v2909
  %v2920 = vunpack.c.h.b16 %v2909
  %v2921 = vunpack.c.l.b16 %v2910
  %v2922 = vunpack.c.h.b16 %v2910
  %v2923 = vpack.c.b16 %v2915, %v2915
  %v2924 = vpack.c.b16 %v2916, %v2916
  %v2925 = vpack.c.b16 %v2917, %v2917
  %v2926 = vpack.c.b16 %v2918, %v2918
  %v2927 = vpack.c.b16 %v2919, %v2919
  %v2928 = vpack.c.b16 %v2920, %v2920
  %v2929 = vpack.c.b16 %v2921, %v2921
  %v2930 = vpack.c.b16 %v2922, %v2922
  %2931 = vrot.lane.b32.xlu0 %v2923, 64
  %v2932 = vpop.permute.xlu0 %2931
  %2933 = vrot.lane.b32.xlu0 %v2924, 64
  %v2934 = vpop.permute.xlu0 %2933
  %2935 = vrot.lane.b32.xlu0 %v2925, 64
  %v2936 = vpop.permute.xlu0 %2935
  %2937 = vrot.lane.b32.xlu0 %v2926, 64
  %v2938 = vpop.permute.xlu0 %2937
  %2939 = vrot.lane.b32.xlu0 %v2927, 64
  %v2940 = vpop.permute.xlu0 %2939
  %2941 = vrot.lane.b32.xlu0 %v2928, 64
  %v2942 = vpop.permute.xlu0 %2941
  %2943 = vrot.lane.b32.xlu0 %v2929, 64
  %v2944 = vpop.permute.xlu0 %2943
  %2945 = vrot.lane.b32.xlu0 %v2930, 64
  %v2946 = vpop.permute.xlu0 %2945
  %2955 = vst.msk [vmem:[#allocation3 + $0xf0] sm:$0xf] %vm284, %v2932
  %2956 = vst.msk [vmem:[#allocation3 + $0x10c] sm:$0xf] %vm284, %v2934
  %2957 = vst.msk [vmem:[#allocation3 + $0x128] sm:$0xf] %vm284, %v2936
  %2958 = vst.msk [vmem:[#allocation3 + $0x144] sm:$0xf] %vm284, %v2938
  %2959 = vst.msk [vmem:[#allocation3 + $0x160] sm:$0xf] %vm284, %v2940
  %2960 = vst.msk [vmem:[#allocation3 + $0x17c] sm:$0xf] %vm284, %v2942
  %2961 = vst.msk [vmem:[#allocation3 + $0x198] sm:$0xf] %vm284, %v2944
  %2962 = vst.msk [vmem:[#allocation3 + $0x1b4] sm:$0xf] %vm284, %v2946
  %v2963 = vld [vmem:[#allocation2] sm:$0xff]
  %v2964 = vld [vmem:[#allocation2 + $0x18] sm:$0xff]
  %v2965 = vld [vmem:[#allocation2 + $0x30] sm:$0xff]
  %v2966 = vld [vmem:[#allocation2 + $0x48] sm:$0xff]
  %v2967 = vld [vmem:[#allocation2 + $0x60] sm:$0xff]
  %v2968 = vld [vmem:[#allocation2 + $0x78] sm:$0xff]
  %v2969 = vld [vmem:[#allocation2 + $0x90] sm:$0xff]
  %v2970 = vld [vmem:[#allocation2 + $0xa8] sm:$0xff]
  %v2971 = vpack.c.bf16 %v2964, %v2963
  %v2972 = vpack.c.bf16 %v2966, %v2965
  %v2973 = vpack.c.bf16 %v2968, %v2967
  %v2974 = vpack.c.bf16 %v2970, %v2969
  %v2979 = vunpack.c.l.b16 %v2971
  %v2980 = vunpack.c.h.b16 %v2971
  %v2981 = vunpack.c.l.b16 %v2972
  %v2982 = vunpack.c.h.b16 %v2972
  %v2983 = vunpack.c.l.b16 %v2973
  %v2984 = vunpack.c.h.b16 %v2973
  %v2985 = vunpack.c.l.b16 %v2974
  %v2986 = vunpack.c.h.b16 %v2974
  %v2987 = vpack.c.b16 %v2979, %v2979
  %v2988 = vpack.c.b16 %v2980, %v2980
  %v2989 = vpack.c.b16 %v2981, %v2981
  %v2990 = vpack.c.b16 %v2982, %v2982
  %v2991 = vpack.c.b16 %v2983, %v2983
  %v2992 = vpack.c.b16 %v2984, %v2984
  %v2993 = vpack.c.b16 %v2985, %v2985
  %v2994 = vpack.c.b16 %v2986, %v2986
  %2995 = vrot.lane.b32.xlu0 %v2987, 96
  %v2996 = vpop.permute.xlu0 %2995
  %2997 = vrot.lane.b32.xlu0 %v2988, 96
  %v2998 = vpop.permute.xlu0 %2997
  %2999 = vrot.lane.b32.xlu0 %v2989, 96
  %v3000 = vpop.permute.xlu0 %2999
  %3001 = vrot.lane.b32.xlu0 %v2990, 96
  %v3002 = vpop.permute.xlu0 %3001
  %3003 = vrot.lane.b32.xlu0 %v2991, 96
  %v3004 = vpop.permute.xlu0 %3003
  %3005 = vrot.lane.b32.xlu0 %v2992, 96
  %v3006 = vpop.permute.xlu0 %3005
  %3007 = vrot.lane.b32.xlu0 %v2993, 96
  %v3008 = vpop.permute.xlu0 %3007
  %3009 = vrot.lane.b32.xlu0 %v2994, 96
  %v3010 = vpop.permute.xlu0 %3009
  %3019 = vst.msk [vmem:[#allocation3 + $0xf0] sm:$0xf] %vm349, %v2996
  %3020 = vst.msk [vmem:[#allocation3 + $0x10c] sm:$0xf] %vm349, %v2998
  %3021 = vst.msk [vmem:[#allocation3 + $0x128] sm:$0xf] %vm349, %v3000
  %3022 = vst.msk [vmem:[#allocation3 + $0x144] sm:$0xf] %vm349, %v3002
  %3023 = vst.msk [vmem:[#allocation3 + $0x160] sm:$0xf] %vm349, %v3004
  %3024 = vst.msk [vmem:[#allocation3 + $0x17c] sm:$0xf] %vm349, %v3006
  %3025 = vst.msk [vmem:[#allocation3 + $0x198] sm:$0xf] %vm349, %v3008
  %3026 = vst.msk [vmem:[#allocation3 + $0x1b4] sm:$0xf] %vm349, %v3010
  %v3027 = vld [vmem:[#allocation2 + $0x8] sm:$0xff]
  %v3028 = vld [vmem:[#allocation2 + $0x20] sm:$0xff]
  %v3029 = vld [vmem:[#allocation2 + $0x38] sm:$0xff]
  %v3030 = vld [vmem:[#allocation2 + $0x50] sm:$0xff]
  %v3031 = vld [vmem:[#allocation2 + $0x68] sm:$0xff]
  %v3032 = vld [vmem:[#allocation2 + $0x80] sm:$0xff]
  %v3033 = vld [vmem:[#allocation2 + $0x98] sm:$0xff]
  %v3034 = vld [vmem:[#allocation2 + $0xb0] sm:$0xff]
  %v3035 = vpack.c.bf16 %v3028, %v3027
  %v3036 = vpack.c.bf16 %v3030, %v3029
  %v3037 = vpack.c.bf16 %v3032, %v3031
  %v3038 = vpack.c.bf16 %v3034, %v3033
  %v3043 = vunpack.c.l.b16 %v3035
  %v3044 = vunpack.c.h.b16 %v3035
  %v3045 = vunpack.c.l.b16 %v3036
  %v3046 = vunpack.c.h.b16 %v3036
  %v3047 = vunpack.c.l.b16 %v3037
  %v3048 = vunpack.c.h.b16 %v3037
  %v3049 = vunpack.c.l.b16 %v3038
  %v3050 = vunpack.c.h.b16 %v3038
  %v3051 = vpack.c.b16 %v3043, %v3043
  %v3052 = vpack.c.b16 %v3044, %v3044
  %v3053 = vpack.c.b16 %v3045, %v3045
  %v3054 = vpack.c.b16 %v3046, %v3046
  %v3055 = vpack.c.b16 %v3047, %v3047
  %v3056 = vpack.c.b16 %v3048, %v3048
  %v3057 = vpack.c.b16 %v3049, %v3049
  %v3058 = vpack.c.b16 %v3050, %v3050
  %3067 = vst.msk [vmem:[#allocation3 + $0xf4] sm:$0xf] %vm154, %v3051
  %3068 = vst.msk [vmem:[#allocation3 + $0x110] sm:$0xf] %vm154, %v3052
  %3069 = vst.msk [vmem:[#allocation3 + $0x12c] sm:$0xf] %vm154, %v3053
  %3070 = vst.msk [vmem:[#allocation3 + $0x148] sm:$0xf] %vm154, %v3054
  %3071 = vst.msk [vmem:[#allocation3 + $0x164] sm:$0xf] %vm154, %v3055
  %3072 = vst.msk [vmem:[#allocation3 + $0x180] sm:$0xf] %vm154, %v3056
  %3073 = vst.msk [vmem:[#allocation3 + $0x19c] sm:$0xf] %vm154, %v3057
  %3074 = vst.msk [vmem:[#allocation3 + $0x1b8] sm:$0xf] %vm154, %v3058
  %v3075 = vld [vmem:[#allocation2 + $0x10] sm:$0xff]
  %v3076 = vld [vmem:[#allocation2 + $0x28] sm:$0xff]
  %v3077 = vld [vmem:[#allocation2 + $0x40] sm:$0xff]
  %v3078 = vld [vmem:[#allocation2 + $0x58] sm:$0xff]
  %v3079 = vld [vmem:[#allocation2 + $0x70] sm:$0xff]
  %v3080 = vld [vmem:[#allocation2 + $0x88] sm:$0xff]
  %v3081 = vld [vmem:[#allocation2 + $0xa0] sm:$0xff]
  %v3082 = vld [vmem:[#allocation2 + $0xb8] sm:$0xff]
  %v3083 = vpack.c.bf16 %v3076, %v3075
  %v3084 = vpack.c.bf16 %v3078, %v3077
  %v3085 = vpack.c.bf16 %v3080, %v3079
  %v3086 = vpack.c.bf16 %v3082, %v3081
  %v3091 = vunpack.c.l.b16 %v3083
  %v3092 = vunpack.c.h.b16 %v3083
  %v3093 = vunpack.c.l.b16 %v3084
  %v3094 = vunpack.c.h.b16 %v3084
  %v3095 = vunpack.c.l.b16 %v3085
  %v3096 = vunpack.c.h.b16 %v3085
  %v3097 = vunpack.c.l.b16 %v3086
  %v3098 = vunpack.c.h.b16 %v3086
  %v3099 = vpack.c.b16 %v3091, %v3091
  %v3100 = vpack.c.b16 %v3092, %v3092
  %v3101 = vpack.c.b16 %v3093, %v3093
  %v3102 = vpack.c.b16 %v3094, %v3094
  %v3103 = vpack.c.b16 %v3095, %v3095
  %v3104 = vpack.c.b16 %v3096, %v3096
  %v3105 = vpack.c.b16 %v3097, %v3097
  %v3106 = vpack.c.b16 %v3098, %v3098
  %3107 = vrot.lane.b32.xlu0 %v3099, 32
  %v3108 = vpop.permute.xlu0 %3107
  %3109 = vrot.lane.b32.xlu0 %v3100, 32
  %v3110 = vpop.permute.xlu0 %3109
  %3111 = vrot.lane.b32.xlu0 %v3101, 32
  %v3112 = vpop.permute.xlu0 %3111
  %3113 = vrot.lane.b32.xlu0 %v3102, 32
  %v3114 = vpop.permute.xlu0 %3113
  %3115 = vrot.lane.b32.xlu0 %v3103, 32
  %v3116 = vpop.permute.xlu0 %3115
  %3117 = vrot.lane.b32.xlu0 %v3104, 32
  %v3118 = vpop.permute.xlu0 %3117
  %3119 = vrot.lane.b32.xlu0 %v3105, 32
  %v3120 = vpop.permute.xlu0 %3119
  %3121 = vrot.lane.b32.xlu0 %v3106, 32
  %v3122 = vpop.permute.xlu0 %3121
  %3131 = vst.msk [vmem:[#allocation3 + $0xf4] sm:$0xf] %vm219, %v3108
  %3132 = vst.msk [vmem:[#allocation3 + $0x110] sm:$0xf] %vm219, %v3110
  %3133 = vst.msk [vmem:[#allocation3 + $0x12c] sm:$0xf] %vm219, %v3112
  %3134 = vst.msk [vmem:[#allocation3 + $0x148] sm:$0xf] %vm219, %v3114
  %3135 = vst.msk [vmem:[#allocation3 + $0x164] sm:$0xf] %vm219, %v3116
  %3136 = vst.msk [vmem:[#allocation3 + $0x180] sm:$0xf] %vm219, %v3118
  %3137 = vst.msk [vmem:[#allocation3 + $0x19c] sm:$0xf] %vm219, %v3120
  %3138 = vst.msk [vmem:[#allocation3 + $0x1b8] sm:$0xf] %vm219, %v3122
  %v3139 = vld [vmem:[%s104] sm:$0xff]
  %v3140 = vld [vmem:[%s104 + $0x18] sm:$0xff]
  %v3141 = vld [vmem:[%s104 + $0x30] sm:$0xff]
  %v3142 = vld [vmem:[%s104 + $0x48] sm:$0xff]
  %v3143 = vld [vmem:[%s104 + $0x60] sm:$0xff]
  %v3144 = vld [vmem:[%s104 + $0x78] sm:$0xff]
  %v3145 = vld [vmem:[%s104 + $0x90] sm:$0xff]
  %v3146 = vld [vmem:[%s104 + $0xa8] sm:$0xff]
  %v3147 = vpack.c.bf16 %v3140, %v3139
  %v3148 = vpack.c.bf16 %v3142, %v3141
  %v3149 = vpack.c.bf16 %v3144, %v3143
  %v3150 = vpack.c.bf16 %v3146, %v3145
  %v3155 = vunpack.c.l.b16 %v3147
  %v3156 = vunpack.c.h.b16 %v3147
  %v3157 = vunpack.c.l.b16 %v3148
  %v3158 = vunpack.c.h.b16 %v3148
  %v3159 = vunpack.c.l.b16 %v3149
  %v3160 = vunpack.c.h.b16 %v3149
  %v3161 = vunpack.c.l.b16 %v3150
  %v3162 = vunpack.c.h.b16 %v3150
  %v3163 = vpack.c.b16 %v3155, %v3155
  %v3164 = vpack.c.b16 %v3156, %v3156
  %v3165 = vpack.c.b16 %v3157, %v3157
  %v3166 = vpack.c.b16 %v3158, %v3158
  %v3167 = vpack.c.b16 %v3159, %v3159
  %v3168 = vpack.c.b16 %v3160, %v3160
  %v3169 = vpack.c.b16 %v3161, %v3161
  %v3170 = vpack.c.b16 %v3162, %v3162
  %3171 = vrot.lane.b32.xlu0 %v3163, 64
  %v3172 = vpop.permute.xlu0 %3171
  %3173 = vrot.lane.b32.xlu0 %v3164, 64
  %v3174 = vpop.permute.xlu0 %3173
  %3175 = vrot.lane.b32.xlu0 %v3165, 64
  %v3176 = vpop.permute.xlu0 %3175
  %3177 = vrot.lane.b32.xlu0 %v3166, 64
  %v3178 = vpop.permute.xlu0 %3177
  %3179 = vrot.lane.b32.xlu0 %v3167, 64
  %v3180 = vpop.permute.xlu0 %3179
  %3181 = vrot.lane.b32.xlu0 %v3168, 64
  %v3182 = vpop.permute.xlu0 %3181
  %3183 = vrot.lane.b32.xlu0 %v3169, 64
  %v3184 = vpop.permute.xlu0 %3183
  %3185 = vrot.lane.b32.xlu0 %v3170, 64
  %v3186 = vpop.permute.xlu0 %3185
  %3195 = vst.msk [vmem:[#allocation3 + $0xf4] sm:$0xf] %vm284, %v3172
  %3196 = vst.msk [vmem:[#allocation3 + $0x110] sm:$0xf] %vm284, %v3174
  %3197 = vst.msk [vmem:[#allocation3 + $0x12c] sm:$0xf] %vm284, %v3176
  %3198 = vst.msk [vmem:[#allocation3 + $0x148] sm:$0xf] %vm284, %v3178
  %3199 = vst.msk [vmem:[#allocation3 + $0x164] sm:$0xf] %vm284, %v3180
  %3200 = vst.msk [vmem:[#allocation3 + $0x180] sm:$0xf] %vm284, %v3182
  %3201 = vst.msk [vmem:[#allocation3 + $0x19c] sm:$0xf] %vm284, %v3184
  %3202 = vst.msk [vmem:[#allocation3 + $0x1b8] sm:$0xf] %vm284, %v3186
  %v3203 = vld [vmem:[%s104 + $0x8] sm:$0xff]
  %v3204 = vld [vmem:[%s104 + $0x20] sm:$0xff]
  %v3205 = vld [vmem:[%s104 + $0x38] sm:$0xff]
  %v3206 = vld [vmem:[%s104 + $0x50] sm:$0xff]
  %v3207 = vld [vmem:[%s104 + $0x68] sm:$0xff]
  %v3208 = vld [vmem:[%s104 + $0x80] sm:$0xff]
  %v3209 = vld [vmem:[%s104 + $0x98] sm:$0xff]
  %v3210 = vld [vmem:[%s104 + $0xb0] sm:$0xff]
  %v3211 = vpack.c.bf16 %v3204, %v3203
  %v3212 = vpack.c.bf16 %v3206, %v3205
  %v3213 = vpack.c.bf16 %v3208, %v3207
  %v3214 = vpack.c.bf16 %v3210, %v3209
  %v3219 = vunpack.c.l.b16 %v3211
  %v3220 = vunpack.c.h.b16 %v3211
  %v3221 = vunpack.c.l.b16 %v3212
  %v3222 = vunpack.c.h.b16 %v3212
  %v3223 = vunpack.c.l.b16 %v3213
  %v3224 = vunpack.c.h.b16 %v3213
  %v3225 = vunpack.c.l.b16 %v3214
  %v3226 = vunpack.c.h.b16 %v3214
  %v3227 = vpack.c.b16 %v3219, %v3219
  %v3228 = vpack.c.b16 %v3220, %v3220
  %v3229 = vpack.c.b16 %v3221, %v3221
  %v3230 = vpack.c.b16 %v3222, %v3222
  %v3231 = vpack.c.b16 %v3223, %v3223
  %v3232 = vpack.c.b16 %v3224, %v3224
  %v3233 = vpack.c.b16 %v3225, %v3225
  %v3234 = vpack.c.b16 %v3226, %v3226
  %3235 = vrot.lane.b32.xlu0 %v3227, 96
  %v3236 = vpop.permute.xlu0 %3235
  %3237 = vrot.lane.b32.xlu0 %v3228, 96
  %v3238 = vpop.permute.xlu0 %3237
  %3239 = vrot.lane.b32.xlu0 %v3229, 96
  %v3240 = vpop.permute.xlu0 %3239
  %3241 = vrot.lane.b32.xlu0 %v3230, 96
  %v3242 = vpop.permute.xlu0 %3241
  %3243 = vrot.lane.b32.xlu0 %v3231, 96
  %v3244 = vpop.permute.xlu0 %3243
  %3245 = vrot.lane.b32.xlu0 %v3232, 96
  %v3246 = vpop.permute.xlu0 %3245
  %3247 = vrot.lane.b32.xlu0 %v3233, 96
  %v3248 = vpop.permute.xlu0 %3247
  %3249 = vrot.lane.b32.xlu0 %v3234, 96
  %v3250 = vpop.permute.xlu0 %3249
  %3259 = vst.msk [vmem:[#allocation3 + $0xf4] sm:$0xf] %vm349, %v3236
  %3260 = vst.msk [vmem:[#allocation3 + $0x110] sm:$0xf] %vm349, %v3238
  %3261 = vst.msk [vmem:[#allocation3 + $0x12c] sm:$0xf] %vm349, %v3240
  %3262 = vst.msk [vmem:[#allocation3 + $0x148] sm:$0xf] %vm349, %v3242
  %3263 = vst.msk [vmem:[#allocation3 + $0x164] sm:$0xf] %vm349, %v3244
  %3264 = vst.msk [vmem:[#allocation3 + $0x180] sm:$0xf] %vm349, %v3246
  %3265 = vst.msk [vmem:[#allocation3 + $0x19c] sm:$0xf] %vm349, %v3248
  %3266 = vst.msk [vmem:[#allocation3 + $0x1b8] sm:$0xf] %vm349, %v3250
  %v3267 = vld [vmem:[%s104 + $0x10] sm:$0xff]
  %v3268 = vld [vmem:[%s104 + $0x28] sm:$0xff]
  %v3269 = vld [vmem:[%s104 + $0x40] sm:$0xff]
  %v3270 = vld [vmem:[%s104 + $0x58] sm:$0xff]
  %v3271 = vld [vmem:[%s104 + $0x70] sm:$0xff]
  %v3272 = vld [vmem:[%s104 + $0x88] sm:$0xff]
  %v3273 = vld [vmem:[%s104 + $0xa0] sm:$0xff]
  %v3274 = vld [vmem:[%s104 + $0xb8] sm:$0xff]
  %v3275 = vpack.c.bf16 %v3268, %v3267
  %v3276 = vpack.c.bf16 %v3270, %v3269
  %v3277 = vpack.c.bf16 %v3272, %v3271
  %v3278 = vpack.c.bf16 %v3274, %v3273
  %v3283 = vunpack.c.l.b16 %v3275
  %v3284 = vunpack.c.h.b16 %v3275
  %v3285 = vunpack.c.l.b16 %v3276
  %v3286 = vunpack.c.h.b16 %v3276
  %v3287 = vunpack.c.l.b16 %v3277
  %v3288 = vunpack.c.h.b16 %v3277
  %v3289 = vunpack.c.l.b16 %v3278
  %v3290 = vunpack.c.h.b16 %v3278
  %v3291 = vpack.c.b16 %v3283, %v3283
  %v3292 = vpack.c.b16 %v3284, %v3284
  %v3293 = vpack.c.b16 %v3285, %v3285
  %v3294 = vpack.c.b16 %v3286, %v3286
  %v3295 = vpack.c.b16 %v3287, %v3287
  %v3296 = vpack.c.b16 %v3288, %v3288
  %v3297 = vpack.c.b16 %v3289, %v3289
  %v3298 = vpack.c.b16 %v3290, %v3290
  %3307 = vst.msk [vmem:[#allocation3 + $0xf8] sm:$0xf] %vm154, %v3291
  %3308 = vst.msk [vmem:[#allocation3 + $0x114] sm:$0xf] %vm154, %v3292
  %3309 = vst.msk [vmem:[#allocation3 + $0x130] sm:$0xf] %vm154, %v3293
  %3310 = vst.msk [vmem:[#allocation3 + $0x14c] sm:$0xf] %vm154, %v3294
  %3311 = vst.msk [vmem:[#allocation3 + $0x168] sm:$0xf] %vm154, %v3295
  %3312 = vst.msk [vmem:[#allocation3 + $0x184] sm:$0xf] %vm154, %v3296
  %3313 = vst.msk [vmem:[#allocation3 + $0x1a0] sm:$0xf] %vm154, %v3297
  %3314 = vst.msk [vmem:[#allocation3 + $0x1bc] sm:$0xf] %vm154, %v3298
  %v3315 = vld [vmem:[%s1609] sm:$0xff]
  %v3316 = vld [vmem:[%s1609 + $0x18] sm:$0xff]
  %v3317 = vld [vmem:[%s1609 + $0x30] sm:$0xff]
  %v3318 = vld [vmem:[%s1609 + $0x48] sm:$0xff]
  %v3319 = vld [vmem:[%s1609 + $0x60] sm:$0xff]
  %v3320 = vld [vmem:[%s1609 + $0x78] sm:$0xff]
  %v3321 = vld [vmem:[%s1609 + $0x90] sm:$0xff]
  %v3322 = vld [vmem:[%s1609 + $0xa8] sm:$0xff]
  %v3323 = vpack.c.bf16 %v3316, %v3315
  %v3324 = vpack.c.bf16 %v3318, %v3317
  %v3325 = vpack.c.bf16 %v3320, %v3319
  %v3326 = vpack.c.bf16 %v3322, %v3321
  %v3331 = vunpack.c.l.b16 %v3323
  %v3332 = vunpack.c.h.b16 %v3323
  %v3333 = vunpack.c.l.b16 %v3324
  %v3334 = vunpack.c.h.b16 %v3324
  %v3335 = vunpack.c.l.b16 %v3325
  %v3336 = vunpack.c.h.b16 %v3325
  %v3337 = vunpack.c.l.b16 %v3326
  %v3338 = vunpack.c.h.b16 %v3326
  %v3339 = vpack.c.b16 %v3331, %v3331
  %v3340 = vpack.c.b16 %v3332, %v3332
  %v3341 = vpack.c.b16 %v3333, %v3333
  %v3342 = vpack.c.b16 %v3334, %v3334
  %v3343 = vpack.c.b16 %v3335, %v3335
  %v3344 = vpack.c.b16 %v3336, %v3336
  %v3345 = vpack.c.b16 %v3337, %v3337
  %v3346 = vpack.c.b16 %v3338, %v3338
  %3347 = vrot.lane.b32.xlu0 %v3339, 32
  %v3348 = vpop.permute.xlu0 %3347
  %3349 = vrot.lane.b32.xlu0 %v3340, 32
  %v3350 = vpop.permute.xlu0 %3349
  %3351 = vrot.lane.b32.xlu0 %v3341, 32
  %v3352 = vpop.permute.xlu0 %3351
  %3353 = vrot.lane.b32.xlu0 %v3342, 32
  %v3354 = vpop.permute.xlu0 %3353
  %3355 = vrot.lane.b32.xlu0 %v3343, 32
  %v3356 = vpop.permute.xlu0 %3355
  %3357 = vrot.lane.b32.xlu0 %v3344, 32
  %v3358 = vpop.permute.xlu0 %3357
  %3359 = vrot.lane.b32.xlu0 %v3345, 32
  %v3360 = vpop.permute.xlu0 %3359
  %3361 = vrot.lane.b32.xlu0 %v3346, 32
  %v3362 = vpop.permute.xlu0 %3361
  %3371 = vst.msk [vmem:[#allocation3 + $0xf8] sm:$0xf] %vm219, %v3348
  %3372 = vst.msk [vmem:[#allocation3 + $0x114] sm:$0xf] %vm219, %v3350
  %3373 = vst.msk [vmem:[#allocation3 + $0x130] sm:$0xf] %vm219, %v3352
  %3374 = vst.msk [vmem:[#allocation3 + $0x14c] sm:$0xf] %vm219, %v3354
  %3375 = vst.msk [vmem:[#allocation3 + $0x168] sm:$0xf] %vm219, %v3356
  %3376 = vst.msk [vmem:[#allocation3 + $0x184] sm:$0xf] %vm219, %v3358
  %3377 = vst.msk [vmem:[#allocation3 + $0x1a0] sm:$0xf] %vm219, %v3360
  %3378 = vst.msk [vmem:[#allocation3 + $0x1bc] sm:$0xf] %vm219, %v3362
  %v3379 = vld [vmem:[%s1609 + $0x8] sm:$0xff]
  %v3380 = vld [vmem:[%s1609 + $0x20] sm:$0xff]
  %v3381 = vld [vmem:[%s1609 + $0x38] sm:$0xff]
  %v3382 = vld [vmem:[%s1609 + $0x50] sm:$0xff]
  %v3383 = vld [vmem:[%s1609 + $0x68] sm:$0xff]
  %v3384 = vld [vmem:[%s1609 + $0x80] sm:$0xff]
  %v3385 = vld [vmem:[%s1609 + $0x98] sm:$0xff]
  %v3386 = vld [vmem:[%s1609 + $0xb0] sm:$0xff]
  %v3387 = vpack.c.bf16 %v3380, %v3379
  %v3388 = vpack.c.bf16 %v3382, %v3381
  %v3389 = vpack.c.bf16 %v3384, %v3383
  %v3390 = vpack.c.bf16 %v3386, %v3385
  %v3395 = vunpack.c.l.b16 %v3387
  %v3396 = vunpack.c.h.b16 %v3387
  %v3397 = vunpack.c.l.b16 %v3388
  %v3398 = vunpack.c.h.b16 %v3388
  %v3399 = vunpack.c.l.b16 %v3389
  %v3400 = vunpack.c.h.b16 %v3389
  %v3401 = vunpack.c.l.b16 %v3390
  %v3402 = vunpack.c.h.b16 %v3390
  %v3403 = vpack.c.b16 %v3395, %v3395
  %v3404 = vpack.c.b16 %v3396, %v3396
  %v3405 = vpack.c.b16 %v3397, %v3397
  %v3406 = vpack.c.b16 %v3398, %v3398
  %v3407 = vpack.c.b16 %v3399, %v3399
  %v3408 = vpack.c.b16 %v3400, %v3400
  %v3409 = vpack.c.b16 %v3401, %v3401
  %v3410 = vpack.c.b16 %v3402, %v3402
  %3411 = vrot.lane.b32.xlu0 %v3403, 64
  %v3412 = vpop.permute.xlu0 %3411
  %3413 = vrot.lane.b32.xlu0 %v3404, 64
  %v3414 = vpop.permute.xlu0 %3413
  %3415 = vrot.lane.b32.xlu0 %v3405, 64
  %v3416 = vpop.permute.xlu0 %3415
  %3417 = vrot.lane.b32.xlu0 %v3406, 64
  %v3418 = vpop.permute.xlu0 %3417
  %3419 = vrot.lane.b32.xlu0 %v3407, 64
  %v3420 = vpop.permute.xlu0 %3419
  %3421 = vrot.lane.b32.xlu0 %v3408, 64
  %v3422 = vpop.permute.xlu0 %3421
  %3423 = vrot.lane.b32.xlu0 %v3409, 64
  %v3424 = vpop.permute.xlu0 %3423
  %3425 = vrot.lane.b32.xlu0 %v3410, 64
  %v3426 = vpop.permute.xlu0 %3425
  %3435 = vst.msk [vmem:[#allocation3 + $0xf8] sm:$0xf] %vm284, %v3412
  %3436 = vst.msk [vmem:[#allocation3 + $0x114] sm:$0xf] %vm284, %v3414
  %3437 = vst.msk [vmem:[#allocation3 + $0x130] sm:$0xf] %vm284, %v3416
  %3438 = vst.msk [vmem:[#allocation3 + $0x14c] sm:$0xf] %vm284, %v3418
  %3439 = vst.msk [vmem:[#allocation3 + $0x168] sm:$0xf] %vm284, %v3420
  %3440 = vst.msk [vmem:[#allocation3 + $0x184] sm:$0xf] %vm284, %v3422
  %3441 = vst.msk [vmem:[#allocation3 + $0x1a0] sm:$0xf] %vm284, %v3424
  %3442 = vst.msk [vmem:[#allocation3 + $0x1bc] sm:$0xf] %vm284, %v3426
  %v3443 = vld [vmem:[%s1609 + $0x10] sm:$0xff]
  %v3444 = vld [vmem:[%s1609 + $0x28] sm:$0xff]
  %v3445 = vld [vmem:[%s1609 + $0x40] sm:$0xff]
  %v3446 = vld [vmem:[%s1609 + $0x58] sm:$0xff]
  %v3447 = vld [vmem:[%s1609 + $0x70] sm:$0xff]
  %v3448 = vld [vmem:[%s1609 + $0x88] sm:$0xff]
  %v3449 = vld [vmem:[%s1609 + $0xa0] sm:$0xff]
  %v3450 = vld [vmem:[%s1609 + $0xb8] sm:$0xff]
  %v3451 = vpack.c.bf16 %v3444, %v3443
  %v3452 = vpack.c.bf16 %v3446, %v3445
  %v3453 = vpack.c.bf16 %v3448, %v3447
  %v3454 = vpack.c.bf16 %v3450, %v3449
  %v3459 = vunpack.c.l.b16 %v3451
  %v3460 = vunpack.c.h.b16 %v3451
  %v3461 = vunpack.c.l.b16 %v3452
  %v3462 = vunpack.c.h.b16 %v3452
  %v3463 = vunpack.c.l.b16 %v3453
  %v3464 = vunpack.c.h.b16 %v3453
  %v3465 = vunpack.c.l.b16 %v3454
  %v3466 = vunpack.c.h.b16 %v3454
  %v3467 = vpack.c.b16 %v3459, %v3459
  %v3468 = vpack.c.b16 %v3460, %v3460
  %v3469 = vpack.c.b16 %v3461, %v3461
  %v3470 = vpack.c.b16 %v3462, %v3462
  %v3471 = vpack.c.b16 %v3463, %v3463
  %v3472 = vpack.c.b16 %v3464, %v3464
  %v3473 = vpack.c.b16 %v3465, %v3465
  %v3474 = vpack.c.b16 %v3466, %v3466
  %3475 = vrot.lane.b32.xlu0 %v3467, 96
  %v3476 = vpop.permute.xlu0 %3475
  %3477 = vrot.lane.b32.xlu0 %v3468, 96
  %v3478 = vpop.permute.xlu0 %3477
  %3479 = vrot.lane.b32.xlu0 %v3469, 96
  %v3480 = vpop.permute.xlu0 %3479
  %3481 = vrot.lane.b32.xlu0 %v3470, 96
  %v3482 = vpop.permute.xlu0 %3481
  %3483 = vrot.lane.b32.xlu0 %v3471, 96
  %v3484 = vpop.permute.xlu0 %3483
  %3485 = vrot.lane.b32.xlu0 %v3472, 96
  %v3486 = vpop.permute.xlu0 %3485
  %3487 = vrot.lane.b32.xlu0 %v3473, 96
  %v3488 = vpop.permute.xlu0 %3487
  %3489 = vrot.lane.b32.xlu0 %v3474, 96
  %v3490 = vpop.permute.xlu0 %3489
  %3499 = vst.msk [vmem:[#allocation3 + $0xf8] sm:$0xf] %vm349, %v3476
  %3500 = vst.msk [vmem:[#allocation3 + $0x114] sm:$0xf] %vm349, %v3478
  %3501 = vst.msk [vmem:[#allocation3 + $0x130] sm:$0xf] %vm349, %v3480
  %3502 = vst.msk [vmem:[#allocation3 + $0x14c] sm:$0xf] %vm349, %v3482
  %3503 = vst.msk [vmem:[#allocation3 + $0x168] sm:$0xf] %vm349, %v3484
  %3504 = vst.msk [vmem:[#allocation3 + $0x184] sm:$0xf] %vm349, %v3486
  %3505 = vst.msk [vmem:[#allocation3 + $0x1a0] sm:$0xf] %vm349, %v3488
  %3506 = vst.msk [vmem:[#allocation3 + $0x1bc] sm:$0xf] %vm349, %v3490
  %v3507 = vld [vmem:[#allocation3] sm:$0xff]
  %v3508 = vld [vmem:[#allocation3 + $0x8] sm:$0xff]
  %v3509 = vld [vmem:[#allocation3 + $0x10] sm:$0xff]
  %v3510 = vld [vmem:[#allocation3 + $0x18] sm:$0xf]
  %v3511 = vld [vmem:[#allocation3 + $0x1c] sm:$0xff]
  %v3512 = vld [vmem:[#allocation3 + $0x24] sm:$0xff]
  %v3513 = vld [vmem:[#allocation3 + $0x2c] sm:$0xff]
  %v3514 = vld [vmem:[#allocation3 + $0x34] sm:$0xf]
  %v3515 = vld [vmem:[#allocation3 + $0x38] sm:$0xff]
  %v3516 = vld [vmem:[#allocation3 + $0x40] sm:$0xff]
  %v3517 = vld [vmem:[#allocation3 + $0x48] sm:$0xff]
  %v3518 = vld [vmem:[#allocation3 + $0x50] sm:$0xf]
  %v3519 = vld [vmem:[#allocation3 + $0x54] sm:$0xff]
  %v3520 = vld [vmem:[#allocation3 + $0x5c] sm:$0xff]
  %v3521 = vld [vmem:[#allocation3 + $0x64] sm:$0xff]
  %v3522 = vld [vmem:[#allocation3 + $0x6c] sm:$0xf]
  %v3523 = vld [vmem:[#allocation3 + $0x70] sm:$0xff]
  %v3524 = vld [vmem:[#allocation3 + $0x78] sm:$0xff]
  %v3525 = vld [vmem:[#allocation3 + $0x80] sm:$0xff]
  %v3526 = vld [vmem:[#allocation3 + $0x88] sm:$0xf]
  %v3527 = vld [vmem:[#allocation3 + $0x8c] sm:$0xff]
  %v3528 = vld [vmem:[#allocation3 + $0x94] sm:$0xff]
  %v3529 = vld [vmem:[#allocation3 + $0x9c] sm:$0xff]
  %v3530 = vld [vmem:[#allocation3 + $0xa4] sm:$0xf]
  %v3531 = vld [vmem:[#allocation3 + $0xa8] sm:$0xff]
  %v3532 = vld [vmem:[#allocation3 + $0xb0] sm:$0xff]
  %v3533 = vld [vmem:[#allocation3 + $0xb8] sm:$0xff]
  %v3534 = vld [vmem:[#allocation3 + $0xc0] sm:$0xf]
  %v3535 = vld [vmem:[#allocation3 + $0xc4] sm:$0xff]
  %v3536 = vld [vmem:[#allocation3 + $0xcc] sm:$0xff]
  %v3537 = vld [vmem:[#allocation3 + $0xd4] sm:$0xff]
  %v3538 = vld [vmem:[#allocation3 + $0xdc] sm:$0xf]
  %v3539 = vld [vmem:[#allocation3 + $0xe0] sm:$0xff]
  %v3540 = vld [vmem:[#allocation3 + $0xe8] sm:$0xff]
  %v3541 = vld [vmem:[#allocation3 + $0xf0] sm:$0xff]
  %v3542 = vld [vmem:[#allocation3 + $0xf8] sm:$0xf]
  %v3543 = vld [vmem:[#allocation3 + $0xfc] sm:$0xff]
  %v3544 = vld [vmem:[#allocation3 + $0x104] sm:$0xff]
  %v3545 = vld [vmem:[#allocation3 + $0x10c] sm:$0xff]
  %v3546 = vld [vmem:[#allocation3 + $0x114] sm:$0xf]
  %v3547 = vld [vmem:[#allocation3 + $0x118] sm:$0xff]
  %v3548 = vld [vmem:[#allocation3 + $0x120] sm:$0xff]
  %v3549 = vld [vmem:[#allocation3 + $0x128] sm:$0xff]
  %v3550 = vld [vmem:[#allocation3 + $0x130] sm:$0xf]
  %v3551 = vld [vmem:[#allocation3 + $0x134] sm:$0xff]
  %v3552 = vld [vmem:[#allocation3 + $0x13c] sm:$0xff]
  %v3553 = vld [vmem:[#allocation3 + $0x144] sm:$0xff]
  %v3554 = vld [vmem:[#allocation3 + $0x14c] sm:$0xf]
  %v3555 = vld [vmem:[#allocation3 + $0x150] sm:$0xff]
  %v3556 = vld [vmem:[#allocation3 + $0x158] sm:$0xff]
  %v3557 = vld [vmem:[#allocation3 + $0x160] sm:$0xff]
  %v3558 = vld [vmem:[#allocation3 + $0x168] sm:$0xf]
  %v3559 = vld [vmem:[#allocation3 + $0x16c] sm:$0xff]
  %v3560 = vld [vmem:[#allocation3 + $0x174] sm:$0xff]
  %v3561 = vld [vmem:[#allocation3 + $0x17c] sm:$0xff]
  %v3562 = vld [vmem:[#allocation3 + $0x184] sm:$0xf]
  %v3563 = vld [vmem:[#allocation3 + $0x188] sm:$0xff]
  %v3564 = vld [vmem:[#allocation3 + $0x190] sm:$0xff]
  %v3565 = vld [vmem:[#allocation3 + $0x198] sm:$0xff]
  %v3566 = vld [vmem:[#allocation3 + $0x1a0] sm:$0xf]
  %v3567 = vld [vmem:[#allocation3 + $0x1a4] sm:$0xff]
  %v3568 = vld [vmem:[#allocation3 + $0x1ac] sm:$0xff]
  %v3569 = vld [vmem:[#allocation3 + $0x1b4] sm:$0xff]
  %v3570 = vld [vmem:[#allocation3 + $0x1bc] sm:$0xf]
  %v3571 = vld [vmem:[%s1] sm:$0xf]
  %v3572 = vld [vmem:[%s1 + $0x4] sm:$0xf]
  %v3573 = vld [vmem:[%s1 + $0x8] sm:$0xf]
  %v3574 = vld [vmem:[%s1 + $0xc] sm:$0xf]
  %v3575 = vld [vmem:[%s1 + $0x10] sm:$0xf]
  %v3576 = vld [vmem:[%s1 + $0x14] sm:$0xf]
  %v3577 = vld [vmem:[%s1 + $0x18] sm:$0xf]
  %v3578 = vld [vmem:[%s1 + $0x1c] sm:$0xf]
  %v3579 = vld [vmem:[%s1 + $0x20] sm:$0xf]
  %v3580 = vld [vmem:[%s1 + $0x24] sm:$0xf]
  %v3581 = vld [vmem:[%s1 + $0x28] sm:$0xf]
  %v3582 = vld [vmem:[%s1 + $0x2c] sm:$0xf]
  %v3583 = vld [vmem:[%s1 + $0x30] sm:$0xf]
  %v3584 = vld [vmem:[%s1 + $0x34] sm:$0xf]
  %v3585 = vld [vmem:[%s1 + $0x38] sm:$0xf]
  %v3586 = vld [vmem:[%s1 + $0x3c] sm:$0xf]
  %v3587 = vld [vmem:[%s1 + $0x40] sm:$0xf]
  %v3588 = vld [vmem:[%s1 + $0x44] sm:$0xf]
  %v3589 = vld [vmem:[%s1 + $0x48] sm:$0xf]
  %v3590 = vld [vmem:[%s1 + $0x4c] sm:$0xf]
  %v3591 = vld [vmem:[%s1 + $0x50] sm:$0xf]
  %v3592 = vld [vmem:[%s1 + $0x54] sm:$0xf]
  %v3593 = vld [vmem:[%s1 + $0x58] sm:$0xf]
  %v3594 = vld [vmem:[%s1 + $0x5c] sm:$0xf]
  %v3595 = vld [vmem:[%s1 + $0x60] sm:$0xf]
  %v3596 = vld [vmem:[%s1 + $0x64] sm:$0xf]
  %v3597 = vld [vmem:[%s1 + $0x68] sm:$0xf]
  %v3598 = vld [vmem:[%s1 + $0x6c] sm:$0xf]
  %v3599 = vld [vmem:[%s1 + $0x70] sm:$0xf]
  %v3600 = vld [vmem:[%s1 + $0x74] sm:$0xf]
  %v3601 = vld [vmem:[%s1 + $0x78] sm:$0xf]
  %v3602 = vld [vmem:[%s1 + $0x7c] sm:$0xf]
  %v3603 = vld [vmem:[%s1 + $0x80] sm:$0xf]
  %v3604 = vld [vmem:[%s1 + $0x84] sm:$0xf]
  %v3605 = vld [vmem:[%s1 + $0x88] sm:$0xf]
  %v3606 = vld [vmem:[%s1 + $0x8c] sm:$0xf]
  %v3607 = vld [vmem:[%s1 + $0x90] sm:$0xf]
  %v3608 = vld [vmem:[%s1 + $0x94] sm:$0xf]
  %v3609 = vld [vmem:[%s1 + $0x98] sm:$0xf]
  %v3610 = vld [vmem:[%s1 + $0x9c] sm:$0xf]
  %v3611 = vld [vmem:[%s1 + $0xa0] sm:$0xf]
  %v3612 = vld [vmem:[%s1 + $0xa4] sm:$0xf]
  %v3613 = vld [vmem:[%s1 + $0xa8] sm:$0xf]
  %v3614 = vld [vmem:[%s1 + $0xac] sm:$0xf]
  %v3615 = vld [vmem:[%s1 + $0xb0] sm:$0xf]
  %v3616 = vld [vmem:[%s1 + $0xb4] sm:$0xf]
  %v3617 = vld [vmem:[%s1 + $0xb8] sm:$0xf]
  %v3618 = vld [vmem:[%s1 + $0xbc] sm:$0xf]
  %v3619 = vld [vmem:[%s1 + $0xc0] sm:$0xf]
  %v3620 = vld [vmem:[%s1 + $0xc4] sm:$0xf]
  %v3621 = vld [vmem:[%s1 + $0xc8] sm:$0xf]
  %v3622 = vld [vmem:[%s1 + $0xcc] sm:$0xf]
  %v3623 = vld [vmem:[%s1 + $0xd0] sm:$0xf]
  %v3624 = vld [vmem:[%s1 + $0xd4] sm:$0xf]
  %v3625 = vld [vmem:[%s1 + $0xd8] sm:$0xf]
  %v3626 = vld [vmem:[%s1 + $0xdc] sm:$0xf]
  %v3627 = vld [vmem:[%s1 + $0xe0] sm:$0xf]
  %v3628 = vld [vmem:[%s1 + $0xe4] sm:$0xf]
  %v3629 = vld [vmem:[%s1 + $0xe8] sm:$0xf]
  %v3630 = vld [vmem:[%s1 + $0xec] sm:$0xf]
  %v3631 = vld [vmem:[%s1 + $0xf0] sm:$0xf]
  %v3632 = vld [vmem:[%s1 + $0xf4] sm:$0xf]
  %v3633 = vld [vmem:[%s1 + $0xf8] sm:$0xf]
  %v3634 = vld [vmem:[%s1 + $0xfc] sm:$0xf]
  %v3635 = vld [vmem:[%s1 + $0x100] sm:$0xf]
  %v3636 = vld [vmem:[%s1 + $0x104] sm:$0xf]
  %v3637 = vld [vmem:[%s1 + $0x108] sm:$0xf]
  %v3638 = vld [vmem:[%s1 + $0x10c] sm:$0xf]
  %v3639 = vld [vmem:[%s1 + $0x110] sm:$0xf]
  %v3640 = vld [vmem:[%s1 + $0x114] sm:$0xf]
  %v3641 = vld [vmem:[%s1 + $0x118] sm:$0xf]
  %v3642 = vld [vmem:[%s1 + $0x11c] sm:$0xf]
  %v3643 = vld [vmem:[%s1 + $0x120] sm:$0xf]
  %v3644 = vld [vmem:[%s1 + $0x124] sm:$0xf]
  %v3645 = vld [vmem:[%s1 + $0x128] sm:$0xf]
  %v3646 = vld [vmem:[%s1 + $0x12c] sm:$0xf]
  %v3647 = vld [vmem:[%s1 + $0x130] sm:$0xf]
  %v3648 = vld [vmem:[%s1 + $0x134] sm:$0xf]
  %v3649 = vld [vmem:[%s1 + $0x138] sm:$0xf]
  %v3650 = vld [vmem:[%s1 + $0x13c] sm:$0xf]
  %v3651 = vld [vmem:[%s1 + $0x140] sm:$0xf]
  %v3652 = vld [vmem:[%s1 + $0x144] sm:$0xf]
  %v3653 = vld [vmem:[%s1 + $0x148] sm:$0xf]
  %v3654 = vld [vmem:[%s1 + $0x14c] sm:$0xf]
  %v3655 = vld [vmem:[%s1 + $0x150] sm:$0xf]
  %v3656 = vld [vmem:[%s1 + $0x154] sm:$0xf]
  %v3657 = vld [vmem:[%s1 + $0x158] sm:$0xf]
  %v3658 = vld [vmem:[%s1 + $0x15c] sm:$0xf]
  %v3659 = vld [vmem:[%s1 + $0x160] sm:$0xf]
  %v3660 = vld [vmem:[%s1 + $0x164] sm:$0xf]
  %v3661 = vld [vmem:[%s1 + $0x168] sm:$0xf]
  %v3662 = vld [vmem:[%s1 + $0x16c] sm:$0xf]
  %v3663 = vld [vmem:[%s1 + $0x170] sm:$0xf]
  %v3664 = vld [vmem:[%s1 + $0x174] sm:$0xf]
  %v3665 = vld [vmem:[%s1 + $0x178] sm:$0xf]
  %v3666 = vld [vmem:[%s1 + $0x17c] sm:$0xf]
  %v3667 = vld [vmem:[%s1 + $0x180] sm:$0xf]
  %v3668 = vld [vmem:[%s1 + $0x184] sm:$0xf]
  %v3669 = vld [vmem:[%s1 + $0x188] sm:$0xf]
  %v3670 = vld [vmem:[%s1 + $0x18c] sm:$0xf]
  %v3671 = vld [vmem:[%s1 + $0x190] sm:$0xf]
  %v3672 = vld [vmem:[%s1 + $0x194] sm:$0xf]
  %v3673 = vld [vmem:[%s1 + $0x198] sm:$0xf]
  %v3674 = vld [vmem:[%s1 + $0x19c] sm:$0xf]
  %v3675 = vld [vmem:[%s1 + $0x1a0] sm:$0xf]
  %v3676 = vld [vmem:[%s1 + $0x1a4] sm:$0xf]
  %v3677 = vld [vmem:[%s1 + $0x1a8] sm:$0xf]
  %v3678 = vld [vmem:[%s1 + $0x1ac] sm:$0xf]
  %v3679 = vld [vmem:[%s1 + $0x1b0] sm:$0xf]
  %v3680 = vld [vmem:[%s1 + $0x1b4] sm:$0xf]
  %v3681 = vld [vmem:[%s1 + $0x1b8] sm:$0xf]
  %v3682 = vld [vmem:[%s1 + $0x1bc] sm:$0xf]
  %v3683 = vld [vmem:[%s2] sm:$0x1]
  %v3685 = vlaneseq
  %v3686 = vshrl.u32 %v3685, 7
  %v3687 = vsub.s32 0, %v3686
  %v3688 = vrot.slane %v3683, %v3687
  %v3754 = vunpack.c.l.b16 %v3507
  %v3755 = vunpack.c.h.b16 %v3507
  %v3756 = vunpack.c.l.b16 %v3508
  %v3757 = vunpack.c.h.b16 %v3508
  %v3758 = vunpack.c.l.b16 %v3509
  %v3759 = vunpack.c.h.b16 %v3509
  %v3760 = vunpack.c.l.b16 %v3510
  %v3761 = vunpack.c.l.b16 %v3511
  %v3762 = vunpack.c.h.b16 %v3511
  %v3763 = vunpack.c.l.b16 %v3512
  %v3764 = vunpack.c.h.b16 %v3512
  %v3765 = vunpack.c.l.b16 %v3513
  %v3766 = vunpack.c.h.b16 %v3513
  %v3767 = vunpack.c.l.b16 %v3514
  %v3768 = vunpack.c.l.b16 %v3515
  %v3769 = vunpack.c.h.b16 %v3515
  %v3770 = vunpack.c.l.b16 %v3516
  %v3771 = vunpack.c.h.b16 %v3516
  %v3772 = vunpack.c.l.b16 %v3517
  %v3773 = vunpack.c.h.b16 %v3517
  %v3774 = vunpack.c.l.b16 %v3518
  %v3775 = vunpack.c.l.b16 %v3519
  %v3776 = vunpack.c.h.b16 %v3519
  %v3777 = vunpack.c.l.b16 %v3520
  %v3778 = vunpack.c.h.b16 %v3520
  %v3779 = vunpack.c.l.b16 %v3521
  %v3780 = vunpack.c.h.b16 %v3521
  %v3781 = vunpack.c.l.b16 %v3522
  %v3782 = vunpack.c.l.b16 %v3523
  %v3783 = vunpack.c.h.b16 %v3523
  %v3784 = vunpack.c.l.b16 %v3524
  %v3785 = vunpack.c.h.b16 %v3524
  %v3786 = vunpack.c.l.b16 %v3525
  %v3787 = vunpack.c.h.b16 %v3525
  %v3788 = vunpack.c.l.b16 %v3526
  %v3789 = vunpack.c.l.b16 %v3527
  %v3790 = vunpack.c.h.b16 %v3527
  %v3791 = vunpack.c.l.b16 %v3528
  %v3792 = vunpack.c.h.b16 %v3528
  %v3793 = vunpack.c.l.b16 %v3529
  %v3794 = vunpack.c.h.b16 %v3529
  %v3795 = vunpack.c.l.b16 %v3530
  %v3796 = vunpack.c.l.b16 %v3531
  %v3797 = vunpack.c.h.b16 %v3531
  %v3798 = vunpack.c.l.b16 %v3532
  %v3799 = vunpack.c.h.b16 %v3532
  %v3800 = vunpack.c.l.b16 %v3533
  %v3801 = vunpack.c.h.b16 %v3533
  %v3802 = vunpack.c.l.b16 %v3534
  %v3803 = vunpack.c.l.b16 %v3535
  %v3804 = vunpack.c.h.b16 %v3535
  %v3805 = vunpack.c.l.b16 %v3536
  %v3806 = vunpack.c.h.b16 %v3536
  %v3807 = vunpack.c.l.b16 %v3537
  %v3808 = vunpack.c.h.b16 %v3537
  %v3809 = vunpack.c.l.b16 %v3538
  %v3810 = vunpack.c.l.b16 %v3539
  %v3811 = vunpack.c.h.b16 %v3539
  %v3812 = vunpack.c.l.b16 %v3540
  %v3813 = vunpack.c.h.b16 %v3540
  %v3814 = vunpack.c.l.b16 %v3541
  %v3815 = vunpack.c.h.b16 %v3541
  %v3816 = vunpack.c.l.b16 %v3542
  %v3817 = vunpack.c.l.b16 %v3543
  %v3818 = vunpack.c.h.b16 %v3543
  %v3819 = vunpack.c.l.b16 %v3544
  %v3820 = vunpack.c.h.b16 %v3544
  %v3821 = vunpack.c.l.b16 %v3545
  %v3822 = vunpack.c.h.b16 %v3545
  %v3823 = vunpack.c.l.b16 %v3546
  %v3824 = vunpack.c.l.b16 %v3547
  %v3825 = vunpack.c.h.b16 %v3547
  %v3826 = vunpack.c.l.b16 %v3548
  %v3827 = vunpack.c.h.b16 %v3548
  %v3828 = vunpack.c.l.b16 %v3549
  %v3829 = vunpack.c.h.b16 %v3549
  %v3830 = vunpack.c.l.b16 %v3550
  %v3831 = vunpack.c.l.b16 %v3551
  %v3832 = vunpack.c.h.b16 %v3551
  %v3833 = vunpack.c.l.b16 %v3552
  %v3834 = vunpack.c.h.b16 %v3552
  %v3835 = vunpack.c.l.b16 %v3553
  %v3836 = vunpack.c.h.b16 %v3553
  %v3837 = vunpack.c.l.b16 %v3554
  %v3838 = vunpack.c.l.b16 %v3555
  %v3839 = vunpack.c.h.b16 %v3555
  %v3840 = vunpack.c.l.b16 %v3556
  %v3841 = vunpack.c.h.b16 %v3556
  %v3842 = vunpack.c.l.b16 %v3557
  %v3843 = vunpack.c.h.b16 %v3557
  %v3844 = vunpack.c.l.b16 %v3558
  %v3845 = vunpack.c.l.b16 %v3559
  %v3846 = vunpack.c.h.b16 %v3559
  %v3847 = vunpack.c.l.b16 %v3560
  %v3848 = vunpack.c.h.b16 %v3560
  %v3849 = vunpack.c.l.b16 %v3561
  %v3850 = vunpack.c.h.b16 %v3561
  %v3851 = vunpack.c.l.b16 %v3562
  %v3852 = vunpack.c.l.b16 %v3563
  %v3853 = vunpack.c.h.b16 %v3563
  %v3854 = vunpack.c.l.b16 %v3564
  %v3855 = vunpack.c.h.b16 %v3564
  %v3856 = vunpack.c.l.b16 %v3565
  %v3857 = vunpack.c.h.b16 %v3565
  %v3858 = vunpack.c.l.b16 %v3566
  %v3859 = vunpack.c.l.b16 %v3567
  %v3860 = vunpack.c.h.b16 %v3567
  %v3861 = vunpack.c.l.b16 %v3568
  %v3862 = vunpack.c.h.b16 %v3568
  %v3863 = vunpack.c.l.b16 %v3569
  %v3864 = vunpack.c.h.b16 %v3569
  %v3865 = vunpack.c.l.b16 %v3570
  %v3866 = vpack.c.b16 %v3761, %v3754
  %v3867 = vpack.c.b16 %v3762, %v3755
  %v3868 = vpack.c.b16 %v3763, %v3756
  %v3869 = vpack.c.b16 %v3764, %v3757
  %v3870 = vpack.c.b16 %v3765, %v3758
  %v3871 = vpack.c.b16 %v3766, %v3759
  %v3872 = vpack.c.b16 %v3767, %v3760
  %v3873 = vpack.c.b16 %v3775, %v3768
  %v3874 = vpack.c.b16 %v3776, %v3769
  %v3875 = vpack.c.b16 %v3777, %v3770
  %v3876 = vpack.c.b16 %v3778, %v3771
  %v3877 = vpack.c.b16 %v3779, %v3772
  %v3878 = vpack.c.b16 %v3780, %v3773
  %v3879 = vpack.c.b16 %v3781, %v3774
  %v3880 = vpack.c.b16 %v3789, %v3782
  %v3881 = vpack.c.b16 %v3790, %v3783
  %v3882 = vpack.c.b16 %v3791, %v3784
  %v3883 = vpack.c.b16 %v3792, %v3785
  %v3884 = vpack.c.b16 %v3793, %v3786
  %v3885 = vpack.c.b16 %v3794, %v3787
  %v3886 = vpack.c.b16 %v3795, %v3788
  %v3887 = vpack.c.b16 %v3803, %v3796
  %v3888 = vpack.c.b16 %v3804, %v3797
  %v3889 = vpack.c.b16 %v3805, %v3798
  %v3890 = vpack.c.b16 %v3806, %v3799
  %v3891 = vpack.c.b16 %v3807, %v3800
  %v3892 = vpack.c.b16 %v3808, %v3801
  %v3893 = vpack.c.b16 %v3809, %v3802
  %v3894 = vpack.c.b16 %v3817, %v3810
  %v3895 = vpack.c.b16 %v3818, %v3811
  %v3896 = vpack.c.b16 %v3819, %v3812
  %v3897 = vpack.c.b16 %v3820, %v3813
  %v3898 = vpack.c.b16 %v3821, %v3814
  %v3899 = vpack.c.b16 %v3822, %v3815
  %v3900 = vpack.c.b16 %v3823, %v3816
  %v3901 = vpack.c.b16 %v3831, %v3824
  %v3902 = vpack.c.b16 %v3832, %v3825
  %v3903 = vpack.c.b16 %v3833, %v3826
  %v3904 = vpack.c.b16 %v3834, %v3827
  %v3905 = vpack.c.b16 %v3835, %v3828
  %v3906 = vpack.c.b16 %v3836, %v3829
  %v3907 = vpack.c.b16 %v3837, %v3830
  %v3908 = vpack.c.b16 %v3845, %v3838
  %v3909 = vpack.c.b16 %v3846, %v3839
  %v3910 = vpack.c.b16 %v3847, %v3840
  %v3911 = vpack.c.b16 %v3848, %v3841
  %v3912 = vpack.c.b16 %v3849, %v3842
  %v3913 = vpack.c.b16 %v3850, %v3843
  %v3914 = vpack.c.b16 %v3851, %v3844
  %v3915 = vpack.c.b16 %v3859, %v3852
  %v3916 = vpack.c.b16 %v3860, %v3853
  %v3917 = vpack.c.b16 %v3861, %v3854
  %v3918 = vpack.c.b16 %v3862, %v3855
  %v3919 = vpack.c.b16 %v3863, %v3856
  %v3920 = vpack.c.b16 %v3864, %v3857
  %v3921 = vpack.c.b16 %v3865, %v3858
  %v4090 = vunpack.c.l.b16 %v3571
  %v4091 = vunpack.c.l.b16 %v3572
  %v4092 = vunpack.c.l.b16 %v3573
  %v4093 = vunpack.c.l.b16 %v3574
  %v4094 = vunpack.c.l.b16 %v3575
  %v4095 = vunpack.c.l.b16 %v3576
  %v4096 = vunpack.c.l.b16 %v3577
  %v4097 = vunpack.c.l.b16 %v3578
  %v4098 = vunpack.c.l.b16 %v3579
  %v4099 = vunpack.c.l.b16 %v3580
  %v4100 = vunpack.c.l.b16 %v3581
  %v4101 = vunpack.c.l.b16 %v3582
  %v4102 = vunpack.c.l.b16 %v3583
  %v4103 = vunpack.c.l.b16 %v3584
  %v4104 = vunpack.c.l.b16 %v3585
  %v4105 = vunpack.c.l.b16 %v3586
  %v4106 = vunpack.c.l.b16 %v3587
  %v4107 = vunpack.c.l.b16 %v3588
  %v4108 = vunpack.c.l.b16 %v3589
  %v4109 = vunpack.c.l.b16 %v3590
  %v4110 = vunpack.c.l.b16 %v3591
  %v4111 = vunpack.c.l.b16 %v3592
  %v4112 = vunpack.c.l.b16 %v3593
  %v4113 = vunpack.c.l.b16 %v3594
  %v4114 = vunpack.c.l.b16 %v3595
  %v4115 = vunpack.c.l.b16 %v3596
  %v4116 = vunpack.c.l.b16 %v3597
  %v4117 = vunpack.c.l.b16 %v3598
  %v4118 = vunpack.c.l.b16 %v3599
  %v4119 = vunpack.c.l.b16 %v3600
  %v4120 = vunpack.c.l.b16 %v3601
  %v4121 = vunpack.c.l.b16 %v3602
  %v4122 = vunpack.c.l.b16 %v3603
  %v4123 = vunpack.c.l.b16 %v3604
  %v4124 = vunpack.c.l.b16 %v3605
  %v4125 = vunpack.c.l.b16 %v3606
  %v4126 = vunpack.c.l.b16 %v3607
  %v4127 = vunpack.c.l.b16 %v3608
  %v4128 = vunpack.c.l.b16 %v3609
  %v4129 = vunpack.c.l.b16 %v3610
  %v4130 = vunpack.c.l.b16 %v3611
  %v4131 = vunpack.c.l.b16 %v3612
  %v4132 = vunpack.c.l.b16 %v3613
  %v4133 = vunpack.c.l.b16 %v3614
  %v4134 = vunpack.c.l.b16 %v3615
  %v4135 = vunpack.c.l.b16 %v3616
  %v4136 = vunpack.c.l.b16 %v3617
  %v4137 = vunpack.c.l.b16 %v3618
  %v4138 = vunpack.c.l.b16 %v3619
  %v4139 = vunpack.c.l.b16 %v3620
  %v4140 = vunpack.c.l.b16 %v3621
  %v4141 = vunpack.c.l.b16 %v3622
  %v4142 = vunpack.c.l.b16 %v3623
  %v4143 = vunpack.c.l.b16 %v3624
  %v4144 = vunpack.c.l.b16 %v3625
  %v4145 = vunpack.c.l.b16 %v3626
  %v4146 = vunpack.c.l.b16 %v3627
  %v4147 = vunpack.c.l.b16 %v3628
  %v4148 = vunpack.c.l.b16 %v3629
  %v4149 = vunpack.c.l.b16 %v3630
  %v4150 = vunpack.c.l.b16 %v3631
  %v4151 = vunpack.c.l.b16 %v3632
  %v4152 = vunpack.c.l.b16 %v3633
  %v4153 = vunpack.c.l.b16 %v3634
  %v4154 = vunpack.c.l.b16 %v3635
  %v4155 = vunpack.c.l.b16 %v3636
  %v4156 = vunpack.c.l.b16 %v3637
  %v4157 = vunpack.c.l.b16 %v3638
  %v4158 = vunpack.c.l.b16 %v3639
  %v4159 = vunpack.c.l.b16 %v3640
  %v4160 = vunpack.c.l.b16 %v3641
  %v4161 = vunpack.c.l.b16 %v3642
  %v4162 = vunpack.c.l.b16 %v3643
  %v4163 = vunpack.c.l.b16 %v3644
  %v4164 = vunpack.c.l.b16 %v3645
  %v4165 = vunpack.c.l.b16 %v3646
  %v4166 = vunpack.c.l.b16 %v3647
  %v4167 = vunpack.c.l.b16 %v3648
  %v4168 = vunpack.c.l.b16 %v3649
  %v4169 = vunpack.c.l.b16 %v3650
  %v4170 = vunpack.c.l.b16 %v3651
  %v4171 = vunpack.c.l.b16 %v3652
  %v4172 = vunpack.c.l.b16 %v3653
  %v4173 = vunpack.c.l.b16 %v3654
  %v4174 = vunpack.c.l.b16 %v3655
  %v4175 = vunpack.c.l.b16 %v3656
  %v4176 = vunpack.c.l.b16 %v3657
  %v4177 = vunpack.c.l.b16 %v3658
  %v4178 = vunpack.c.l.b16 %v3659
  %v4179 = vunpack.c.l.b16 %v3660
  %v4180 = vunpack.c.l.b16 %v3661
  %v4181 = vunpack.c.l.b16 %v3662
  %v4182 = vunpack.c.l.b16 %v3663
  %v4183 = vunpack.c.l.b16 %v3664
  %v4184 = vunpack.c.l.b16 %v3665
  %v4185 = vunpack.c.l.b16 %v3666
  %v4186 = vunpack.c.l.b16 %v3667
  %v4187 = vunpack.c.l.b16 %v3668
  %v4188 = vunpack.c.l.b16 %v3669
  %v4189 = vunpack.c.l.b16 %v3670
  %v4190 = vunpack.c.l.b16 %v3671
  %v4191 = vunpack.c.l.b16 %v3672
  %v4192 = vunpack.c.l.b16 %v3673
  %v4193 = vunpack.c.l.b16 %v3674
  %v4194 = vunpack.c.l.b16 %v3675
  %v4195 = vunpack.c.l.b16 %v3676
  %v4196 = vunpack.c.l.b16 %v3677
  %v4197 = vunpack.c.l.b16 %v3678
  %v4198 = vunpack.c.l.b16 %v3679
  %v4199 = vunpack.c.l.b16 %v3680
  %v4200 = vunpack.c.l.b16 %v3681
  %v4201 = vunpack.c.l.b16 %v3682
  %v4202 = vpack.c.b16 %v4091, %v4090
  %v4203 = vpack.c.b16 %v4093, %v4092
  %v4204 = vpack.c.b16 %v4095, %v4094
  %v4205 = vpack.c.b16 %v4097, %v4096
  %v4206 = vpack.c.b16 %v4099, %v4098
  %v4207 = vpack.c.b16 %v4101, %v4100
  %v4208 = vpack.c.b16 %v4103, %v4102
  %v4209 = vpack.c.b16 %v4105, %v4104
  %v4210 = vpack.c.b16 %v4107, %v4106
  %v4211 = vpack.c.b16 %v4109, %v4108
  %v4212 = vpack.c.b16 %v4111, %v4110
  %v4213 = vpack.c.b16 %v4113, %v4112
  %v4214 = vpack.c.b16 %v4115, %v4114
  %v4215 = vpack.c.b16 %v4117, %v4116
  %v4216 = vpack.c.b16 %v4119, %v4118
  %v4217 = vpack.c.b16 %v4121, %v4120
  %v4218 = vpack.c.b16 %v4123, %v4122
  %v4219 = vpack.c.b16 %v4125, %v4124
  %v4220 = vpack.c.b16 %v4127, %v4126
  %v4221 = vpack.c.b16 %v4129, %v4128
  %v4222 = vpack.c.b16 %v4131, %v4130
  %v4223 = vpack.c.b16 %v4133, %v4132
  %v4224 = vpack.c.b16 %v4135, %v4134
  %v4225 = vpack.c.b16 %v4137, %v4136
  %v4226 = vpack.c.b16 %v4139, %v4138
  %v4227 = vpack.c.b16 %v4141, %v4140
  %v4228 = vpack.c.b16 %v4143, %v4142
  %v4229 = vpack.c.b16 %v4145, %v4144
  %v4230 = vpack.c.b16 %v4147, %v4146
  %v4231 = vpack.c.b16 %v4149, %v4148
  %v4232 = vpack.c.b16 %v4151, %v4150
  %v4233 = vpack.c.b16 %v4153, %v4152
  %v4234 = vpack.c.b16 %v4155, %v4154
  %v4235 = vpack.c.b16 %v4157, %v4156
  %v4236 = vpack.c.b16 %v4159, %v4158
  %v4237 = vpack.c.b16 %v4161, %v4160
  %v4238 = vpack.c.b16 %v4163, %v4162
  %v4239 = vpack.c.b16 %v4165, %v4164
  %v4240 = vpack.c.b16 %v4167, %v4166
  %v4241 = vpack.c.b16 %v4169, %v4168
  %v4242 = vpack.c.b16 %v4171, %v4170
  %v4243 = vpack.c.b16 %v4173, %v4172
  %v4244 = vpack.c.b16 %v4175, %v4174
  %v4245 = vpack.c.b16 %v4177, %v4176
  %v4246 = vpack.c.b16 %v4179, %v4178
  %v4247 = vpack.c.b16 %v4181, %v4180
  %v4248 = vpack.c.b16 %v4183, %v4182
  %v4249 = vpack.c.b16 %v4185, %v4184
  %v4250 = vpack.c.b16 %v4187, %v4186
  %v4251 = vpack.c.b16 %v4189, %v4188
  %v4252 = vpack.c.b16 %v4191, %v4190
  %v4253 = vpack.c.b16 %v4193, %v4192
  %v4254 = vpack.c.b16 %v4195, %v4194
  %v4255 = vpack.c.b16 %v4197, %v4196
  %v4256 = vpack.c.b16 %v4199, %v4198
  %v4257 = vpack.c.b16 %v4201, %v4200
  %4314 = vmatprep.subr.bf16.mxu0 0
  %4315 = vmatpush1.bf16.msra.mxu0 %v4209
  %4316 = vmatprep.subr.bf16.mxu0 0
  %4317 = vmatpush1.bf16.msra.mxu0 %v4208
  %4318 = vmatprep.subr.bf16.mxu0 0
  %4319 = vmatpush1.bf16.msra.mxu0 %v4207
  %4320 = vmatprep.subr.bf16.mxu0 0
  %4321 = vmatpush1.bf16.msra.mxu0 %v4206
  %4322 = vmatprep.subr.bf16.mxu0 0
  %4323 = vmatpush1.bf16.msra.mxu0 %v4205
  %4324 = vmatprep.subr.bf16.mxu0 0
  %4325 = vmatpush1.bf16.msra.mxu0 %v4204
  %4326 = vmatprep.subr.bf16.mxu0 0
  %4327 = vmatpush1.bf16.msra.mxu0 %v4203
  %4328 = vmatprep.subr.bf16.mxu0 0
  %4329 = vmatpush1.bf16.msra.mxu0 %v4202
  %4330 = vmatprep.subr.bf16.mxu0 0
  %4331 = vmatpush2.bf16.msra.mxu0 %v4217
  %4332 = vmatprep.subr.bf16.mxu0 0
  %4333 = vmatpush2.bf16.msra.mxu0 %v4216
  %4334 = vmatprep.subr.bf16.mxu0 0
  %4335 = vmatpush2.bf16.msra.mxu0 %v4215
  %4336 = vmatprep.subr.bf16.mxu0 0
  %4337 = vmatpush2.bf16.msra.mxu0 %v4214
  %4338 = vmatprep.subr.bf16.mxu0 0
  %4339 = vmatpush2.bf16.msra.mxu0 %v4213
  %4340 = vmatprep.subr.bf16.mxu0 0
  %4341 = vmatpush2.bf16.msra.mxu0 %v4212
  %4342 = vmatprep.subr.bf16.mxu0 0
  %4343 = vmatpush2.bf16.msra.mxu0 %v4211
  %4344 = vmatprep.subr.bf16.mxu0 0
  %4345 = vmatpush2.bf16.msra.mxu0 %v4210
  %4346 = vmatprep.mubr.bf16.mxu0 %v3867
  %4347 = vmatmul.mubr.bf16.gmra.mxu0 %v3866
  %v4348 = vpop.f32.mrf.mxu0
  %v4349 = vadd.f32 %v3688, %v4348
  %v4350 = vpop.f32.mrf.mxu0
  %v4351 = vpop.f32.mrf.mxu0
  %v4352 = vadd.f32 %v3688, %v4351
  %v4353 = vpop.f32.mrf.mxu0
  %4354 = vmatprep.mubr.bf16.mxu0 %v3874
  %4355 = vmatmul.mubr.bf16.gmra.mxu0 %v3873
  %v4356 = vpop.f32.mrf.mxu0
  %v4357 = vadd.f32 %v3688, %v4356
  %v4358 = vpop.f32.mrf.mxu0
  %v4359 = vpop.f32.mrf.mxu0
  %v4360 = vadd.f32 %v3688, %v4359
  %v4361 = vpop.f32.mrf.mxu0
  %4362 = vmatprep.mubr.bf16.mxu0 %v3881
  %4363 = vmatmul.mubr.bf16.gmra.mxu0 %v3880
  %v4364 = vpop.f32.mrf.mxu0
  %v4365 = vadd.f32 %v3688, %v4364
  %v4366 = vpop.f32.mrf.mxu0
  %v4367 = vpop.f32.mrf.mxu0
  %v4368 = vadd.f32 %v3688, %v4367
  %v4369 = vpop.f32.mrf.mxu0
  %4370 = vmatprep.mubr.bf16.mxu0 %v3888
  %4371 = vmatmul.mubr.bf16.gmra.mxu0 %v3887
  %v4372 = vpop.f32.mrf.mxu0
  %v4373 = vadd.f32 %v3688, %v4372
  %v4374 = vpop.f32.mrf.mxu0
  %v4375 = vpop.f32.mrf.mxu0
  %v4376 = vadd.f32 %v3688, %v4375
  %v4377 = vpop.f32.mrf.mxu0
  %4378 = vmatprep.mubr.bf16.mxu0 %v3895
  %4379 = vmatmul.mubr.bf16.gmra.mxu0 %v3894
  %v4380 = vpop.f32.mrf.mxu0
  %v4381 = vadd.f32 %v3688, %v4380
  %v4382 = vpop.f32.mrf.mxu0
  %v4383 = vpop.f32.mrf.mxu0
  %v4384 = vadd.f32 %v3688, %v4383
  %v4385 = vpop.f32.mrf.mxu0
  %4386 = vmatprep.mubr.bf16.mxu0 %v3902
  %4387 = vmatmul.mubr.bf16.gmra.mxu0 %v3901
  %v4388 = vpop.f32.mrf.mxu0
  %v4389 = vadd.f32 %v3688, %v4388
  %v4390 = vpop.f32.mrf.mxu0
  %v4391 = vpop.f32.mrf.mxu0
  %v4392 = vadd.f32 %v3688, %v4391
  %v4393 = vpop.f32.mrf.mxu0
  %4394 = vmatprep.mubr.bf16.mxu0 %v3909
  %4395 = vmatmul.mubr.bf16.gmra.mxu0 %v3908
  %v4396 = vpop.f32.mrf.mxu0
  %v4397 = vadd.f32 %v3688, %v4396
  %v4398 = vpop.f32.mrf.mxu0
  %v4399 = vpop.f32.mrf.mxu0
  %v4400 = vadd.f32 %v3688, %v4399
  %v4401 = vpop.f32.mrf.mxu0
  %4402 = vmatprep.mubr.bf16.mxu0 %v3916
  %4403 = vmatmul.mubr.bf16.gmra.mxu0 %v3915
  %v4404 = vpop.f32.mrf.mxu0
  %v4405 = vadd.f32 %v3688, %v4404
  %v4406 = vpop.f32.mrf.mxu0
  %v4407 = vpop.f32.mrf.mxu0
  %v4408 = vadd.f32 %v3688, %v4407
  %v4409 = vpop.f32.mrf.mxu0
  %4410 = vdwg.mxu0
  %4411 = vmatprep.subr.bf16.mxu0 0
  %4412 = vmatpush1.bf16.msra.mxu0 %v4225
  %4413 = vmatprep.subr.bf16.mxu0 0
  %4414 = vmatpush1.bf16.msra.mxu0 %v4224
  %4415 = vmatprep.subr.bf16.mxu0 0
  %4416 = vmatpush1.bf16.msra.mxu0 %v4223
  %4417 = vmatprep.subr.bf16.mxu0 0
  %4418 = vmatpush1.bf16.msra.mxu0 %v4222
  %4419 = vmatprep.subr.bf16.mxu0 0
  %4420 = vmatpush1.bf16.msra.mxu0 %v4221
  %4421 = vmatprep.subr.bf16.mxu0 0
  %4422 = vmatpush1.bf16.msra.mxu0 %v4220
  %4423 = vmatprep.subr.bf16.mxu0 0
  %4424 = vmatpush1.bf16.msra.mxu0 %v4219
  %4425 = vmatprep.subr.bf16.mxu0 0
  %4426 = vmatpush1.bf16.msra.mxu0 %v4218
  %4427 = vmatprep.subr.bf16.mxu0 0
  %4428 = vmatpush2.bf16.msra.mxu0 %v4233
  %4429 = vmatprep.subr.bf16.mxu0 0
  %4430 = vmatpush2.bf16.msra.mxu0 %v4232
  %4431 = vmatprep.subr.bf16.mxu0 0
  %4432 = vmatpush2.bf16.msra.mxu0 %v4231
  %4433 = vmatprep.subr.bf16.mxu0 0
  %4434 = vmatpush2.bf16.msra.mxu0 %v4230
  %4435 = vmatprep.subr.bf16.mxu0 0
  %4436 = vmatpush2.bf16.msra.mxu0 %v4229
  %4437 = vmatprep.subr.bf16.mxu0 0
  %4438 = vmatpush2.bf16.msra.mxu0 %v4228
  %4439 = vmatprep.subr.bf16.mxu0 0
  %4440 = vmatpush2.bf16.msra.mxu0 %v4227
  %4441 = vmatprep.subr.bf16.mxu0 0
  %4442 = vmatpush2.bf16.msra.mxu0 %v4226
  %4443 = vmatprep.mubr.bf16.mxu0 %v3869
  %4444 = vmatmul.mubr.bf16.gmra.mxu0 %v3868
  %v4445 = vpop.f32.mrf.mxu0
  %v4446 = vadd.f32 %v4349, %v4445
  %v4447 = vpop.f32.mrf.mxu0
  %v4448 = vpop.f32.mrf.mxu0
  %v4449 = vadd.f32 %v4352, %v4448
  %v4450 = vpop.f32.mrf.mxu0
  %4451 = vmatprep.mubr.bf16.mxu0 %v3876
  %4452 = vmatmul.mubr.bf16.gmra.mxu0 %v3875
  %v4453 = vpop.f32.mrf.mxu0
  %v4454 = vadd.f32 %v4357, %v4453
  %v4455 = vpop.f32.mrf.mxu0
  %v4456 = vpop.f32.mrf.mxu0
  %v4457 = vadd.f32 %v4360, %v4456
  %v4458 = vpop.f32.mrf.mxu0
  %4459 = vmatprep.mubr.bf16.mxu0 %v3883
  %4460 = vmatmul.mubr.bf16.gmra.mxu0 %v3882
  %v4461 = vpop.f32.mrf.mxu0
  %v4462 = vadd.f32 %v4365, %v4461
  %v4463 = vpop.f32.mrf.mxu0
  %v4464 = vpop.f32.mrf.mxu0
  %v4465 = vadd.f32 %v4368, %v4464
  %v4466 = vpop.f32.mrf.mxu0
  %4467 = vmatprep.mubr.bf16.mxu0 %v3890
  %4468 = vmatmul.mubr.bf16.gmra.mxu0 %v3889
  %v4469 = vpop.f32.mrf.mxu0
  %v4470 = vadd.f32 %v4373, %v4469
  %v4471 = vpop.f32.mrf.mxu0
  %v4472 = vpop.f32.mrf.mxu0
  %v4473 = vadd.f32 %v4376, %v4472
  %v4474 = vpop.f32.mrf.mxu0
  %4475 = vmatprep.mubr.bf16.mxu0 %v3897
  %4476 = vmatmul.mubr.bf16.gmra.mxu0 %v3896
  %v4477 = vpop.f32.mrf.mxu0
  %v4478 = vadd.f32 %v4381, %v4477
  %v4479 = vpop.f32.mrf.mxu0
  %v4480 = vpop.f32.mrf.mxu0
  %v4481 = vadd.f32 %v4384, %v4480
  %v4482 = vpop.f32.mrf.mxu0
  %4483 = vmatprep.mubr.bf16.mxu0 %v3904
  %4484 = vmatmul.mubr.bf16.gmra.mxu0 %v3903
  %v4485 = vpop.f32.mrf.mxu0
  %v4486 = vadd.f32 %v4389, %v4485
  %v4487 = vpop.f32.mrf.mxu0
  %v4488 = vpop.f32.mrf.mxu0
  %v4489 = vadd.f32 %v4392, %v4488
  %v4490 = vpop.f32.mrf.mxu0
  %4491 = vmatprep.mubr.bf16.mxu0 %v3911
  %4492 = vmatmul.mubr.bf16.gmra.mxu0 %v3910
  %v4493 = vpop.f32.mrf.mxu0
  %v4494 = vadd.f32 %v4397, %v4493
  %v4495 = vpop.f32.mrf.mxu0
  %v4496 = vpop.f32.mrf.mxu0
  %v4497 = vadd.f32 %v4400, %v4496
  %v4498 = vpop.f32.mrf.mxu0
  %4499 = vmatprep.mubr.bf16.mxu0 %v3918
  %4500 = vmatmul.mubr.bf16.gmra.mxu0 %v3917
  %v4501 = vpop.f32.mrf.mxu0
  %v4502 = vadd.f32 %v4405, %v4501
  %v4503 = vpop.f32.mrf.mxu0
  %v4504 = vpop.f32.mrf.mxu0
  %v4505 = vadd.f32 %v4408, %v4504
  %v4506 = vpop.f32.mrf.mxu0
  %4507 = vdwg.mxu0
  %4508 = vmatprep.subr.bf16.mxu0 0
  %4509 = vmatpush1.bf16.msra.mxu0 %v4241
  %4510 = vmatprep.subr.bf16.mxu0 0
  %4511 = vmatpush1.bf16.msra.mxu0 %v4240
  %4512 = vmatprep.subr.bf16.mxu0 0
  %4513 = vmatpush1.bf16.msra.mxu0 %v4239
  %4514 = vmatprep.subr.bf16.mxu0 0
  %4515 = vmatpush1.bf16.msra.mxu0 %v4238
  %4516 = vmatprep.subr.bf16.mxu0 0
  %4517 = vmatpush1.bf16.msra.mxu0 %v4237
  %4518 = vmatprep.subr.bf16.mxu0 0
  %4519 = vmatpush1.bf16.msra.mxu0 %v4236
  %4520 = vmatprep.subr.bf16.mxu0 0
  %4521 = vmatpush1.bf16.msra.mxu0 %v4235
  %4522 = vmatprep.subr.bf16.mxu0 0
  %4523 = vmatpush1.bf16.msra.mxu0 %v4234
  %4524 = vmatprep.subr.bf16.mxu0 0
  %4525 = vmatpush2.bf16.msra.mxu0 %v4249
  %4526 = vmatprep.subr.bf16.mxu0 0
  %4527 = vmatpush2.bf16.msra.mxu0 %v4248
  %4528 = vmatprep.subr.bf16.mxu0 0
  %4529 = vmatpush2.bf16.msra.mxu0 %v4247
  %4530 = vmatprep.subr.bf16.mxu0 0
  %4531 = vmatpush2.bf16.msra.mxu0 %v4246
  %4532 = vmatprep.subr.bf16.mxu0 0
  %4533 = vmatpush2.bf16.msra.mxu0 %v4245
  %4534 = vmatprep.subr.bf16.mxu0 0
  %4535 = vmatpush2.bf16.msra.mxu0 %v4244
  %4536 = vmatprep.subr.bf16.mxu0 0
  %4537 = vmatpush2.bf16.msra.mxu0 %v4243
  %4538 = vmatprep.subr.bf16.mxu0 0
  %4539 = vmatpush2.bf16.msra.mxu0 %v4242
  %4540 = vmatprep.mubr.bf16.mxu0 %v3871
  %4541 = vmatmul.mubr.bf16.gmra.mxu0 %v3870
  %v4542 = vpop.f32.mrf.mxu0
  %v4543 = vadd.f32 %v4446, %v4542
  %v4544 = vpop.f32.mrf.mxu0
  %v4545 = vpop.f32.mrf.mxu0
  %v4546 = vadd.f32 %v4449, %v4545
  %v4547 = vpop.f32.mrf.mxu0
  %4548 = vmatprep.mubr.bf16.mxu0 %v3878
  %4549 = vmatmul.mubr.bf16.gmra.mxu0 %v3877
  %v4550 = vpop.f32.mrf.mxu0
  %v4551 = vadd.f32 %v4454, %v4550
  %v4552 = vpop.f32.mrf.mxu0
  %v4553 = vpop.f32.mrf.mxu0
  %v4554 = vadd.f32 %v4457, %v4553
  %v4555 = vpop.f32.mrf.mxu0
  %4556 = vmatprep.mubr.bf16.mxu0 %v3885
  %4557 = vmatmul.mubr.bf16.gmra.mxu0 %v3884
  %v4558 = vpop.f32.mrf.mxu0
  %v4559 = vadd.f32 %v4462, %v4558
  %v4560 = vpop.f32.mrf.mxu0
  %v4561 = vpop.f32.mrf.mxu0
  %v4562 = vadd.f32 %v4465, %v4561
  %v4563 = vpop.f32.mrf.mxu0
  %4564 = vmatprep.mubr.bf16.mxu0 %v3892
  %4565 = vmatmul.mubr.bf16.gmra.mxu0 %v3891
  %v4566 = vpop.f32.mrf.mxu0
  %v4567 = vadd.f32 %v4470, %v4566
  %v4568 = vpop.f32.mrf.mxu0
  %v4569 = vpop.f32.mrf.mxu0
  %v4570 = vadd.f32 %v4473, %v4569
  %v4571 = vpop.f32.mrf.mxu0
  %4572 = vmatprep.mubr.bf16.mxu0 %v3899
  %4573 = vmatmul.mubr.bf16.gmra.mxu0 %v3898
  %v4574 = vpop.f32.mrf.mxu0
  %v4575 = vadd.f32 %v4478, %v4574
  %v4576 = vpop.f32.mrf.mxu0
  %v4577 = vpop.f32.mrf.mxu0
  %v4578 = vadd.f32 %v4481, %v4577
  %v4579 = vpop.f32.mrf.mxu0
  %4580 = vmatprep.mubr.bf16.mxu0 %v3906
  %4581 = vmatmul.mubr.bf16.gmra.mxu0 %v3905
  %v4582 = vpop.f32.mrf.mxu0
  %v4583 = vadd.f32 %v4486, %v4582
  %v4584 = vpop.f32.mrf.mxu0
  %v4585 = vpop.f32.mrf.mxu0
  %v4586 = vadd.f32 %v4489, %v4585
  %v4587 = vpop.f32.mrf.mxu0
  %4588 = vmatprep.mubr.bf16.mxu0 %v3913
  %4589 = vmatmul.mubr.bf16.gmra.mxu0 %v3912
  %v4590 = vpop.f32.mrf.mxu0
  %v4591 = vadd.f32 %v4494, %v4590
  %v4592 = vpop.f32.mrf.mxu0
  %v4593 = vpop.f32.mrf.mxu0
  %v4594 = vadd.f32 %v4497, %v4593
  %v4595 = vpop.f32.mrf.mxu0
  %4596 = vmatprep.mubr.bf16.mxu0 %v3920
  %4597 = vmatmul.mubr.bf16.gmra.mxu0 %v3919
  %v4598 = vpop.f32.mrf.mxu0
  %v4599 = vadd.f32 %v4502, %v4598
  %v4600 = vpop.f32.mrf.mxu0
  %v4601 = vpop.f32.mrf.mxu0
  %v4602 = vadd.f32 %v4505, %v4601
  %v4603 = vpop.f32.mrf.mxu0
  %4604 = vdwg.mxu0
  %4605 = vmatprep.subr.bf16.mxu0 0
  %4606 = vmatpush1.bf16.msra.mxu0 %v4257
  %4607 = vmatprep.subr.bf16.mxu0 0
  %4608 = vmatpush1.bf16.msra.mxu0 %v4256
  %4609 = vmatprep.subr.bf16.mxu0 0
  %4610 = vmatpush1.bf16.msra.mxu0 %v4255
  %4611 = vmatprep.subr.bf16.mxu0 0
  %4612 = vmatpush1.bf16.msra.mxu0 %v4254
  %4613 = vmatprep.subr.bf16.mxu0 0
  %4614 = vmatpush1.bf16.msra.mxu0 %v4253
  %4615 = vmatprep.subr.bf16.mxu0 0
  %4616 = vmatpush1.bf16.msra.mxu0 %v4252
  %4617 = vmatprep.subr.bf16.mxu0 0
  %4618 = vmatpush1.bf16.msra.mxu0 %v4251
  %4619 = vmatprep.subr.bf16.mxu0 0
  %4620 = vmatpush1.bf16.msra.mxu0 %v4250
  %4621 = vmatprep.subr.bf16.mxu0 0
  %4622 = vmatpush2.bf16.msra.mxu0 0
  %4623 = vmatprep.subr.bf16.mxu0 0
  %4624 = vmatpush2.bf16.msra.mxu0 0
  %4625 = vmatprep.subr.bf16.mxu0 0
  %4626 = vmatpush2.bf16.msra.mxu0 0
  %4627 = vmatprep.subr.bf16.mxu0 0
  %4628 = vmatpush2.bf16.msra.mxu0 0
  %4629 = vmatprep.subr.bf16.mxu0 0
  %4630 = vmatpush2.bf16.msra.mxu0 0
  %4631 = vmatprep.subr.bf16.mxu0 0
  %4632 = vmatpush2.bf16.msra.mxu0 0
  %4633 = vmatprep.subr.bf16.mxu0 0
  %4634 = vmatpush2.bf16.msra.mxu0 0
  %4635 = vmatprep.subr.bf16.mxu0 0
  %4636 = vmatpush2.bf16.msra.mxu0 0
  %4637 = vmatprep.mubr.bf16.mxu0 0
  %4638 = vmatmul.mubr.bf16.gmra.mxu0 %v3872
  %v4639 = vpop.f32.mrf.mxu0
  %v4640 = vadd.f32 %v4543, %v4639
  %v4641 = vpop.f32.mrf.mxu0
  %v4642 = vpop.f32.mrf.mxu0
  %v4643 = vadd.f32 %v4546, %v4642
  %v4644 = vpop.f32.mrf.mxu0
  %4645 = vmatprep.mubr.bf16.mxu0 0
  %4646 = vmatmul.mubr.bf16.gmra.mxu0 %v3879
  %v4647 = vpop.f32.mrf.mxu0
  %v4648 = vadd.f32 %v4551, %v4647
  %v4649 = vpop.f32.mrf.mxu0
  %v4650 = vpop.f32.mrf.mxu0
  %v4651 = vadd.f32 %v4554, %v4650
  %v4652 = vpop.f32.mrf.mxu0
  %4653 = vmatprep.mubr.bf16.mxu0 0
  %4654 = vmatmul.mubr.bf16.gmra.mxu0 %v3886
  %v4655 = vpop.f32.mrf.mxu0
  %v4656 = vadd.f32 %v4559, %v4655
  %v4657 = vpop.f32.mrf.mxu0
  %v4658 = vpop.f32.mrf.mxu0
  %v4659 = vadd.f32 %v4562, %v4658
  %v4660 = vpop.f32.mrf.mxu0
  %4661 = vmatprep.mubr.bf16.mxu0 0
  %4662 = vmatmul.mubr.bf16.gmra.mxu0 %v3893
  %v4663 = vpop.f32.mrf.mxu0
  %v4664 = vadd.f32 %v4567, %v4663
  %v4665 = vpop.f32.mrf.mxu0
  %v4666 = vpop.f32.mrf.mxu0
  %v4667 = vadd.f32 %v4570, %v4666
  %v4668 = vpop.f32.mrf.mxu0
  %4669 = vmatprep.mubr.bf16.mxu0 0
  %4670 = vmatmul.mubr.bf16.gmra.mxu0 %v3900
  %v4671 = vpop.f32.mrf.mxu0
  %v4672 = vadd.f32 %v4575, %v4671
  %v4673 = vpop.f32.mrf.mxu0
  %v4674 = vpop.f32.mrf.mxu0
  %v4675 = vadd.f32 %v4578, %v4674
  %v4676 = vpop.f32.mrf.mxu0
  %4677 = vmatprep.mubr.bf16.mxu0 0
  %4678 = vmatmul.mubr.bf16.gmra.mxu0 %v3907
  %v4679 = vpop.f32.mrf.mxu0
  %v4680 = vadd.f32 %v4583, %v4679
  %v4681 = vpop.f32.mrf.mxu0
  %v4682 = vpop.f32.mrf.mxu0
  %v4683 = vadd.f32 %v4586, %v4682
  %v4684 = vpop.f32.mrf.mxu0
  %4685 = vmatprep.mubr.bf16.mxu0 0
  %4686 = vmatmul.mubr.bf16.gmra.mxu0 %v3914
  %v4687 = vpop.f32.mrf.mxu0
  %v4688 = vadd.f32 %v4591, %v4687
  %v4689 = vpop.f32.mrf.mxu0
  %v4690 = vpop.f32.mrf.mxu0
  %v4691 = vadd.f32 %v4594, %v4690
  %v4692 = vpop.f32.mrf.mxu0
  %4693 = vmatprep.mubr.bf16.mxu0 0
  %4694 = vmatmul.mubr.bf16.gmra.mxu0 %v3921
  %v4695 = vpop.f32.mrf.mxu0
  %v4696 = vadd.f32 %v4599, %v4695
  %v4697 = vpop.f32.mrf.mxu0
  %v4698 = vpop.f32.mrf.mxu0
  %v4699 = vadd.f32 %v4602, %v4698
  %v4700 = vpop.f32.mrf.mxu0
  %4701 = vdwg.mxu0
  %4702 = vst [vmem:[%s3] sm:$0xff] %v4640
  %4703 = vst [vmem:[%s3 + $0x8] sm:$0xff] %v4643
  %4704 = vst [vmem:[%s3 + $0x10] sm:$0xff] %v4648
  %4705 = vst [vmem:[%s3 + $0x18] sm:$0xff] %v4651
  %4706 = vst [vmem:[%s3 + $0x20] sm:$0xff] %v4656
  %4707 = vst [vmem:[%s3 + $0x28] sm:$0xff] %v4659
  %4708 = vst [vmem:[%s3 + $0x30] sm:$0xff] %v4664
  %4709 = vst [vmem:[%s3 + $0x38] sm:$0xff] %v4667
  %4710 = vst [vmem:[%s3 + $0x40] sm:$0xff] %v4672
  %4711 = vst [vmem:[%s3 + $0x48] sm:$0xff] %v4675
  %4712 = vst [vmem:[%s3 + $0x50] sm:$0xff] %v4680
  %4713 = vst [vmem:[%s3 + $0x58] sm:$0xff] %v4683
  %4714 = vst [vmem:[%s3 + $0x60] sm:$0xff] %v4688
  %4715 = vst [vmem:[%s3 + $0x68] sm:$0xff] %v4691
  %4716 = vst [vmem:[%s3 + $0x70] sm:$0xff] %v4696
  %4717 = vst [vmem:[%s3 + $0x78] sm:$0xff] %v4699
  // Predicated region
  $region14: #{aspp_forward.1} parent=0 // pred_check
    _
  $region15: #{aspp_forward.1} parent=0 // pred_check_branch
    %4719 = sbr.rel (0) target = $region17
  $region16: #{aspp_forward.1} parent=0 // pred_region
    _
  $region17: #{aspp_forward.1} parent=0 // pred_fallthru
    _
  // Predicated region
  $region18: #{aspp_forward.1} parent=0 // pred_check
    _
  $region19: #{aspp_forward.1} parent=0 // pred_check_branch
    %4721 = sbr.rel (0) target = $region21
  $region20: #{aspp_forward.1} parent=0 // pred_region
    _
  $region21: #{aspp_forward.1} parent=0 // pred_fallthru
    _

</llo_original>
